<compile_context>
chip_gen: v7x
topology: tpu7x:2x2x1
jax: 0.10.0
libtpu: 0.0.40
codegen_flags: <defaults>
</compile_context>

<pallas_src>
import functools

import jax
import jax.numpy as jnp
from jax.experimental import pallas as pl
from jax.experimental.pallas import tpu as pltpu


def _layernorm(x, w, b, eps=1e-5):
    mu = jnp.mean(x, axis=-1, keepdims=True)
    var = jnp.mean((x - mu) ** 2, axis=-1, keepdims=True)
    return (x - mu) * jax.lax.rsqrt(var + eps) * w + b


def streaming_block_kernel(
    xf_ref, cache_ref,
    n1w_ref, n1b_ref,
    wq_ref, wk_ref, wv_ref, wp_ref, bp_ref,
    n2w_ref, n2b_ref,
    w1_ref, b1_ref, w2_ref, b2_ref,
    out_ref,
    k_sc, v_sc, attn_sc,
    *, num_heads, q_tile_size,
):
    f32 = jnp.float32
    bf16 = jnp.bfloat16

    H = num_heads
    TQ = q_tile_size
    D = xf_ref.shape[-1]
    Dh = D // H

    n1w = n1w_ref[...].astype(f32)          # (1, D)
    n1b = n1b_ref[...].astype(f32)

    qi = pl.program_id(1)

    # ---- K/V over (cache ++ full x): computed ONCE per batch, kept in VMEM scratch ----
    @pl.when(qi == 0)
    def _():
        ln_c = _layernorm(cache_ref[0].astype(f32), n1w, n1b).astype(bf16)   # (M, D)
        ln_x = _layernorm(xf_ref[0].astype(f32), n1w, n1b).astype(bf16)      # (N, D)
        kv_in = jnp.concatenate([ln_c, ln_x], axis=0)                        # (L, D) bf16
        k_sc[...] = jnp.dot(kv_in, wk_ref[...], preferred_element_type=f32).astype(bf16)
        v_sc[...] = jnp.dot(kv_in, wv_ref[...], preferred_element_type=f32).astype(bf16)

    # ---- query tile: sliced in-kernel from the resident full-sequence block ----
    start = pl.multiple_of(qi * TQ, TQ)
    xq = xf_ref[0, pl.ds(start, TQ), :].astype(f32)      # (TQ, D) residual rows, f32
    xq_n = _layernorm(xq, n1w, n1b).astype(bf16)
    # Attention scale (Dh**-0.5) is folded into wq host-side.
    q = jnp.dot(xq_n, wq_ref[...], preferred_element_type=f32).astype(bf16)  # (TQ, D)

    k = k_sc[...]                                         # (L, D) bf16
    v = v_sc[...]

    # Per-head attention (H small & static). Head outputs go straight into a VMEM slab
    # (no lane-axis concat of H pieces). Fully overwritten each step since H*Dh == D.
    # TODO(synk): for Dh not a multiple of 128 these lane slices are sub-vreg; an
    # (H, TQ, Dh) scratch + one einshape would avoid the masked partial stores.
    for h in range(H):
        lo, hi = h * Dh, (h + 1) * Dh
        qh = q[:, lo:hi]                                   # (TQ, Dh) bf16
        kh = k[:, lo:hi]                                   # (L, Dh)  bf16
        vh = v[:, lo:hi]                                   # (L, Dh)  bf16
        s = jnp.einsum("nd,ld->nl", qh, kh, preferred_element_type=f32)      # (TQ, L) f32
        s = s - jnp.max(s, axis=-1, keepdims=True)
        p = jnp.exp(s)                                                        # f32 (EUP)
        inv = pl.reciprocal(jnp.sum(p, axis=-1, keepdims=True), approx=True)  # (TQ, 1)
        oh = jnp.einsum("nl,ld->nd", p.astype(bf16), vh,
                        preferred_element_type=f32)                           # (TQ, Dh) f32
        # normalize AFTER the PV matmul: TQ*Dh multiplies instead of TQ*L
        attn_sc[:, lo:hi] = (oh * inv).astype(bf16)

    # Output projection (+bias) + first residual. ls1 / drop_path1 are Identity.
    proj = (jnp.dot(attn_sc[...], wp_ref[...], preferred_element_type=f32)
            + bp_ref[...].astype(f32))
    x1 = xq + proj

    # norm2 + MLP (fc1 -> ReLU -> fc2) + second residual. ls2 / drop_path2 Identity.
    x1n = _layernorm(x1, n2w_ref[...].astype(f32), n2b_ref[...].astype(f32)).astype(bf16)
    h1 = (jnp.dot(x1n, w1_ref[...], preferred_element_type=f32)
          + b1_ref[...].astype(f32))
    h1 = jnp.maximum(h1, 0.0).astype(bf16)
    h2 = (jnp.dot(h1, w2_ref[...], preferred_element_type=f32)
          + b2_ref[...].astype(f32))

    out_ref[0] = (x1 + h2).astype(out_ref.dtype)


# ------------------------------ host-side helpers ------------------------------


def prepare_params(params, num_heads):
    """One-time weight prep: split wkv, cast matmul weights to bf16, fold attn scale."""
    D = params["wq"].shape[0]
    Dh = D // num_heads
    scale = Dh ** -0.5
    bf16 = jnp.bfloat16
    f32 = jnp.float32
    wkv = params["wkv"]
    return {
        "n1w": params["n1w"].astype(f32),
        "n1b": params["n1b"].astype(f32),
        "wq": (params["wq"] * scale).astype(bf16),     # attention scale folded in
        "wk": wkv[:, :D].astype(bf16),                 # split once, host-side
        "wv": wkv[:, D:].astype(bf16),
        "wp": params["wp"].astype(bf16),
        "bp": params["bp"].astype(f32),
        "n2w": params["n2w"].astype(f32),
        "n2b": params["n2b"].astype(f32),
        "w1": params["w1"].astype(bf16),
        "b1": params["b1"].astype(f32),
        "w2": params["w2"].astype(bf16),
        "b2": params["b2"].astype(f32),
    }


def _vmem_limit_bytes():
    try:
        cap = int(pltpu.get_tpu_info().vmem_capacity_bytes)
        # ~3/4 of physical: 96 MiB on v5e/v6e (128 MiB), 48 MiB on v7x (64 MiB/TC).
        return min(cap * 3 // 4, 100 * 1024 * 1024)
    except Exception:
        return 48 * 1024 * 1024   # safe on every generation


def _pick_q_tile(requested):
    if requested is not None:
        return int(requested)
    try:
        ver = str(getattr(pltpu.get_tpu_info(), "chip_version", ""))
        if "5" in ver:
            return 128            # v5e: 128-wide MXU
    except Exception:
        pass
    return 256                    # v6e / v7x: 256-wide MXU


def _cost_estimate(B, N, M, D, hidden, num_heads, x, cache, param_arrays):
    L = M + N
    flops = B * (
        2 * N * D * D              # q projection
        + 2 * L * D * (2 * D)      # k + v projections
        + 2 * N * L * D            # q @ k^T
        + 2 * N * L * D            # p @ v
        + 2 * N * D * D            # output projection
        + 2 * N * D * hidden * 2   # MLP fc1 + fc2
    )
    transcendentals = B * num_heads * N * L
    act_bytes = (x.size + cache.size + B * N * D) * x.dtype.itemsize
    w_bytes = sum(int(a.size) * a.dtype.itemsize for a in param_arrays)
    return pl.CostEstimate(flops=int(flops),
                           transcendentals=int(transcendentals),
                           bytes_accessed=int(act_bytes + w_bytes))


def _build_call(kernel, B, N, M, D, TQ, NT, out_dtype, param_arrays,
                vmem_limit, cost, single_buffer_weights):
    L = M + N

    if single_buffer_weights:
        def const_spec(a):
            # index_map constant across the whole grid -> single-buffer the weights.
            return pl.BlockSpec(a.shape, lambda b, qi: (0, 0),
                                pipeline_mode=pl.Buffered(buffer_count=1))
    else:
        def const_spec(a):
            return pl.BlockSpec(a.shape, lambda b, qi: (0, 0))

    in_specs = (
        [pl.BlockSpec((1, N, D), lambda b, qi: (b, 0, 0)),    # full sequence (resident across qi)
         pl.BlockSpec((1, M, D), lambda b, qi: (b, 0, 0))]    # cache
        + [const_spec(a) for a in param_arrays]
    )

    return pl.pallas_call(
        kernel,
        out_shape=jax.ShapeDtypeStruct((B, N, D), out_dtype),
        grid_spec=pltpu.PrefetchScalarGridSpec(
            num_scalar_prefetch=0,
            grid=(B, NT),
            in_specs=in_specs,
            out_specs=pl.BlockSpec((1, TQ, D), lambda b, qi: (b, qi, 0)),
            scratch_shapes=[
                pltpu.VMEM((L, D), jnp.bfloat16),    # K (persistent per batch)
                pltpu.VMEM((L, D), jnp.bfloat16),    # V (persistent per batch)
                pltpu.VMEM((TQ, D), jnp.bfloat16),   # per-head attention output slab
            ],
        ),
        compiler_params=pltpu.CompilerParams(
            dimension_semantics=("parallel", "arbitrary"),
            vmem_limit_bytes=vmem_limit,
        ),
        cost_estimate=cost,
    )


def streaming_block(x, cache, prep, num_heads, q_tile=None):
    B, N, D = x.shape
    M = cache.shape[1]
    assert M > 0, "kernel assumes a non-empty streaming cache"
    # TODO(synk): the empty-cache (M == 0) branch of the PyTorch module is not handled here.
    assert D % num_heads == 0, "dim must be divisible by num_heads"

    q_tile = _pick_q_tile(q_tile)
    if N <= q_tile:
        TQ = N
    else:
        TQ = q_tile
        while N % TQ != 0 and TQ > 8:
            TQ //= 2
        if N % TQ != 0:
            TQ = N   # TODO(synk): pad N host-side for ragged query tiling instead
    NT = N // TQ

    param_arrays = [prep[k] for k in ("n1w", "n1b", "wq", "wk", "wv", "wp", "bp",
                                      "n2w", "n2b", "w1", "b1", "w2", "b2")]
    hidden = prep["w1"].shape[1]
    cost = _cost_estimate(B, N, M, D, hidden, num_heads, x, cache, param_arrays)
    vmem_limit = _vmem_limit_bytes()
    kernel = functools.partial(streaming_block_kernel,
                               num_heads=num_heads, q_tile_size=TQ)

    try:
        call = _build_call(kernel, B, N, M, D, TQ, NT, x.dtype, param_arrays,
                           vmem_limit, cost, single_buffer_weights=True)
        return call(x, cache, *param_arrays)
    except Exception:
        # pl.Buffered(1) not accepted on this JAX build -> default (double) buffering.
        call = _build_call(kernel, B, N, M, D, TQ, NT, x.dtype, param_arrays,
                           vmem_limit, cost, single_buffer_weights=False)
        return call(x, cache, *param_arrays)


# ------------------------------ pure-JAX reference ------------------------------


def streaming_block_ref(x, cache, params, num_heads):
    """Pure-JAX f32 reference mirroring the PyTorch module (dropout=0, Identity ls/drop_path)."""
    D = x.shape[-1]
    H = num_heads
    Dh = D // H

    def ln(t, w, b):
        mu = jnp.mean(t, axis=-1, keepdims=True)
        var = jnp.mean((t - mu) ** 2, axis=-1, keepdims=True)
        return (t - mu) / jnp.sqrt(var + 1e-5) * w[0] + b[0]

    xn = ln(x, params["n1w"], params["n1b"])
    cn = ln(cache, params["n1w"], params["n1b"])
    q = xn @ params["wq"]
    kv_in = jnp.concatenate([cn, xn], axis=1)
    kv = kv_in @ params["wkv"]
    k, v = kv[..., :D], kv[..., D:]

    B, N, _ = x.shape
    L = kv_in.shape[1]
    qh = q.reshape(B, N, H, Dh).transpose(0, 2, 1, 3)
    kh = k.reshape(B, L, H, Dh).transpose(0, 2, 1, 3)
    vh = v.reshape(B, L, H, Dh).transpose(0, 2, 1, 3)
    attn = jnp.einsum("bhnd,bhld->bhnl", qh, kh) * (Dh ** -0.5)
    attn = jax.nn.softmax(attn, axis=-1)
    o = jnp.einsum("bhnl,bhld->bhnd", attn, vh).transpose(0, 2, 1, 3).reshape(B, N, D)
    o = o @ params["wp"] + params["bp"][0]
    x1 = x + o

    x1n = ln(x1, params["n2w"], params["n2b"])
    h = jnp.maximum(x1n @ params["w1"] + params["b1"][0], 0.0)
    h = h @ params["w2"] + params["b2"][0]
    return x1 + h


if __name__ == "__main__":
    B, N, M, D, H = 2, 8, 16, 32, 4
    hidden = int(D * 4.0)

    key = jax.random.PRNGKey(0)
    ks = jax.random.split(key, 16)

    def rnd(k, shape, scale=0.1):
        return (scale * jax.random.normal(k, shape)).astype(jnp.float32)

    params = {
        # LayerNorm 1
        "n1w": (1.0 + rnd(ks[0], (1, D))),
        "n1b": rnd(ks[1], (1, D)),
        # StreamingAttention: to_q (no bias), to_kv (no bias), proj (+bias)
        "wq":  rnd(ks[2], (D, D)),
        "wkv": rnd(ks[3], (D, 2 * D)),
        "wp":  rnd(ks[4], (D, D)),
        "bp":  rnd(ks[5], (1, D)),
        # LayerNorm 2
        "n2w": (1.0 + rnd(ks[6], (1, D))),
        "n2b": rnd(ks[7], (1, D)),
        # Mlp: fc1 (+bias) -> ReLU -> fc2 (+bias)
        "w1": rnd(ks[8], (D, hidden)),
        "b1": rnd(ks[9], (1, hidden)),
        "w2": rnd(ks[10], (hidden, D)),
        "b2": rnd(ks[11], (1, D)),
    }
    prep = prepare_params(params, num_heads=H)   # one-time weight prep

    x = rnd(ks[12], (B, N, D), scale=1.0)
    cache = rnd(ks[13], (B, M, D), scale=1.0)

    # Single query-tile (streaming/decode) path.
    out = jax.block_until_ready(streaming_block(x, cache, prep, num_heads=H))
    ref = streaming_block_ref(x, cache, params, num_heads=H)
    assert out.shape == (B, N, D)
    # bf16 MXU operands (f32 accumulation) vs f32 reference -> bf16-appropriate tolerance.
    assert jnp.allclose(out, ref, atol=5e-2, rtol=5e-2), float(jnp.abs(out - ref).max())

    # Multi-tile path (NT > 1): exercises the persistent K/V scratch + in-kernel query slice.
    N2 = 16
    x2 = rnd(ks[14], (B, N2, D), scale=1.0)
    out2 = jax.block_until_ready(streaming_block(x2, cache, prep, num_heads=H, q_tile=8))
    ref2 = streaming_block_ref(x2, cache, params, num_heads=H)
    assert out2.shape == (B, N2, D)
    assert jnp.allclose(out2, ref2, atol=5e-2, rtol=5e-2), float(jnp.abs(out2 - ref2).max())

    print("KERNEL_OK")
</pallas_src>

<mosaic_0001>
module attributes {stable_mosaic.version = 11 : i64} {
  func.func @streaming_block_kernel(%arg0: i32, %arg1: i32, %arg2: memref<1x8x32xf32, #tpu.memory_space<vmem>>, %arg3: memref<1x16x32xf32, #tpu.memory_space<vmem>>, %arg4: memref<1x32xf32, #tpu.memory_space<vmem>>, %arg5: memref<1x32xf32, #tpu.memory_space<vmem>>, %arg6: memref<32x32xbf16, #tpu.memory_space<vmem>>, %arg7: memref<32x32xbf16, #tpu.memory_space<vmem>>, %arg8: memref<32x32xbf16, #tpu.memory_space<vmem>>, %arg9: memref<32x32xbf16, #tpu.memory_space<vmem>>, %arg10: memref<1x32xf32, #tpu.memory_space<vmem>>, %arg11: memref<1x32xf32, #tpu.memory_space<vmem>>, %arg12: memref<1x32xf32, #tpu.memory_space<vmem>>, %arg13: memref<32x128xbf16, #tpu.memory_space<vmem>>, %arg14: memref<1x128xf32, #tpu.memory_space<vmem>>, %arg15: memref<128x32xbf16, #tpu.memory_space<vmem>>, %arg16: memref<1x32xf32, #tpu.memory_space<vmem>>, %arg17: memref<1x8x32xf32, #tpu.memory_space<vmem>>, %arg18: memref<24x32xbf16, #tpu.memory_space<vmem>>, %arg19: memref<24x32xbf16, #tpu.memory_space<vmem>>, %arg20: memref<8x32xbf16, #tpu.memory_space<vmem>>) attributes {dimension_semantics = [#tpu.dimension_semantics<parallel>, #tpu.dimension_semantics<arbitrary>], iteration_bounds = array<i64: 2, 1>, scalar_prefetch = 0 : i64, scratch_operands = 3 : i64, tpu.core_type = #tpu.core_type<tc>, window_params = [{transform_indices = @transform_0, window_bounds = array<i64: 1, 8, 32>}, {transform_indices = @transform_1, window_bounds = array<i64: 1, 16, 32>}, {pipeline_mode = #tpu.pipeline_mode<synchronous>, transform_indices = @transform_2, window_bounds = array<i64: 1, 32>}, {pipeline_mode = #tpu.pipeline_mode<synchronous>, transform_indices = @transform_3, window_bounds = array<i64: 1, 32>}, {pipeline_mode = #tpu.pipeline_mode<synchronous>, transform_indices = @transform_4, window_bounds = array<i64: 32, 32>}, {pipeline_mode = #tpu.pipeline_mode<synchronous>, transform_indices = @transform_5, window_bounds = array<i64: 32, 32>}, {pipeline_mode = #tpu.pipeline_mode<synchronous>, transform_indices = @transform_6, window_bounds = array<i64: 32, 32>}, {pipeline_mode = #tpu.pipeline_mode<synchronous>, transform_indices = @transform_7, window_bounds = array<i64: 32, 32>}, {pipeline_mode = #tpu.pipeline_mode<synchronous>, transform_indices = @transform_8, window_bounds = array<i64: 1, 32>}, {pipeline_mode = #tpu.pipeline_mode<synchronous>, transform_indices = @transform_9, window_bounds = array<i64: 1, 32>}, {pipeline_mode = #tpu.pipeline_mode<synchronous>, transform_indices = @transform_10, window_bounds = array<i64: 1, 32>}, {pipeline_mode = #tpu.pipeline_mode<synchronous>, transform_indices = @transform_11, window_bounds = array<i64: 32, 128>}, {pipeline_mode = #tpu.pipeline_mode<synchronous>, transform_indices = @transform_12, window_bounds = array<i64: 1, 128>}, {pipeline_mode = #tpu.pipeline_mode<synchronous>, transform_indices = @transform_13, window_bounds = array<i64: 128, 32>}, {pipeline_mode = #tpu.pipeline_mode<synchronous>, transform_indices = @transform_14, window_bounds = array<i64: 1, 32>}, {transform_indices = @transform_15, window_bounds = array<i64: 1, 8, 32>}]} {
    %c0 = arith.constant 0 : index
    %c0_0 = arith.constant 0 : index
    %0 = vector.load %arg4[%c0, %c0_0] : memref<1x32xf32, #tpu.memory_space<vmem>>, vector<1x32xf32>
    %c0_1 = arith.constant 0 : index
    %c0_2 = arith.constant 0 : index
    %1 = vector.load %arg5[%c0_1, %c0_2] : memref<1x32xf32, #tpu.memory_space<vmem>>, vector<1x32xf32>
    %c0_i32 = arith.constant 0 : i32
    %2 = arith.cmpi eq, %arg1, %c0_i32 : i32
    %3 = arith.extui %2 : i1 to i32
    %c0_i32_3 = arith.constant 0 : i32
    %4 = arith.cmpi ne, %3, %c0_i32_3 : i32
    scf.if %4 {
      %c0_68 = arith.constant 0 : index
      %c0_69 = arith.constant 0 : index
      %c0_70 = arith.constant 0 : index
      %159 = vector.load %arg3[%c0_68, %c0_69, %c0_70] : memref<1x16x32xf32, #tpu.memory_space<vmem>>, vector<1x16x32xf32>
      %160 = vector.shape_cast %159 : vector<1x16x32xf32> to vector<16x32xf32>
      %cst_71 = arith.constant dense<0.000000e+00> : vector<16xf32>
      %161 = vector.multi_reduction <add>, %160, %cst_71 [1] : vector<16x32xf32> to vector<16xf32>
      %162 = vector.shape_cast %161 : vector<16xf32> to vector<16x1xf32>
      %cst_72 = arith.constant 3.200000e+01 : f32
      %163 = vector.broadcast %cst_72 : f32 to vector<16x1xf32>
      %164 = arith.divf %162, %163 : vector<16x1xf32>
      %165 = vector.broadcast %164 : vector<16x1xf32> to vector<16x32xf32>
      %166 = arith.subf %160, %165 : vector<16x32xf32>
      %167 = arith.mulf %166, %166 : vector<16x32xf32>
      %cst_73 = arith.constant dense<0.000000e+00> : vector<16xf32>
      %168 = vector.multi_reduction <add>, %167, %cst_73 [1] : vector<16x32xf32> to vector<16xf32>
      %169 = vector.shape_cast %168 : vector<16xf32> to vector<16x1xf32>
      %cst_74 = arith.constant 3.200000e+01 : f32
      %170 = vector.broadcast %cst_74 : f32 to vector<16x1xf32>
      %171 = arith.divf %169, %170 : vector<16x1xf32>
      %172 = vector.broadcast %164 : vector<16x1xf32> to vector<16x32xf32>
      %173 = arith.subf %160, %172 : vector<16x32xf32>
      %cst_75 = arith.constant 9.99999974E-6 : f32
      %174 = vector.broadcast %cst_75 : f32 to vector<16x1xf32>
      %175 = arith.addf %171, %174 : vector<16x1xf32>
      %176 = math.rsqrt %175 : vector<16x1xf32>
      %177 = vector.broadcast %176 : vector<16x1xf32> to vector<16x32xf32>
      %178 = arith.mulf %173, %177 : vector<16x32xf32>
      %179 = vector.broadcast %0 : vector<1x32xf32> to vector<16x32xf32>
      %180 = arith.mulf %178, %179 : vector<16x32xf32>
      %181 = vector.broadcast %1 : vector<1x32xf32> to vector<16x32xf32>
      %182 = arith.addf %180, %181 : vector<16x32xf32>
      %183 = arith.truncf %182 : vector<16x32xf32> to vector<16x32xbf16>
      %c0_76 = arith.constant 0 : index
      %c0_77 = arith.constant 0 : index
      %c0_78 = arith.constant 0 : index
      %184 = vector.load %arg2[%c0_76, %c0_77, %c0_78] : memref<1x8x32xf32, #tpu.memory_space<vmem>>, vector<1x8x32xf32>
      %185 = vector.shape_cast %184 : vector<1x8x32xf32> to vector<8x32xf32>
      %cst_79 = arith.constant dense<0.000000e+00> : vector<8xf32>
      %186 = vector.multi_reduction <add>, %185, %cst_79 [1] : vector<8x32xf32> to vector<8xf32>
      %187 = vector.shape_cast %186 : vector<8xf32> to vector<8x1xf32>
      %cst_80 = arith.constant 3.200000e+01 : f32
      %188 = vector.broadcast %cst_80 : f32 to vector<8x1xf32>
      %189 = arith.divf %187, %188 : vector<8x1xf32>
      %190 = vector.broadcast %189 : vector<8x1xf32> to vector<8x32xf32>
      %191 = arith.subf %185, %190 : vector<8x32xf32>
      %192 = arith.mulf %191, %191 : vector<8x32xf32>
      %cst_81 = arith.constant dense<0.000000e+00> : vector<8xf32>
      %193 = vector.multi_reduction <add>, %192, %cst_81 [1] : vector<8x32xf32> to vector<8xf32>
      %194 = vector.shape_cast %193 : vector<8xf32> to vector<8x1xf32>
      %cst_82 = arith.constant 3.200000e+01 : f32
      %195 = vector.broadcast %cst_82 : f32 to vector<8x1xf32>
      %196 = arith.divf %194, %195 : vector<8x1xf32>
      %197 = vector.broadcast %189 : vector<8x1xf32> to vector<8x32xf32>
      %198 = arith.subf %185, %197 : vector<8x32xf32>
      %cst_83 = arith.constant 9.99999974E-6 : f32
      %199 = vector.broadcast %cst_83 : f32 to vector<8x1xf32>
      %200 = arith.addf %196, %199 : vector<8x1xf32>
      %201 = math.rsqrt %200 : vector<8x1xf32>
      %202 = vector.broadcast %201 : vector<8x1xf32> to vector<8x32xf32>
      %203 = arith.mulf %198, %202 : vector<8x32xf32>
      %204 = vector.broadcast %0 : vector<1x32xf32> to vector<8x32xf32>
      %205 = arith.mulf %203, %204 : vector<8x32xf32>
      %206 = vector.broadcast %1 : vector<1x32xf32> to vector<8x32xf32>
      %207 = arith.addf %205, %206 : vector<8x32xf32>
      %208 = arith.truncf %207 : vector<8x32xf32> to vector<8x32xbf16>
      %209 = tpu.concatenate %183, %208 in 0 : vector<16x32xbf16>, vector<8x32xbf16> -> vector<24x32xbf16>
      %c0_84 = arith.constant 0 : index
      %c0_85 = arith.constant 0 : index
      %210 = vector.load %arg7[%c0_84, %c0_85] : memref<32x32xbf16, #tpu.memory_space<vmem>>, vector<32x32xbf16>
      %cst_86 = arith.constant dense<0.000000e+00> : vector<24x32xf32>
      %211 = tpu.matmul %209, %210, %cst_86 {dimension_numbers = #tpu.dot_dimension_numbers<[1], [0], [0], [1], [0, 0, 1, 1], [], []>} : vector<24x32xbf16>, vector<32x32xbf16>, vector<24x32xf32> -> vector<24x32xf32>
      %212 = arith.truncf %211 : vector<24x32xf32> to vector<24x32xbf16>
      %c0_87 = arith.constant 0 : index
      %c0_88 = arith.constant 0 : index
      %213 = vector.load %arg18[%c0_87, %c0_88] : memref<24x32xbf16, #tpu.memory_space<vmem>>, vector<24x32xbf16>
      tpu.vector_store %arg18[%c0_87, %c0_88], %212 {strides = array<i32>} : memref<24x32xbf16, #tpu.memory_space<vmem>>, vector<24x32xbf16>,
      %c0_89 = arith.constant 0 : index
      %c0_90 = arith.constant 0 : index
      %214 = vector.load %arg8[%c0_89, %c0_90] : memref<32x32xbf16, #tpu.memory_space<vmem>>, vector<32x32xbf16>
      %cst_91 = arith.constant dense<0.000000e+00> : vector<24x32xf32>
      %215 = tpu.matmul %209, %214, %cst_91 {dimension_numbers = #tpu.dot_dimension_numbers<[1], [0], [0], [1], [0, 0, 1, 1], [], []>} : vector<24x32xbf16>, vector<32x32xbf16>, vector<24x32xf32> -> vector<24x32xf32>
      %216 = arith.truncf %215 : vector<24x32xf32> to vector<24x32xbf16>
      %c0_92 = arith.constant 0 : index
      %c0_93 = arith.constant 0 : index
      %217 = vector.load %arg19[%c0_92, %c0_93] : memref<24x32xbf16, #tpu.memory_space<vmem>>, vector<24x32xbf16>
      tpu.vector_store %arg19[%c0_92, %c0_93], %216 {strides = array<i32>} : memref<24x32xbf16, #tpu.memory_space<vmem>>, vector<24x32xbf16>,
    } else {
    }
    %c8_i32 = arith.constant 8 : i32
    %5 = arith.muli %arg1, %c8_i32 : i32
    %6 = tpu.assume_multiple %5, 8 : i32
    %c0_4 = arith.constant 0 : index
    %7 = arith.index_cast %6 : i32 to index
    %c0_5 = arith.constant 0 : index
    %8 = vector.load %arg2[%c0_4, %7, %c0_5] : memref<1x8x32xf32, #tpu.memory_space<vmem>>, vector<1x8x32xf32>
    %9 = vector.shape_cast %8 : vector<1x8x32xf32> to vector<8x32xf32>
    %cst = arith.constant dense<0.000000e+00> : vector<8xf32>
    %10 = vector.multi_reduction <add>, %9, %cst [1] : vector<8x32xf32> to vector<8xf32>
    %11 = vector.shape_cast %10 : vector<8xf32> to vector<8x1xf32>
    %cst_6 = arith.constant 3.200000e+01 : f32
    %12 = vector.broadcast %cst_6 : f32 to vector<8x1xf32>
    %13 = arith.divf %11, %12 : vector<8x1xf32>
    %14 = vector.broadcast %13 : vector<8x1xf32> to vector<8x32xf32>
    %15 = arith.subf %9, %14 : vector<8x32xf32>
    %16 = arith.mulf %15, %15 : vector<8x32xf32>
    %cst_7 = arith.constant dense<0.000000e+00> : vector<8xf32>
    %17 = vector.multi_reduction <add>, %16, %cst_7 [1] : vector<8x32xf32> to vector<8xf32>
    %18 = vector.shape_cast %17 : vector<8xf32> to vector<8x1xf32>
    %cst_8 = arith.constant 3.200000e+01 : f32
    %19 = vector.broadcast %cst_8 : f32 to vector<8x1xf32>
    %20 = arith.divf %18, %19 : vector<8x1xf32>
    %21 = vector.broadcast %13 : vector<8x1xf32> to vector<8x32xf32>
    %22 = arith.subf %9, %21 : vector<8x32xf32>
    %cst_9 = arith.constant 9.99999974E-6 : f32
    %23 = vector.broadcast %cst_9 : f32 to vector<8x1xf32>
    %24 = arith.addf %20, %23 : vector<8x1xf32>
    %25 = math.rsqrt %24 : vector<8x1xf32>
    %26 = vector.broadcast %25 : vector<8x1xf32> to vector<8x32xf32>
    %27 = arith.mulf %22, %26 : vector<8x32xf32>
    %28 = vector.broadcast %0 : vector<1x32xf32> to vector<8x32xf32>
    %29 = arith.mulf %27, %28 : vector<8x32xf32>
    %30 = vector.broadcast %1 : vector<1x32xf32> to vector<8x32xf32>
    %31 = arith.addf %29, %30 : vector<8x32xf32>
    %32 = arith.truncf %31 : vector<8x32xf32> to vector<8x32xbf16>
    %c0_10 = arith.constant 0 : index
    %c0_11 = arith.constant 0 : index
    %33 = vector.load %arg6[%c0_10, %c0_11] : memref<32x32xbf16, #tpu.memory_space<vmem>>, vector<32x32xbf16>
    %cst_12 = arith.constant dense<0.000000e+00> : vector<8x32xf32>
    %34 = tpu.matmul %32, %33, %cst_12 {dimension_numbers = #tpu.dot_dimension_numbers<[1], [0], [0], [1], [0, 0, 1, 1], [], []>} : vector<8x32xbf16>, vector<32x32xbf16>, vector<8x32xf32> -> vector<8x32xf32>
    %35 = arith.truncf %34 : vector<8x32xf32> to vector<8x32xbf16>
    %c0_13 = arith.constant 0 : index
    %c0_14 = arith.constant 0 : index
    %36 = vector.load %arg18[%c0_13, %c0_14] : memref<24x32xbf16, #tpu.memory_space<vmem>>, vector<24x32xbf16>
    %c0_15 = arith.constant 0 : index
    %c0_16 = arith.constant 0 : index
    %37 = vector.load %arg19[%c0_15, %c0_16] : memref<24x32xbf16, #tpu.memory_space<vmem>>, vector<24x32xbf16>
    %38 = vector.extract_strided_slice %35 {offsets = [0, 0], sizes = [8, 8], strides = [1, 1]} : vector<8x32xbf16> to vector<8x8xbf16>
    %39 = vector.extract_strided_slice %36 {offsets = [0, 0], sizes = [24, 8], strides = [1, 1]} : vector<24x32xbf16> to vector<24x8xbf16>
    %40 = vector.extract_strided_slice %37 {offsets = [0, 0], sizes = [24, 8], strides = [1, 1]} : vector<24x32xbf16> to vector<24x8xbf16>
    "tpu.trace_start"() <{level = 10 : i32, message = "nd,ld->nl"}> : () -> ()
    %cst_17 = arith.constant dense<0.000000e+00> : vector<8x24xf32>
    %41 = tpu.matmul %38, %39, %cst_17 {dimension_numbers = #tpu.dot_dimension_numbers<[1], [1], [0], [0], [0, 0, 1, 0], [], []>} : vector<8x8xbf16>, vector<24x8xbf16>, vector<8x24xf32> -> vector<8x24xf32>
    "tpu.trace_stop"() : () -> ()
    %cst_18 = arith.constant dense<0xFF800000> : vector<8xf32>
    %42 = vector.multi_reduction <maximumf>, %41, %cst_18 [1] : vector<8x24xf32> to vector<8xf32>
    %43 = vector.shape_cast %42 : vector<8xf32> to vector<8x1xf32>
    %44 = vector.broadcast %43 : vector<8x1xf32> to vector<8x24xf32>
    %45 = arith.subf %41, %44 : vector<8x24xf32>
    %46 = math.exp %45 : vector<8x24xf32>
    %cst_19 = arith.constant dense<0.000000e+00> : vector<8xf32>
    %47 = vector.multi_reduction <add>, %46, %cst_19 [1] : vector<8x24xf32> to vector<8xf32>
    %48 = vector.shape_cast %47 : vector<8xf32> to vector<8x1xf32>
    %49 = tpu.reciprocal %48 {approx = true} : vector<8x1xf32> -> vector<8x1xf32>
    %50 = arith.truncf %46 : vector<8x24xf32> to vector<8x24xbf16>
    "tpu.trace_start"() <{level = 10 : i32, message = "nl,ld->nd"}> : () -> ()
    %cst_20 = arith.constant dense<0.000000e+00> : vector<8x8xf32>
    %51 = tpu.matmul %50, %40, %cst_20 {dimension_numbers = #tpu.dot_dimension_numbers<[1], [0], [0], [1], [0, 0, 1, 1], [], []>} : vector<8x24xbf16>, vector<24x8xbf16>, vector<8x8xf32> -> vector<8x8xf32>
    "tpu.trace_stop"() : () -> ()
    %52 = vector.broadcast %49 : vector<8x1xf32> to vector<8x8xf32>
    %53 = arith.mulf %51, %52 : vector<8x8xf32>
    %54 = arith.truncf %53 : vector<8x8xf32> to vector<8x8xbf16>
    %c0_21 = arith.constant 0 : index
    %c0_22 = arith.constant 0 : index
    %55 = vector.load %arg20[%c0_21, %c0_22] : memref<8x32xbf16, #tpu.memory_space<vmem>>, vector<8x8xbf16>
    tpu.vector_store %arg20[%c0_21, %c0_22], %54 {strides = array<i32>} : memref<8x32xbf16, #tpu.memory_space<vmem>>, vector<8x8xbf16>,
    %56 = vector.extract_strided_slice %35 {offsets = [0, 8], sizes = [8, 8], strides = [1, 1]} : vector<8x32xbf16> to vector<8x8xbf16>
    %57 = vector.extract_strided_slice %36 {offsets = [0, 8], sizes = [24, 8], strides = [1, 1]} : vector<24x32xbf16> to vector<24x8xbf16>
    %58 = vector.extract_strided_slice %37 {offsets = [0, 8], sizes = [24, 8], strides = [1, 1]} : vector<24x32xbf16> to vector<24x8xbf16>
    "tpu.trace_start"() <{level = 10 : i32, message = "nd,ld->nl"}> : () -> ()
    %cst_23 = arith.constant dense<0.000000e+00> : vector<8x24xf32>
    %59 = tpu.matmul %56, %57, %cst_23 {dimension_numbers = #tpu.dot_dimension_numbers<[1], [1], [0], [0], [0, 0, 1, 0], [], []>} : vector<8x8xbf16>, vector<24x8xbf16>, vector<8x24xf32> -> vector<8x24xf32>
    "tpu.trace_stop"() : () -> ()
    %cst_24 = arith.constant dense<0xFF800000> : vector<8xf32>
    %60 = vector.multi_reduction <maximumf>, %59, %cst_24 [1] : vector<8x24xf32> to vector<8xf32>
    %61 = vector.shape_cast %60 : vector<8xf32> to vector<8x1xf32>
    %62 = vector.broadcast %61 : vector<8x1xf32> to vector<8x24xf32>
    %63 = arith.subf %59, %62 : vector<8x24xf32>
    %64 = math.exp %63 : vector<8x24xf32>
    %cst_25 = arith.constant dense<0.000000e+00> : vector<8xf32>
    %65 = vector.multi_reduction <add>, %64, %cst_25 [1] : vector<8x24xf32> to vector<8xf32>
    %66 = vector.shape_cast %65 : vector<8xf32> to vector<8x1xf32>
    %67 = tpu.reciprocal %66 {approx = true} : vector<8x1xf32> -> vector<8x1xf32>
    %68 = arith.truncf %64 : vector<8x24xf32> to vector<8x24xbf16>
    "tpu.trace_start"() <{level = 10 : i32, message = "nl,ld->nd"}> : () -> ()
    %cst_26 = arith.constant dense<0.000000e+00> : vector<8x8xf32>
    %69 = tpu.matmul %68, %58, %cst_26 {dimension_numbers = #tpu.dot_dimension_numbers<[1], [0], [0], [1], [0, 0, 1, 1], [], []>} : vector<8x24xbf16>, vector<24x8xbf16>, vector<8x8xf32> -> vector<8x8xf32>
    "tpu.trace_stop"() : () -> ()
    %70 = vector.broadcast %67 : vector<8x1xf32> to vector<8x8xf32>
    %71 = arith.mulf %69, %70 : vector<8x8xf32>
    %72 = arith.truncf %71 : vector<8x8xf32> to vector<8x8xbf16>
    %c0_27 = arith.constant 0 : index
    %c8 = arith.constant 8 : index
    %73 = vector.load %arg20[%c0_27, %c8] : memref<8x32xbf16, #tpu.memory_space<vmem>>, vector<8x8xbf16>
    tpu.vector_store %arg20[%c0_27, %c8], %72 {strides = array<i32>} : memref<8x32xbf16, #tpu.memory_space<vmem>>, vector<8x8xbf16>,
    %74 = vector.extract_strided_slice %35 {offsets = [0, 16], sizes = [8, 8], strides = [1, 1]} : vector<8x32xbf16> to vector<8x8xbf16>
    %75 = vector.extract_strided_slice %36 {offsets = [0, 16], sizes = [24, 8], strides = [1, 1]} : vector<24x32xbf16> to vector<24x8xbf16>
    %76 = vector.extract_strided_slice %37 {offsets = [0, 16], sizes = [24, 8], strides = [1, 1]} : vector<24x32xbf16> to vector<24x8xbf16>
    "tpu.trace_start"() <{level = 10 : i32, message = "nd,ld->nl"}> : () -> ()
    %cst_28 = arith.constant dense<0.000000e+00> : vector<8x24xf32>
    %77 = tpu.matmul %74, %75, %cst_28 {dimension_numbers = #tpu.dot_dimension_numbers<[1], [1], [0], [0], [0, 0, 1, 0], [], []>} : vector<8x8xbf16>, vector<24x8xbf16>, vector<8x24xf32> -> vector<8x24xf32>
    "tpu.trace_stop"() : () -> ()
    %cst_29 = arith.constant dense<0xFF800000> : vector<8xf32>
    %78 = vector.multi_reduction <maximumf>, %77, %cst_29 [1] : vector<8x24xf32> to vector<8xf32>
    %79 = vector.shape_cast %78 : vector<8xf32> to vector<8x1xf32>
    %80 = vector.broadcast %79 : vector<8x1xf32> to vector<8x24xf32>
    %81 = arith.subf %77, %80 : vector<8x24xf32>
    %82 = math.exp %81 : vector<8x24xf32>
    %cst_30 = arith.constant dense<0.000000e+00> : vector<8xf32>
    %83 = vector.multi_reduction <add>, %82, %cst_30 [1] : vector<8x24xf32> to vector<8xf32>
    %84 = vector.shape_cast %83 : vector<8xf32> to vector<8x1xf32>
    %85 = tpu.reciprocal %84 {approx = true} : vector<8x1xf32> -> vector<8x1xf32>
    %86 = arith.truncf %82 : vector<8x24xf32> to vector<8x24xbf16>
    "tpu.trace_start"() <{level = 10 : i32, message = "nl,ld->nd"}> : () -> ()
    %cst_31 = arith.constant dense<0.000000e+00> : vector<8x8xf32>
    %87 = tpu.matmul %86, %76, %cst_31 {dimension_numbers = #tpu.dot_dimension_numbers<[1], [0], [0], [1], [0, 0, 1, 1], [], []>} : vector<8x24xbf16>, vector<24x8xbf16>, vector<8x8xf32> -> vector<8x8xf32>
    "tpu.trace_stop"() : () -> ()
    %88 = vector.broadcast %85 : vector<8x1xf32> to vector<8x8xf32>
    %89 = arith.mulf %87, %88 : vector<8x8xf32>
    %90 = arith.truncf %89 : vector<8x8xf32> to vector<8x8xbf16>
    %c0_32 = arith.constant 0 : index
    %c16 = arith.constant 16 : index
    %91 = vector.load %arg20[%c0_32, %c16] : memref<8x32xbf16, #tpu.memory_space<vmem>>, vector<8x8xbf16>
    tpu.vector_store %arg20[%c0_32, %c16], %90 {strides = array<i32>} : memref<8x32xbf16, #tpu.memory_space<vmem>>, vector<8x8xbf16>,
    %92 = vector.extract_strided_slice %35 {offsets = [0, 24], sizes = [8, 8], strides = [1, 1]} : vector<8x32xbf16> to vector<8x8xbf16>
    %93 = vector.extract_strided_slice %36 {offsets = [0, 24], sizes = [24, 8], strides = [1, 1]} : vector<24x32xbf16> to vector<24x8xbf16>
    %94 = vector.extract_strided_slice %37 {offsets = [0, 24], sizes = [24, 8], strides = [1, 1]} : vector<24x32xbf16> to vector<24x8xbf16>
    "tpu.trace_start"() <{level = 10 : i32, message = "nd,ld->nl"}> : () -> ()
    %cst_33 = arith.constant dense<0.000000e+00> : vector<8x24xf32>
    %95 = tpu.matmul %92, %93, %cst_33 {dimension_numbers = #tpu.dot_dimension_numbers<[1], [1], [0], [0], [0, 0, 1, 0], [], []>} : vector<8x8xbf16>, vector<24x8xbf16>, vector<8x24xf32> -> vector<8x24xf32>
    "tpu.trace_stop"() : () -> ()
    %cst_34 = arith.constant dense<0xFF800000> : vector<8xf32>
    %96 = vector.multi_reduction <maximumf>, %95, %cst_34 [1] : vector<8x24xf32> to vector<8xf32>
    %97 = vector.shape_cast %96 : vector<8xf32> to vector<8x1xf32>
    %98 = vector.broadcast %97 : vector<8x1xf32> to vector<8x24xf32>
    %99 = arith.subf %95, %98 : vector<8x24xf32>
    %100 = math.exp %99 : vector<8x24xf32>
    %cst_35 = arith.constant dense<0.000000e+00> : vector<8xf32>
    %101 = vector.multi_reduction <add>, %100, %cst_35 [1] : vector<8x24xf32> to vector<8xf32>
    %102 = vector.shape_cast %101 : vector<8xf32> to vector<8x1xf32>
    %103 = tpu.reciprocal %102 {approx = true} : vector<8x1xf32> -> vector<8x1xf32>
    %104 = arith.truncf %100 : vector<8x24xf32> to vector<8x24xbf16>
    "tpu.trace_start"() <{level = 10 : i32, message = "nl,ld->nd"}> : () -> ()
    %cst_36 = arith.constant dense<0.000000e+00> : vector<8x8xf32>
    %105 = tpu.matmul %104, %94, %cst_36 {dimension_numbers = #tpu.dot_dimension_numbers<[1], [0], [0], [1], [0, 0, 1, 1], [], []>} : vector<8x24xbf16>, vector<24x8xbf16>, vector<8x8xf32> -> vector<8x8xf32>
    "tpu.trace_stop"() : () -> ()
    %106 = vector.broadcast %103 : vector<8x1xf32> to vector<8x8xf32>
    %107 = arith.mulf %105, %106 : vector<8x8xf32>
    %108 = arith.truncf %107 : vector<8x8xf32> to vector<8x8xbf16>
    %c0_37 = arith.constant 0 : index
    %c24 = arith.constant 24 : index
    %109 = vector.load %arg20[%c0_37, %c24] : memref<8x32xbf16, #tpu.memory_space<vmem>>, vector<8x8xbf16>
    tpu.vector_store %arg20[%c0_37, %c24], %108 {strides = array<i32>} : memref<8x32xbf16, #tpu.memory_space<vmem>>, vector<8x8xbf16>,
    %c0_38 = arith.constant 0 : index
    %c0_39 = arith.constant 0 : index
    %110 = vector.load %arg20[%c0_38, %c0_39] : memref<8x32xbf16, #tpu.memory_space<vmem>>, vector<8x32xbf16>
    %c0_40 = arith.constant 0 : index
    %c0_41 = arith.constant 0 : index
    %111 = vector.load %arg9[%c0_40, %c0_41] : memref<32x32xbf16, #tpu.memory_space<vmem>>, vector<32x32xbf16>
    %cst_42 = arith.constant dense<0.000000e+00> : vector<8x32xf32>
    %112 = tpu.matmul %110, %111, %cst_42 {dimension_numbers = #tpu.dot_dimension_numbers<[1], [0], [0], [1], [0, 0, 1, 1], [], []>} : vector<8x32xbf16>, vector<32x32xbf16>, vector<8x32xf32> -> vector<8x32xf32>
    %c0_43 = arith.constant 0 : index
    %c0_44 = arith.constant 0 : index
    %113 = vector.load %arg10[%c0_43, %c0_44] : memref<1x32xf32, #tpu.memory_space<vmem>>, vector<1x32xf32>
    %114 = vector.broadcast %113 : vector<1x32xf32> to vector<8x32xf32>
    %115 = arith.addf %112, %114 : vector<8x32xf32>
    %116 = arith.addf %9, %115 : vector<8x32xf32>
    %c0_45 = arith.constant 0 : index
    %c0_46 = arith.constant 0 : index
    %117 = vector.load %arg11[%c0_45, %c0_46] : memref<1x32xf32, #tpu.memory_space<vmem>>, vector<1x32xf32>
    %c0_47 = arith.constant 0 : index
    %c0_48 = arith.constant 0 : index
    %118 = vector.load %arg12[%c0_47, %c0_48] : memref<1x32xf32, #tpu.memory_space<vmem>>, vector<1x32xf32>
    %cst_49 = arith.constant dense<0.000000e+00> : vector<8xf32>
    %119 = vector.multi_reduction <add>, %116, %cst_49 [1] : vector<8x32xf32> to vector<8xf32>
    %120 = vector.shape_cast %119 : vector<8xf32> to vector<8x1xf32>
    %cst_50 = arith.constant 3.200000e+01 : f32
    %121 = vector.broadcast %cst_50 : f32 to vector<8x1xf32>
    %122 = arith.divf %120, %121 : vector<8x1xf32>
    %123 = vector.broadcast %122 : vector<8x1xf32> to vector<8x32xf32>
    %124 = arith.subf %116, %123 : vector<8x32xf32>
    %125 = arith.mulf %124, %124 : vector<8x32xf32>
    %cst_51 = arith.constant dense<0.000000e+00> : vector<8xf32>
    %126 = vector.multi_reduction <add>, %125, %cst_51 [1] : vector<8x32xf32> to vector<8xf32>
    %127 = vector.shape_cast %126 : vector<8xf32> to vector<8x1xf32>
    %cst_52 = arith.constant 3.200000e+01 : f32
    %128 = vector.broadcast %cst_52 : f32 to vector<8x1xf32>
    %129 = arith.divf %127, %128 : vector<8x1xf32>
    %130 = vector.broadcast %122 : vector<8x1xf32> to vector<8x32xf32>
    %131 = arith.subf %116, %130 : vector<8x32xf32>
    %cst_53 = arith.constant 9.99999974E-6 : f32
    %132 = vector.broadcast %cst_53 : f32 to vector<8x1xf32>
    %133 = arith.addf %129, %132 : vector<8x1xf32>
    %134 = math.rsqrt %133 : vector<8x1xf32>
    %135 = vector.broadcast %134 : vector<8x1xf32> to vector<8x32xf32>
    %136 = arith.mulf %131, %135 : vector<8x32xf32>
    %137 = vector.broadcast %117 : vector<1x32xf32> to vector<8x32xf32>
    %138 = arith.mulf %136, %137 : vector<8x32xf32>
    %139 = vector.broadcast %118 : vector<1x32xf32> to vector<8x32xf32>
    %140 = arith.addf %138, %139 : vector<8x32xf32>
    %141 = arith.truncf %140 : vector<8x32xf32> to vector<8x32xbf16>
    %c0_54 = arith.constant 0 : index
    %c0_55 = arith.constant 0 : index
    %142 = vector.load %arg13[%c0_54, %c0_55] : memref<32x128xbf16, #tpu.memory_space<vmem>>, vector<32x128xbf16>
    %cst_56 = arith.constant dense<0.000000e+00> : vector<8x128xf32>
    %143 = tpu.matmul %141, %142, %cst_56 {dimension_numbers = #tpu.dot_dimension_numbers<[1], [0], [0], [1], [0, 0, 1, 1], [], []>} : vector<8x32xbf16>, vector<32x128xbf16>, vector<8x128xf32> -> vector<8x128xf32>
    %c0_57 = arith.constant 0 : index
    %c0_58 = arith.constant 0 : index
    %144 = vector.load %arg14[%c0_57, %c0_58] : memref<1x128xf32, #tpu.memory_space<vmem>>, vector<1x128xf32>
    %145 = vector.broadcast %144 : vector<1x128xf32> to vector<8x128xf32>
    %146 = arith.addf %143, %145 : vector<8x128xf32>
    %cst_59 = arith.constant 0.000000e+00 : f32
    %147 = vector.broadcast %cst_59 : f32 to vector<8x128xf32>
    %148 = arith.maximumf %146, %147 : vector<8x128xf32>
    %149 = arith.truncf %148 : vector<8x128xf32> to vector<8x128xbf16>
    %c0_60 = arith.constant 0 : index
    %c0_61 = arith.constant 0 : index
    %150 = vector.load %arg15[%c0_60, %c0_61] : memref<128x32xbf16, #tpu.memory_space<vmem>>, vector<128x32xbf16>
    %cst_62 = arith.constant dense<0.000000e+00> : vector<8x32xf32>
    %151 = tpu.matmul %149, %150, %cst_62 {dimension_numbers = #tpu.dot_dimension_numbers<[1], [0], [0], [1], [0, 0, 1, 1], [], []>} : vector<8x128xbf16>, vector<128x32xbf16>, vector<8x32xf32> -> vector<8x32xf32>
    %c0_63 = arith.constant 0 : index
    %c0_64 = arith.constant 0 : index
    %152 = vector.load %arg16[%c0_63, %c0_64] : memref<1x32xf32, #tpu.memory_space<vmem>>, vector<1x32xf32>
    %153 = vector.broadcast %152 : vector<1x32xf32> to vector<8x32xf32>
    %154 = arith.addf %151, %153 : vector<8x32xf32>
    %155 = arith.addf %116, %154 : vector<8x32xf32>
    %c0_65 = arith.constant 0 : index
    %c0_66 = arith.constant 0 : index
    %c0_67 = arith.constant 0 : index
    %156 = vector.load %arg17[%c0_65, %c0_66, %c0_67] : memref<1x8x32xf32, #tpu.memory_space<vmem>>, vector<1x8x32xf32>
    %157 = vector.shape_cast %156 : vector<1x8x32xf32> to vector<8x32xf32>
    %158 = vector.shape_cast %155 : vector<8x32xf32> to vector<1x8x32xf32>
    tpu.vector_store %arg17[%c0_65, %c0_66, %c0_67], %158 {strides = array<i32>} : memref<1x8x32xf32, #tpu.memory_space<vmem>>, vector<1x8x32xf32>,
    return
  }
  func.func @transform_0(%arg0: i32, %arg1: i32) -> (i32, i32, i32) {
    %c0_i32 = arith.constant 0 : i32
    %c0_i32_0 = arith.constant 0 : i32
    %c0_i32_1 = arith.constant 0 : i32
    return %arg0, %c0_i32, %c0_i32_0 : i32, i32, i32
  }
  func.func @transform_1(%arg0: i32, %arg1: i32) -> (i32, i32, i32) {
    %c0_i32 = arith.constant 0 : i32
    %c0_i32_0 = arith.constant 0 : i32
    %c0_i32_1 = arith.constant 0 : i32
    return %arg0, %c0_i32, %c0_i32_0 : i32, i32, i32
  }
  func.func @transform_2(%arg0: i32, %arg1: i32) -> (i32, i32) {
    %c0_i32 = arith.constant 0 : i32
    %c0_i32_0 = arith.constant 0 : i32
    %c0_i32_1 = arith.constant 0 : i32
    return %c0_i32, %c0_i32_0 : i32, i32
  }
  func.func @transform_3(%arg0: i32, %arg1: i32) -> (i32, i32) {
    %c0_i32 = arith.constant 0 : i32
    %c0_i32_0 = arith.constant 0 : i32
    %c0_i32_1 = arith.constant 0 : i32
    return %c0_i32, %c0_i32_0 : i32, i32
  }
  func.func @transform_4(%arg0: i32, %arg1: i32) -> (i32, i32) {
    %c0_i32 = arith.constant 0 : i32
    %c0_i32_0 = arith.constant 0 : i32
    %c0_i32_1 = arith.constant 0 : i32
    return %c0_i32, %c0_i32_0 : i32, i32
  }
  func.func @transform_5(%arg0: i32, %arg1: i32) -> (i32, i32) {
    %c0_i32 = arith.constant 0 : i32
    %c0_i32_0 = arith.constant 0 : i32
    %c0_i32_1 = arith.constant 0 : i32
    return %c0_i32, %c0_i32_0 : i32, i32
  }
  func.func @transform_6(%arg0: i32, %arg1: i32) -> (i32, i32) {
    %c0_i32 = arith.constant 0 : i32
    %c0_i32_0 = arith.constant 0 : i32
    %c0_i32_1 = arith.constant 0 : i32
    return %c0_i32, %c0_i32_0 : i32, i32
  }
  func.func @transform_7(%arg0: i32, %arg1: i32) -> (i32, i32) {
    %c0_i32 = arith.constant 0 : i32
    %c0_i32_0 = arith.constant 0 : i32
    %c0_i32_1 = arith.constant 0 : i32
    return %c0_i32, %c0_i32_0 : i32, i32
  }
  func.func @transform_8(%arg0: i32, %arg1: i32) -> (i32, i32) {
    %c0_i32 = arith.constant 0 : i32
    %c0_i32_0 = arith.constant 0 : i32
    %c0_i32_1 = arith.constant 0 : i32
    return %c0_i32, %c0_i32_0 : i32, i32
  }
  func.func @transform_9(%arg0: i32, %arg1: i32) -> (i32, i32) {
    %c0_i32 = arith.constant 0 : i32
    %c0_i32_0 = arith.constant 0 : i32
    %c0_i32_1 = arith.constant 0 : i32
    return %c0_i32, %c0_i32_0 : i32, i32
  }
  func.func @transform_10(%arg0: i32, %arg1: i32) -> (i32, i32) {
    %c0_i32 = arith.constant 0 : i32
    %c0_i32_0 = arith.constant 0 : i32
    %c0_i32_1 = arith.constant 0 : i32
    return %c0_i32, %c0_i32_0 : i32, i32
  }
  func.func @transform_11(%arg0: i32, %arg1: i32) -> (i32, i32) {
    %c0_i32 = arith.constant 0 : i32
    %c0_i32_0 = arith.constant 0 : i32
    %c0_i32_1 = arith.constant 0 : i32
    return %c0_i32, %c0_i32_0 : i32, i32
  }
  func.func @transform_12(%arg0: i32, %arg1: i32) -> (i32, i32) {
    %c0_i32 = arith.constant 0 : i32
    %c0_i32_0 = arith.constant 0 : i32
    %c0_i32_1 = arith.constant 0 : i32
    return %c0_i32, %c0_i32_0 : i32, i32
  }
  func.func @transform_13(%arg0: i32, %arg1: i32) -> (i32, i32) {
    %c0_i32 = arith.constant 0 : i32
    %c0_i32_0 = arith.constant 0 : i32
    %c0_i32_1 = arith.constant 0 : i32
    return %c0_i32, %c0_i32_0 : i32, i32
  }
  func.func @transform_14(%arg0: i32, %arg1: i32) -> (i32, i32) {
    %c0_i32 = arith.constant 0 : i32
    %c0_i32_0 = arith.constant 0 : i32
    %c0_i32_1 = arith.constant 0 : i32
    return %c0_i32, %c0_i32_0 : i32, i32
  }
  func.func @transform_15(%arg0: i32, %arg1: i32) -> (i32, i32, i32) {
    %c0_i32 = arith.constant 0 : i32
    %c0_i32_0 = arith.constant 0 : i32
    return %arg0, %arg1, %c0_i32 : i32, i32, i32
  }
}

module attributes {stable_mosaic.version = 11 : i64} {
  func.func @streaming_block_kernel(%arg0: i32, %arg1: i32, %arg2: memref<1x8x32xf32, #tpu.memory_space<vmem>>, %arg3: memref<1x16x32xf32, #tpu.memory_space<vmem>>, %arg4: memref<1x32xf32, #tpu.memory_space<vmem>>, %arg5: memref<1x32xf32, #tpu.memory_space<vmem>>, %arg6: memref<32x32xbf16, #tpu.memory_space<vmem>>, %arg7: memref<32x32xbf16, #tpu.memory_space<vmem>>, %arg8: memref<32x32xbf16, #tpu.memory_space<vmem>>, %arg9: memref<32x32xbf16, #tpu.memory_space<vmem>>, %arg10: memref<1x32xf32, #tpu.memory_space<vmem>>, %arg11: memref<1x32xf32, #tpu.memory_space<vmem>>, %arg12: memref<1x32xf32, #tpu.memory_space<vmem>>, %arg13: memref<32x128xbf16, #tpu.memory_space<vmem>>, %arg14: memref<1x128xf32, #tpu.memory_space<vmem>>, %arg15: memref<128x32xbf16, #tpu.memory_space<vmem>>, %arg16: memref<1x32xf32, #tpu.memory_space<vmem>>, %arg17: memref<1x8x32xf32, #tpu.memory_space<vmem>>, %arg18: memref<24x32xbf16, #tpu.memory_space<vmem>>, %arg19: memref<24x32xbf16, #tpu.memory_space<vmem>>, %arg20: memref<8x32xbf16, #tpu.memory_space<vmem>>) attributes {dimension_semantics = [#tpu.dimension_semantics<parallel>, #tpu.dimension_semantics<arbitrary>], iteration_bounds = array<i64: 2, 1>, scalar_prefetch = 0 : i64, scratch_operands = 3 : i64, tpu.core_type = #tpu.core_type<tc>, window_params = [{transform_indices = @transform_0, window_bounds = array<i64: 1, 8, 32>}, {transform_indices = @transform_1, window_bounds = array<i64: 1, 16, 32>}, {pipeline_mode = #tpu.pipeline_mode<synchronous>, transform_indices = @transform_2, window_bounds = array<i64: 1, 32>}, {pipeline_mode = #tpu.pipeline_mode<synchronous>, transform_indices = @transform_3, window_bounds = array<i64: 1, 32>}, {pipeline_mode = #tpu.pipeline_mode<synchronous>, transform_indices = @transform_4, window_bounds = array<i64: 32, 32>}, {pipeline_mode = #tpu.pipeline_mode<synchronous>, transform_indices = @transform_5, window_bounds = array<i64: 32, 32>}, {pipeline_mode = #tpu.pipeline_mode<synchronous>, transform_indices = @transform_6, window_bounds = array<i64: 32, 32>}, {pipeline_mode = #tpu.pipeline_mode<synchronous>, transform_indices = @transform_7, window_bounds = array<i64: 32, 32>}, {pipeline_mode = #tpu.pipeline_mode<synchronous>, transform_indices = @transform_8, window_bounds = array<i64: 1, 32>}, {pipeline_mode = #tpu.pipeline_mode<synchronous>, transform_indices = @transform_9, window_bounds = array<i64: 1, 32>}, {pipeline_mode = #tpu.pipeline_mode<synchronous>, transform_indices = @transform_10, window_bounds = array<i64: 1, 32>}, {pipeline_mode = #tpu.pipeline_mode<synchronous>, transform_indices = @transform_11, window_bounds = array<i64: 32, 128>}, {pipeline_mode = #tpu.pipeline_mode<synchronous>, transform_indices = @transform_12, window_bounds = array<i64: 1, 128>}, {pipeline_mode = #tpu.pipeline_mode<synchronous>, transform_indices = @transform_13, window_bounds = array<i64: 128, 32>}, {pipeline_mode = #tpu.pipeline_mode<synchronous>, transform_indices = @transform_14, window_bounds = array<i64: 1, 32>}, {transform_indices = @transform_15, window_bounds = array<i64: 1, 8, 32>}]} {
    %c0 = arith.constant 0 : index
    %c0_0 = arith.constant 0 : index
    %0 = vector.load %arg4[%c0, %c0_0] : memref<1x32xf32, #tpu.memory_space<vmem>>, vector<1x32xf32>
    %c0_1 = arith.constant 0 : index
    %c0_2 = arith.constant 0 : index
    %1 = vector.load %arg5[%c0_1, %c0_2] : memref<1x32xf32, #tpu.memory_space<vmem>>, vector<1x32xf32>
    %c0_i32 = arith.constant 0 : i32
    %2 = arith.cmpi eq, %arg1, %c0_i32 : i32
    %3 = arith.extui %2 : i1 to i32
    %c0_i32_3 = arith.constant 0 : i32
    %4 = arith.cmpi ne, %3, %c0_i32_3 : i32
    scf.if %4 {
      %c0_68 = arith.constant 0 : index
      %c0_69 = arith.constant 0 : index
      %c0_70 = arith.constant 0 : index
      %159 = vector.load %arg3[%c0_68, %c0_69, %c0_70] : memref<1x16x32xf32, #tpu.memory_space<vmem>>, vector<1x16x32xf32>
      %160 = vector.shape_cast %159 : vector<1x16x32xf32> to vector<16x32xf32>
      %cst_71 = arith.constant dense<0.000000e+00> : vector<16xf32>
      %161 = vector.multi_reduction <add>, %160, %cst_71 [1] : vector<16x32xf32> to vector<16xf32>
      %162 = vector.shape_cast %161 : vector<16xf32> to vector<16x1xf32>
      %cst_72 = arith.constant 3.200000e+01 : f32
      %163 = vector.broadcast %cst_72 : f32 to vector<16x1xf32>
      %164 = arith.divf %162, %163 : vector<16x1xf32>
      %165 = vector.broadcast %164 : vector<16x1xf32> to vector<16x32xf32>
      %166 = arith.subf %160, %165 : vector<16x32xf32>
      %167 = arith.mulf %166, %166 : vector<16x32xf32>
      %cst_73 = arith.constant dense<0.000000e+00> : vector<16xf32>
      %168 = vector.multi_reduction <add>, %167, %cst_73 [1] : vector<16x32xf32> to vector<16xf32>
      %169 = vector.shape_cast %168 : vector<16xf32> to vector<16x1xf32>
      %cst_74 = arith.constant 3.200000e+01 : f32
      %170 = vector.broadcast %cst_74 : f32 to vector<16x1xf32>
      %171 = arith.divf %169, %170 : vector<16x1xf32>
      %172 = vector.broadcast %164 : vector<16x1xf32> to vector<16x32xf32>
      %173 = arith.subf %160, %172 : vector<16x32xf32>
      %cst_75 = arith.constant 9.99999974E-6 : f32
      %174 = vector.broadcast %cst_75 : f32 to vector<16x1xf32>
      %175 = arith.addf %171, %174 : vector<16x1xf32>
      %176 = math.rsqrt %175 : vector<16x1xf32>
      %177 = vector.broadcast %176 : vector<16x1xf32> to vector<16x32xf32>
      %178 = arith.mulf %173, %177 : vector<16x32xf32>
      %179 = vector.broadcast %0 : vector<1x32xf32> to vector<16x32xf32>
      %180 = arith.mulf %178, %179 : vector<16x32xf32>
      %181 = vector.broadcast %1 : vector<1x32xf32> to vector<16x32xf32>
      %182 = arith.addf %180, %181 : vector<16x32xf32>
      %183 = arith.truncf %182 : vector<16x32xf32> to vector<16x32xbf16>
      %c0_76 = arith.constant 0 : index
      %c0_77 = arith.constant 0 : index
      %c0_78 = arith.constant 0 : index
      %184 = vector.load %arg2[%c0_76, %c0_77, %c0_78] : memref<1x8x32xf32, #tpu.memory_space<vmem>>, vector<1x8x32xf32>
      %185 = vector.shape_cast %184 : vector<1x8x32xf32> to vector<8x32xf32>
      %cst_79 = arith.constant dense<0.000000e+00> : vector<8xf32>
      %186 = vector.multi_reduction <add>, %185, %cst_79 [1] : vector<8x32xf32> to vector<8xf32>
      %187 = vector.shape_cast %186 : vector<8xf32> to vector<8x1xf32>
      %cst_80 = arith.constant 3.200000e+01 : f32
      %188 = vector.broadcast %cst_80 : f32 to vector<8x1xf32>
      %189 = arith.divf %187, %188 : vector<8x1xf32>
      %190 = vector.broadcast %189 : vector<8x1xf32> to vector<8x32xf32>
      %191 = arith.subf %185, %190 : vector<8x32xf32>
      %192 = arith.mulf %191, %191 : vector<8x32xf32>
      %cst_81 = arith.constant dense<0.000000e+00> : vector<8xf32>
      %193 = vector.multi_reduction <add>, %192, %cst_81 [1] : vector<8x32xf32> to vector<8xf32>
      %194 = vector.shape_cast %193 : vector<8xf32> to vector<8x1xf32>
      %cst_82 = arith.constant 3.200000e+01 : f32
      %195 = vector.broadcast %cst_82 : f32 to vector<8x1xf32>
      %196 = arith.divf %194, %195 : vector<8x1xf32>
      %197 = vector.broadcast %189 : vector<8x1xf32> to vector<8x32xf32>
      %198 = arith.subf %185, %197 : vector<8x32xf32>
      %cst_83 = arith.constant 9.99999974E-6 : f32
      %199 = vector.broadcast %cst_83 : f32 to vector<8x1xf32>
      %200 = arith.addf %196, %199 : vector<8x1xf32>
      %201 = math.rsqrt %200 : vector<8x1xf32>
      %202 = vector.broadcast %201 : vector<8x1xf32> to vector<8x32xf32>
      %203 = arith.mulf %198, %202 : vector<8x32xf32>
      %204 = vector.broadcast %0 : vector<1x32xf32> to vector<8x32xf32>
      %205 = arith.mulf %203, %204 : vector<8x32xf32>
      %206 = vector.broadcast %1 : vector<1x32xf32> to vector<8x32xf32>
      %207 = arith.addf %205, %206 : vector<8x32xf32>
      %208 = arith.truncf %207 : vector<8x32xf32> to vector<8x32xbf16>
      %209 = tpu.concatenate %183, %208 in 0 : vector<16x32xbf16>, vector<8x32xbf16> -> vector<24x32xbf16>
      %c0_84 = arith.constant 0 : index
      %c0_85 = arith.constant 0 : index
      %210 = vector.load %arg7[%c0_84, %c0_85] : memref<32x32xbf16, #tpu.memory_space<vmem>>, vector<32x32xbf16>
      %cst_86 = arith.constant dense<0.000000e+00> : vector<24x32xf32>
      %211 = tpu.matmul %209, %210, %cst_86 {dimension_numbers = #tpu.dot_dimension_numbers<[1], [0], [0], [1], [0, 0, 1, 1], [], []>} : vector<24x32xbf16>, vector<32x32xbf16>, vector<24x32xf32> -> vector<24x32xf32>
      %212 = arith.truncf %211 : vector<24x32xf32> to vector<24x32xbf16>
      %c0_87 = arith.constant 0 : index
      %c0_88 = arith.constant 0 : index
      %213 = vector.load %arg18[%c0_87, %c0_88] : memref<24x32xbf16, #tpu.memory_space<vmem>>, vector<24x32xbf16>
      tpu.vector_store %arg18[%c0_87, %c0_88], %212 {strides = array<i32>} : memref<24x32xbf16, #tpu.memory_space<vmem>>, vector<24x32xbf16>,
      %c0_89 = arith.constant 0 : index
      %c0_90 = arith.constant 0 : index
      %214 = vector.load %arg8[%c0_89, %c0_90] : memref<32x32xbf16, #tpu.memory_space<vmem>>, vector<32x32xbf16>
      %cst_91 = arith.constant dense<0.000000e+00> : vector<24x32xf32>
      %215 = tpu.matmul %209, %214, %cst_91 {dimension_numbers = #tpu.dot_dimension_numbers<[1], [0], [0], [1], [0, 0, 1, 1], [], []>} : vector<24x32xbf16>, vector<32x32xbf16>, vector<24x32xf32> -> vector<24x32xf32>
      %216 = arith.truncf %215 : vector<24x32xf32> to vector<24x32xbf16>
      %c0_92 = arith.constant 0 : index
      %c0_93 = arith.constant 0 : index
      %217 = vector.load %arg19[%c0_92, %c0_93] : memref<24x32xbf16, #tpu.memory_space<vmem>>, vector<24x32xbf16>
      tpu.vector_store %arg19[%c0_92, %c0_93], %216 {strides = array<i32>} : memref<24x32xbf16, #tpu.memory_space<vmem>>, vector<24x32xbf16>,
    } else {
    }
    %c8_i32 = arith.constant 8 : i32
    %5 = arith.muli %arg1, %c8_i32 : i32
    %6 = tpu.assume_multiple %5, 8 : i32
    %c0_4 = arith.constant 0 : index
    %7 = arith.index_cast %6 : i32 to index
    %c0_5 = arith.constant 0 : index
    %8 = vector.load %arg2[%c0_4, %7, %c0_5] : memref<1x8x32xf32, #tpu.memory_space<vmem>>, vector<1x8x32xf32>
    %9 = vector.shape_cast %8 : vector<1x8x32xf32> to vector<8x32xf32>
    %cst = arith.constant dense<0.000000e+00> : vector<8xf32>
    %10 = vector.multi_reduction <add>, %9, %cst [1] : vector<8x32xf32> to vector<8xf32>
    %11 = vector.shape_cast %10 : vector<8xf32> to vector<8x1xf32>
    %cst_6 = arith.constant 3.200000e+01 : f32
    %12 = vector.broadcast %cst_6 : f32 to vector<8x1xf32>
    %13 = arith.divf %11, %12 : vector<8x1xf32>
    %14 = vector.broadcast %13 : vector<8x1xf32> to vector<8x32xf32>
    %15 = arith.subf %9, %14 : vector<8x32xf32>
    %16 = arith.mulf %15, %15 : vector<8x32xf32>
    %cst_7 = arith.constant dense<0.000000e+00> : vector<8xf32>
    %17 = vector.multi_reduction <add>, %16, %cst_7 [1] : vector<8x32xf32> to vector<8xf32>
    %18 = vector.shape_cast %17 : vector<8xf32> to vector<8x1xf32>
    %cst_8 = arith.constant 3.200000e+01 : f32
    %19 = vector.broadcast %cst_8 : f32 to vector<8x1xf32>
    %20 = arith.divf %18, %19 : vector<8x1xf32>
    %21 = vector.broadcast %13 : vector<8x1xf32> to vector<8x32xf32>
    %22 = arith.subf %9, %21 : vector<8x32xf32>
    %cst_9 = arith.constant 9.99999974E-6 : f32
    %23 = vector.broadcast %cst_9 : f32 to vector<8x1xf32>
    %24 = arith.addf %20, %23 : vector<8x1xf32>
    %25 = math.rsqrt %24 : vector<8x1xf32>
    %26 = vector.broadcast %25 : vector<8x1xf32> to vector<8x32xf32>
    %27 = arith.mulf %22, %26 : vector<8x32xf32>
    %28 = vector.broadcast %0 : vector<1x32xf32> to vector<8x32xf32>
    %29 = arith.mulf %27, %28 : vector<8x32xf32>
    %30 = vector.broadcast %1 : vector<1x32xf32> to vector<8x32xf32>
    %31 = arith.addf %29, %30 : vector<8x32xf32>
    %32 = arith.truncf %31 : vector<8x32xf32> to vector<8x32xbf16>
    %c0_10 = arith.constant 0 : index
    %c0_11 = arith.constant 0 : index
    %33 = vector.load %arg6[%c0_10, %c0_11] : memref<32x32xbf16, #tpu.memory_space<vmem>>, vector<32x32xbf16>
    %cst_12 = arith.constant dense<0.000000e+00> : vector<8x32xf32>
    %34 = tpu.matmul %32, %33, %cst_12 {dimension_numbers = #tpu.dot_dimension_numbers<[1], [0], [0], [1], [0, 0, 1, 1], [], []>} : vector<8x32xbf16>, vector<32x32xbf16>, vector<8x32xf32> -> vector<8x32xf32>
    %35 = arith.truncf %34 : vector<8x32xf32> to vector<8x32xbf16>
    %c0_13 = arith.constant 0 : index
    %c0_14 = arith.constant 0 : index
    %36 = vector.load %arg18[%c0_13, %c0_14] : memref<24x32xbf16, #tpu.memory_space<vmem>>, vector<24x32xbf16>
    %c0_15 = arith.constant 0 : index
    %c0_16 = arith.constant 0 : index
    %37 = vector.load %arg19[%c0_15, %c0_16] : memref<24x32xbf16, #tpu.memory_space<vmem>>, vector<24x32xbf16>
    %38 = vector.extract_strided_slice %35 {offsets = [0, 0], sizes = [8, 8], strides = [1, 1]} : vector<8x32xbf16> to vector<8x8xbf16>
    %39 = vector.extract_strided_slice %36 {offsets = [0, 0], sizes = [24, 8], strides = [1, 1]} : vector<24x32xbf16> to vector<24x8xbf16>
    %40 = vector.extract_strided_slice %37 {offsets = [0, 0], sizes = [24, 8], strides = [1, 1]} : vector<24x32xbf16> to vector<24x8xbf16>
    "tpu.trace_start"() <{level = 10 : i32, message = "nd,ld->nl"}> : () -> ()
    %cst_17 = arith.constant dense<0.000000e+00> : vector<8x24xf32>
    %41 = tpu.matmul %38, %39, %cst_17 {dimension_numbers = #tpu.dot_dimension_numbers<[1], [1], [0], [0], [0, 0, 1, 0], [], []>} : vector<8x8xbf16>, vector<24x8xbf16>, vector<8x24xf32> -> vector<8x24xf32>
    "tpu.trace_stop"() : () -> ()
    %cst_18 = arith.constant dense<0xFF800000> : vector<8xf32>
    %42 = vector.multi_reduction <maximumf>, %41, %cst_18 [1] : vector<8x24xf32> to vector<8xf32>
    %43 = vector.shape_cast %42 : vector<8xf32> to vector<8x1xf32>
    %44 = vector.broadcast %43 : vector<8x1xf32> to vector<8x24xf32>
    %45 = arith.subf %41, %44 : vector<8x24xf32>
    %46 = math.exp %45 : vector<8x24xf32>
    %cst_19 = arith.constant dense<0.000000e+00> : vector<8xf32>
    %47 = vector.multi_reduction <add>, %46, %cst_19 [1] : vector<8x24xf32> to vector<8xf32>
    %48 = vector.shape_cast %47 : vector<8xf32> to vector<8x1xf32>
    %49 = tpu.reciprocal %48 {approx = true} : vector<8x1xf32> -> vector<8x1xf32>
    %50 = arith.truncf %46 : vector<8x24xf32> to vector<8x24xbf16>
    "tpu.trace_start"() <{level = 10 : i32, message = "nl,ld->nd"}> : () -> ()
    %cst_20 = arith.constant dense<0.000000e+00> : vector<8x8xf32>
    %51 = tpu.matmul %50, %40, %cst_20 {dimension_numbers = #tpu.dot_dimension_numbers<[1], [0], [0], [1], [0, 0, 1, 1], [], []>} : vector<8x24xbf16>, vector<24x8xbf16>, vector<8x8xf32> -> vector<8x8xf32>
    "tpu.trace_stop"() : () -> ()
    %52 = vector.broadcast %49 : vector<8x1xf32> to vector<8x8xf32>
    %53 = arith.mulf %51, %52 : vector<8x8xf32>
    %54 = arith.truncf %53 : vector<8x8xf32> to vector<8x8xbf16>
    %c0_21 = arith.constant 0 : index
    %c0_22 = arith.constant 0 : index
    %55 = vector.load %arg20[%c0_21, %c0_22] : memref<8x32xbf16, #tpu.memory_space<vmem>>, vector<8x8xbf16>
    tpu.vector_store %arg20[%c0_21, %c0_22], %54 {strides = array<i32>} : memref<8x32xbf16, #tpu.memory_space<vmem>>, vector<8x8xbf16>,
    %56 = vector.extract_strided_slice %35 {offsets = [0, 8], sizes = [8, 8], strides = [1, 1]} : vector<8x32xbf16> to vector<8x8xbf16>
    %57 = vector.extract_strided_slice %36 {offsets = [0, 8], sizes = [24, 8], strides = [1, 1]} : vector<24x32xbf16> to vector<24x8xbf16>
    %58 = vector.extract_strided_slice %37 {offsets = [0, 8], sizes = [24, 8], strides = [1, 1]} : vector<24x32xbf16> to vector<24x8xbf16>
    "tpu.trace_start"() <{level = 10 : i32, message = "nd,ld->nl"}> : () -> ()
    %cst_23 = arith.constant dense<0.000000e+00> : vector<8x24xf32>
    %59 = tpu.matmul %56, %57, %cst_23 {dimension_numbers = #tpu.dot_dimension_numbers<[1], [1], [0], [0], [0, 0, 1, 0], [], []>} : vector<8x8xbf16>, vector<24x8xbf16>, vector<8x24xf32> -> vector<8x24xf32>
    "tpu.trace_stop"() : () -> ()
    %cst_24 = arith.constant dense<0xFF800000> : vector<8xf32>
    %60 = vector.multi_reduction <maximumf>, %59, %cst_24 [1] : vector<8x24xf32> to vector<8xf32>
    %61 = vector.shape_cast %60 : vector<8xf32> to vector<8x1xf32>
    %62 = vector.broadcast %61 : vector<8x1xf32> to vector<8x24xf32>
    %63 = arith.subf %59, %62 : vector<8x24xf32>
    %64 = math.exp %63 : vector<8x24xf32>
    %cst_25 = arith.constant dense<0.000000e+00> : vector<8xf32>
    %65 = vector.multi_reduction <add>, %64, %cst_25 [1] : vector<8x24xf32> to vector<8xf32>
    %66 = vector.shape_cast %65 : vector<8xf32> to vector<8x1xf32>
    %67 = tpu.reciprocal %66 {approx = true} : vector<8x1xf32> -> vector<8x1xf32>
    %68 = arith.truncf %64 : vector<8x24xf32> to vector<8x24xbf16>
    "tpu.trace_start"() <{level = 10 : i32, message = "nl,ld->nd"}> : () -> ()
    %cst_26 = arith.constant dense<0.000000e+00> : vector<8x8xf32>
    %69 = tpu.matmul %68, %58, %cst_26 {dimension_numbers = #tpu.dot_dimension_numbers<[1], [0], [0], [1], [0, 0, 1, 1], [], []>} : vector<8x24xbf16>, vector<24x8xbf16>, vector<8x8xf32> -> vector<8x8xf32>
    "tpu.trace_stop"() : () -> ()
    %70 = vector.broadcast %67 : vector<8x1xf32> to vector<8x8xf32>
    %71 = arith.mulf %69, %70 : vector<8x8xf32>
    %72 = arith.truncf %71 : vector<8x8xf32> to vector<8x8xbf16>
    %c0_27 = arith.constant 0 : index
    %c8 = arith.constant 8 : index
    %73 = vector.load %arg20[%c0_27, %c8] : memref<8x32xbf16, #tpu.memory_space<vmem>>, vector<8x8xbf16>
    tpu.vector_store %arg20[%c0_27, %c8], %72 {strides = array<i32>} : memref<8x32xbf16, #tpu.memory_space<vmem>>, vector<8x8xbf16>,
    %74 = vector.extract_strided_slice %35 {offsets = [0, 16], sizes = [8, 8], strides = [1, 1]} : vector<8x32xbf16> to vector<8x8xbf16>
    %75 = vector.extract_strided_slice %36 {offsets = [0, 16], sizes = [24, 8], strides = [1, 1]} : vector<24x32xbf16> to vector<24x8xbf16>
    %76 = vector.extract_strided_slice %37 {offsets = [0, 16], sizes = [24, 8], strides = [1, 1]} : vector<24x32xbf16> to vector<24x8xbf16>
    "tpu.trace_start"() <{level = 10 : i32, message = "nd,ld->nl"}> : () -> ()
    %cst_28 = arith.constant dense<0.000000e+00> : vector<8x24xf32>
    %77 = tpu.matmul %74, %75, %cst_28 {dimension_numbers = #tpu.dot_dimension_numbers<[1], [1], [0], [0], [0, 0, 1, 0], [], []>} : vector<8x8xbf16>, vector<24x8xbf16>, vector<8x24xf32> -> vector<8x24xf32>
    "tpu.trace_stop"() : () -> ()
    %cst_29 = arith.constant dense<0xFF800000> : vector<8xf32>
    %78 = vector.multi_reduction <maximumf>, %77, %cst_29 [1] : vector<8x24xf32> to vector<8xf32>
    %79 = vector.shape_cast %78 : vector<8xf32> to vector<8x1xf32>
    %80 = vector.broadcast %79 : vector<8x1xf32> to vector<8x24xf32>
    %81 = arith.subf %77, %80 : vector<8x24xf32>
    %82 = math.exp %81 : vector<8x24xf32>
    %cst_30 = arith.constant dense<0.000000e+00> : vector<8xf32>
    %83 = vector.multi_reduction <add>, %82, %cst_30 [1] : vector<8x24xf32> to vector<8xf32>
    %84 = vector.shape_cast %83 : vector<8xf32> to vector<8x1xf32>
    %85 = tpu.reciprocal %84 {approx = true} : vector<8x1xf32> -> vector<8x1xf32>
    %86 = arith.truncf %82 : vector<8x24xf32> to vector<8x24xbf16>
    "tpu.trace_start"() <{level = 10 : i32, message = "nl,ld->nd"}> : () -> ()
    %cst_31 = arith.constant dense<0.000000e+00> : vector<8x8xf32>
    %87 = tpu.matmul %86, %76, %cst_31 {dimension_numbers = #tpu.dot_dimension_numbers<[1], [0], [0], [1], [0, 0, 1, 1], [], []>} : vector<8x24xbf16>, vector<24x8xbf16>, vector<8x8xf32> -> vector<8x8xf32>
    "tpu.trace_stop"() : () -> ()
    %88 = vector.broadcast %85 : vector<8x1xf32> to vector<8x8xf32>
    %89 = arith.mulf %87, %88 : vector<8x8xf32>
    %90 = arith.truncf %89 : vector<8x8xf32> to vector<8x8xbf16>
    %c0_32 = arith.constant 0 : index
    %c16 = arith.constant 16 : index
    %91 = vector.load %arg20[%c0_32, %c16] : memref<8x32xbf16, #tpu.memory_space<vmem>>, vector<8x8xbf16>
    tpu.vector_store %arg20[%c0_32, %c16], %90 {strides = array<i32>} : memref<8x32xbf16, #tpu.memory_space<vmem>>, vector<8x8xbf16>,
    %92 = vector.extract_strided_slice %35 {offsets = [0, 24], sizes = [8, 8], strides = [1, 1]} : vector<8x32xbf16> to vector<8x8xbf16>
    %93 = vector.extract_strided_slice %36 {offsets = [0, 24], sizes = [24, 8], strides = [1, 1]} : vector<24x32xbf16> to vector<24x8xbf16>
    %94 = vector.extract_strided_slice %37 {offsets = [0, 24], sizes = [24, 8], strides = [1, 1]} : vector<24x32xbf16> to vector<24x8xbf16>
    "tpu.trace_start"() <{level = 10 : i32, message = "nd,ld->nl"}> : () -> ()
    %cst_33 = arith.constant dense<0.000000e+00> : vector<8x24xf32>
    %95 = tpu.matmul %92, %93, %cst_33 {dimension_numbers = #tpu.dot_dimension_numbers<[1], [1], [0], [0], [0, 0, 1, 0], [], []>} : vector<8x8xbf16>, vector<24x8xbf16>, vector<8x24xf32> -> vector<8x24xf32>
    "tpu.trace_stop"() : () -> ()
    %cst_34 = arith.constant dense<0xFF800000> : vector<8xf32>
    %96 = vector.multi_reduction <maximumf>, %95, %cst_34 [1] : vector<8x24xf32> to vector<8xf32>
    %97 = vector.shape_cast %96 : vector<8xf32> to vector<8x1xf32>
    %98 = vector.broadcast %97 : vector<8x1xf32> to vector<8x24xf32>
    %99 = arith.subf %95, %98 : vector<8x24xf32>
    %100 = math.exp %99 : vector<8x24xf32>
    %cst_35 = arith.constant dense<0.000000e+00> : vector<8xf32>
    %101 = vector.multi_reduction <add>, %100, %cst_35 [1] : vector<8x24xf32> to vector<8xf32>
    %102 = vector.shape_cast %101 : vector<8xf32> to vector<8x1xf32>
    %103 = tpu.reciprocal %102 {approx = true} : vector<8x1xf32> -> vector<8x1xf32>
    %104 = arith.truncf %100 : vector<8x24xf32> to vector<8x24xbf16>
    "tpu.trace_start"() <{level = 10 : i32, message = "nl,ld->nd"}> : () -> ()
    %cst_36 = arith.constant dense<0.000000e+00> : vector<8x8xf32>
    %105 = tpu.matmul %104, %94, %cst_36 {dimension_numbers = #tpu.dot_dimension_numbers<[1], [0], [0], [1], [0, 0, 1, 1], [], []>} : vector<8x24xbf16>, vector<24x8xbf16>, vector<8x8xf32> -> vector<8x8xf32>
    "tpu.trace_stop"() : () -> ()
    %106 = vector.broadcast %103 : vector<8x1xf32> to vector<8x8xf32>
    %107 = arith.mulf %105, %106 : vector<8x8xf32>
    %108 = arith.truncf %107 : vector<8x8xf32> to vector<8x8xbf16>
    %c0_37 = arith.constant 0 : index
    %c24 = arith.constant 24 : index
    %109 = vector.load %arg20[%c0_37, %c24] : memref<8x32xbf16, #tpu.memory_space<vmem>>, vector<8x8xbf16>
    tpu.vector_store %arg20[%c0_37, %c24], %108 {strides = array<i32>} : memref<8x32xbf16, #tpu.memory_space<vmem>>, vector<8x8xbf16>,
    %c0_38 = arith.constant 0 : index
    %c0_39 = arith.constant 0 : index
    %110 = vector.load %arg20[%c0_38, %c0_39] : memref<8x32xbf16, #tpu.memory_space<vmem>>, vector<8x32xbf16>
    %c0_40 = arith.constant 0 : index
    %c0_41 = arith.constant 0 : index
    %111 = vector.load %arg9[%c0_40, %c0_41] : memref<32x32xbf16, #tpu.memory_space<vmem>>, vector<32x32xbf16>
    %cst_42 = arith.constant dense<0.000000e+00> : vector<8x32xf32>
    %112 = tpu.matmul %110, %111, %cst_42 {dimension_numbers = #tpu.dot_dimension_numbers<[1], [0], [0], [1], [0, 0, 1, 1], [], []>} : vector<8x32xbf16>, vector<32x32xbf16>, vector<8x32xf32> -> vector<8x32xf32>
    %c0_43 = arith.constant 0 : index
    %c0_44 = arith.constant 0 : index
    %113 = vector.load %arg10[%c0_43, %c0_44] : memref<1x32xf32, #tpu.memory_space<vmem>>, vector<1x32xf32>
    %114 = vector.broadcast %113 : vector<1x32xf32> to vector<8x32xf32>
    %115 = arith.addf %112, %114 : vector<8x32xf32>
    %116 = arith.addf %9, %115 : vector<8x32xf32>
    %c0_45 = arith.constant 0 : index
    %c0_46 = arith.constant 0 : index
    %117 = vector.load %arg11[%c0_45, %c0_46] : memref<1x32xf32, #tpu.memory_space<vmem>>, vector<1x32xf32>
    %c0_47 = arith.constant 0 : index
    %c0_48 = arith.constant 0 : index
    %118 = vector.load %arg12[%c0_47, %c0_48] : memref<1x32xf32, #tpu.memory_space<vmem>>, vector<1x32xf32>
    %cst_49 = arith.constant dense<0.000000e+00> : vector<8xf32>
    %119 = vector.multi_reduction <add>, %116, %cst_49 [1] : vector<8x32xf32> to vector<8xf32>
    %120 = vector.shape_cast %119 : vector<8xf32> to vector<8x1xf32>
    %cst_50 = arith.constant 3.200000e+01 : f32
    %121 = vector.broadcast %cst_50 : f32 to vector<8x1xf32>
    %122 = arith.divf %120, %121 : vector<8x1xf32>
    %123 = vector.broadcast %122 : vector<8x1xf32> to vector<8x32xf32>
    %124 = arith.subf %116, %123 : vector<8x32xf32>
    %125 = arith.mulf %124, %124 : vector<8x32xf32>
    %cst_51 = arith.constant dense<0.000000e+00> : vector<8xf32>
    %126 = vector.multi_reduction <add>, %125, %cst_51 [1] : vector<8x32xf32> to vector<8xf32>
    %127 = vector.shape_cast %126 : vector<8xf32> to vector<8x1xf32>
    %cst_52 = arith.constant 3.200000e+01 : f32
    %128 = vector.broadcast %cst_52 : f32 to vector<8x1xf32>
    %129 = arith.divf %127, %128 : vector<8x1xf32>
    %130 = vector.broadcast %122 : vector<8x1xf32> to vector<8x32xf32>
    %131 = arith.subf %116, %130 : vector<8x32xf32>
    %cst_53 = arith.constant 9.99999974E-6 : f32
    %132 = vector.broadcast %cst_53 : f32 to vector<8x1xf32>
    %133 = arith.addf %129, %132 : vector<8x1xf32>
    %134 = math.rsqrt %133 : vector<8x1xf32>
    %135 = vector.broadcast %134 : vector<8x1xf32> to vector<8x32xf32>
    %136 = arith.mulf %131, %135 : vector<8x32xf32>
    %137 = vector.broadcast %117 : vector<1x32xf32> to vector<8x32xf32>
    %138 = arith.mulf %136, %137 : vector<8x32xf32>
    %139 = vector.broadcast %118 : vector<1x32xf32> to vector<8x32xf32>
    %140 = arith.addf %138, %139 : vector<8x32xf32>
    %141 = arith.truncf %140 : vector<8x32xf32> to vector<8x32xbf16>
    %c0_54 = arith.constant 0 : index
    %c0_55 = arith.constant 0 : index
    %142 = vector.load %arg13[%c0_54, %c0_55] : memref<32x128xbf16, #tpu.memory_space<vmem>>, vector<32x128xbf16>
    %cst_56 = arith.constant dense<0.000000e+00> : vector<8x128xf32>
    %143 = tpu.matmul %141, %142, %cst_56 {dimension_numbers = #tpu.dot_dimension_numbers<[1], [0], [0], [1], [0, 0, 1, 1], [], []>} : vector<8x32xbf16>, vector<32x128xbf16>, vector<8x128xf32> -> vector<8x128xf32>
    %c0_57 = arith.constant 0 : index
    %c0_58 = arith.constant 0 : index
    %144 = vector.load %arg14[%c0_57, %c0_58] : memref<1x128xf32, #tpu.memory_space<vmem>>, vector<1x128xf32>
    %145 = vector.broadcast %144 : vector<1x128xf32> to vector<8x128xf32>
    %146 = arith.addf %143, %145 : vector<8x128xf32>
    %cst_59 = arith.constant 0.000000e+00 : f32
    %147 = vector.broadcast %cst_59 : f32 to vector<8x128xf32>
    %148 = arith.maximumf %146, %147 : vector<8x128xf32>
    %149 = arith.truncf %148 : vector<8x128xf32> to vector<8x128xbf16>
    %c0_60 = arith.constant 0 : index
    %c0_61 = arith.constant 0 : index
    %150 = vector.load %arg15[%c0_60, %c0_61] : memref<128x32xbf16, #tpu.memory_space<vmem>>, vector<128x32xbf16>
    %cst_62 = arith.constant dense<0.000000e+00> : vector<8x32xf32>
    %151 = tpu.matmul %149, %150, %cst_62 {dimension_numbers = #tpu.dot_dimension_numbers<[1], [0], [0], [1], [0, 0, 1, 1], [], []>} : vector<8x128xbf16>, vector<128x32xbf16>, vector<8x32xf32> -> vector<8x32xf32>
    %c0_63 = arith.constant 0 : index
    %c0_64 = arith.constant 0 : index
    %152 = vector.load %arg16[%c0_63, %c0_64] : memref<1x32xf32, #tpu.memory_space<vmem>>, vector<1x32xf32>
    %153 = vector.broadcast %152 : vector<1x32xf32> to vector<8x32xf32>
    %154 = arith.addf %151, %153 : vector<8x32xf32>
    %155 = arith.addf %116, %154 : vector<8x32xf32>
    %c0_65 = arith.constant 0 : index
    %c0_66 = arith.constant 0 : index
    %c0_67 = arith.constant 0 : index
    %156 = vector.load %arg17[%c0_65, %c0_66, %c0_67] : memref<1x8x32xf32, #tpu.memory_space<vmem>>, vector<1x8x32xf32>
    %157 = vector.shape_cast %156 : vector<1x8x32xf32> to vector<8x32xf32>
    %158 = vector.shape_cast %155 : vector<8x32xf32> to vector<1x8x32xf32>
    tpu.vector_store %arg17[%c0_65, %c0_66, %c0_67], %158 {strides = array<i32>} : memref<1x8x32xf32, #tpu.memory_space<vmem>>, vector<1x8x32xf32>,
    return
  }
  func.func @transform_0(%arg0: i32, %arg1: i32) -> (i32, i32, i32) {
    %c0_i32 = arith.constant 0 : i32
    %c0_i32_0 = arith.constant 0 : i32
    %c0_i32_1 = arith.constant 0 : i32
    return %arg0, %c0_i32, %c0_i32_0 : i32, i32, i32
  }
  func.func @transform_1(%arg0: i32, %arg1: i32) -> (i32, i32, i32) {
    %c0_i32 = arith.constant 0 : i32
    %c0_i32_0 = arith.constant 0 : i32
    %c0_i32_1 = arith.constant 0 : i32
    return %arg0, %c0_i32, %c0_i32_0 : i32, i32, i32
  }
  func.func @transform_2(%arg0: i32, %arg1: i32) -> (i32, i32) {
    %c0_i32 = arith.constant 0 : i32
    %c0_i32_0 = arith.constant 0 : i32
    %c0_i32_1 = arith.constant 0 : i32
    return %c0_i32, %c0_i32_0 : i32, i32
  }
  func.func @transform_3(%arg0: i32, %arg1: i32) -> (i32, i32) {
    %c0_i32 = arith.constant 0 : i32
    %c0_i32_0 = arith.constant 0 : i32
    %c0_i32_1 = arith.constant 0 : i32
    return %c0_i32, %c0_i32_0 : i32, i32
  }
  func.func @transform_4(%arg0: i32, %arg1: i32) -> (i32, i32) {
    %c0_i32 = arith.constant 0 : i32
    %c0_i32_0 = arith.constant 0 : i32
    %c0_i32_1 = arith.constant 0 : i32
    return %c0_i32, %c0_i32_0 : i32, i32
  }
  func.func @transform_5(%arg0: i32, %arg1: i32) -> (i32, i32) {
    %c0_i32 = arith.constant 0 : i32
    %c0_i32_0 = arith.constant 0 : i32
    %c0_i32_1 = arith.constant 0 : i32
    return %c0_i32, %c0_i32_0 : i32, i32
  }
  func.func @transform_6(%arg0: i32, %arg1: i32) -> (i32, i32) {
    %c0_i32 = arith.constant 0 : i32
    %c0_i32_0 = arith.constant 0 : i32
    %c0_i32_1 = arith.constant 0 : i32
    return %c0_i32, %c0_i32_0 : i32, i32
  }
  func.func @transform_7(%arg0: i32, %arg1: i32) -> (i32, i32) {
    %c0_i32 = arith.constant 0 : i32
    %c0_i32_0 = arith.constant 0 : i32
    %c0_i32_1 = arith.constant 0 : i32
    return %c0_i32, %c0_i32_0 : i32, i32
  }
  func.func @transform_8(%arg0: i32, %arg1: i32) -> (i32, i32) {
    %c0_i32 = arith.constant 0 : i32
    %c0_i32_0 = arith.constant 0 : i32
    %c0_i32_1 = arith.constant 0 : i32
    return %c0_i32, %c0_i32_0 : i32, i32
  }
  func.func @transform_9(%arg0: i32, %arg1: i32) -> (i32, i32) {
    %c0_i32 = arith.constant 0 : i32
    %c0_i32_0 = arith.constant 0 : i32
    %c0_i32_1 = arith.constant 0 : i32
    return %c0_i32, %c0_i32_0 : i32, i32
  }
  func.func @transform_10(%arg0: i32, %arg1: i32) -> (i32, i32) {
    %c0_i32 = arith.constant 0 : i32
    %c0_i32_0 = arith.constant 0 : i32
    %c0_i32_1 = arith.constant 0 : i32
    return %c0_i32, %c0_i32_0 : i32, i32
  }
  func.func @transform_11(%arg0: i32, %arg1: i32) -> (i32, i32) {
    %c0_i32 = arith.constant 0 : i32
    %c0_i32_0 = arith.constant 0 : i32
    %c0_i32_1 = arith.constant 0 : i32
    return %c0_i32, %c0_i32_0 : i32, i32
  }
  func.func @transform_12(%arg0: i32, %arg1: i32) -> (i32, i32) {
    %c0_i32 = arith.constant 0 : i32
    %c0_i32_0 = arith.constant 0 : i32
    %c0_i32_1 = arith.constant 0 : i32
    return %c0_i32, %c0_i32_0 : i32, i32
  }
  func.func @transform_13(%arg0: i32, %arg1: i32) -> (i32, i32) {
    %c0_i32 = arith.constant 0 : i32
    %c0_i32_0 = arith.constant 0 : i32
    %c0_i32_1 = arith.constant 0 : i32
    return %c0_i32, %c0_i32_0 : i32, i32
  }
  func.func @transform_14(%arg0: i32, %arg1: i32) -> (i32, i32) {
    %c0_i32 = arith.constant 0 : i32
    %c0_i32_0 = arith.constant 0 : i32
    %c0_i32_1 = arith.constant 0 : i32
    return %c0_i32, %c0_i32_0 : i32, i32
  }
  func.func @transform_15(%arg0: i32, %arg1: i32) -> (i32, i32, i32) {
    %c0_i32 = arith.constant 0 : i32
    %c0_i32_0 = arith.constant 0 : i32
    return %arg0, %arg1, %c0_i32 : i32, i32, i32
  }
}

</mosaic_0001>

<llo_original>
// kernel: tpu_custom_call.1
$region0: #{tpu_custom_call.1}
  #allocation0 [shape = 'u32[]', space=smem, size = 0x4, offset = 0x4, fixed_abs, tag = 'smem constant byte address 0x4 - core index']
  #allocation1 [shape = 'u32[144,128]{1,0:T(1,128)}', space=vmem, size = 0x12000, scoped, tag = 'internal scratch']
  #allocation2 [shape = 'bf16[24,32]{1,0:T(8,128)(2,1)}', space=vmem, size = 0x1800, scoped, tag = 'scratch operand']
  #allocation3 [shape = 'bf16[24,32]{1,0:T(8,128)(2,1)}', space=vmem, size = 0x1800, scoped, tag = 'scratch operand']
  #allocation4 [shape = 'bf16[8,32]{1,0:T(8,128)(2,1)}', space=vmem, size = 0x800, scoped, tag = 'scratch operand']
  %s0 = inlined_call_operand.vmem [shape: f32[2,8,32], index: 0, kind: input, shape index: {}]
  %s1 = inlined_call_operand.vmem [shape: f32[2,16,32], index: 1, kind: input, shape index: {}]
  %s2 = inlined_call_operand.vmem [shape: f32[1,32], index: 2, kind: input, shape index: {}]
  %s3 = inlined_call_operand.vmem [shape: f32[1,32], index: 3, kind: input, shape index: {}]
  %s4 = inlined_call_operand.vmem [shape: bf16[32,32], index: 4, kind: input, shape index: {}]
  %s5 = inlined_call_operand.vmem [shape: bf16[32,32], index: 5, kind: input, shape index: {}]
  %s6 = inlined_call_operand.hbm [shape: bf16[32,32], index: 6, kind: input, shape index: {}]
  %s7 = inlined_call_operand.hbm [shape: bf16[32,32], index: 7, kind: input, shape index: {}]
  %s8 = inlined_call_operand.hbm [shape: f32[1,32], index: 8, kind: input, shape index: {}]
  %s9 = inlined_call_operand.hbm [shape: f32[1,32], index: 9, kind: input, shape index: {}]
  %s10 = inlined_call_operand.vmem [shape: f32[1,32], index: 10, kind: input, shape index: {}]
  %s11 = inlined_call_operand.vmem [shape: bf16[32,128], index: 11, kind: input, shape index: {}]
  %s12 = inlined_call_operand.vmem [shape: f32[1,128], index: 12, kind: input, shape index: {}]
  %s13 = inlined_call_operand.vmem [shape: bf16[128,32], index: 13, kind: input, shape index: {}]
  %s14 = inlined_call_operand.vmem [shape: f32[1,32], index: 14, kind: input, shape index: {}]
  %s15 = inlined_call_operand.hbm [shape: f32[2,8,32], index: 15, kind: output, shape index: {}]
  %s16 = sld [smem:[#allocation0]]
  $region113: #{tpu_custom_call.1} parent=0
    _
  %s18 = ssub.s32 1, %s16
  %s19 = scalar_select 0, %s18, %s16
  $region1: #{tpu_custom_call.1} parent=0
    #allocation5 [shape = 'u8[8192]{0}', space=vmem, size = 0x2000, scoped, tag = 'input window, operand 6, single buffered']
    #allocation6 [shape = 's32[2]{0}', space=sflag, size = 0x8, scoped, tag = 'scoped memory for tpu_custom_call.1']
    #allocation7 [shape = 's32[2]{0}', space=sflag, size = 0x8, scoped, tag = 'scoped memory for tpu_custom_call.1']
    #allocation8 [shape = 'u8[8192]{0}', space=vmem, size = 0x2000, scoped, tag = 'input window, operand 7, single buffered']
    #allocation9 [shape = 's32[1]{0}', space=sflag, size = 0x4, scoped, tag = 'scoped memory for tpu_custom_call.1']
    #allocation10 [shape = 'u8[512]{0}', space=vmem, size = 0x400, scoped, tag = 'input window, operand 8, single buffered']
    #allocation11 [shape = 'u8[512]{0}', space=vmem, size = 0x400, scoped, tag = 'input window, operand 9, single buffered']
    #allocation12 [shape = 's32[1]{0}', space=sflag, size = 0x4, scoped, tag = 'scoped memory for tpu_custom_call.1']
    #allocation13 [shape = 'u8[8192]{0}', space=vmem, size = 0x2000, scoped, tag = 'output window, operand 0']
    %20 = vsyncpa [#allocation6], 0
    %21 = vsyncpa [#allocation9], 0
    %22 = vsyncpa [#allocation12], 0
    %23 = vsyncpa [#allocation7], 0
    %s24 = scalar_lea.sflag [#allocation7], 1
    %25 = vsyncpa %s24, 0
    loop: start=0, step=1, limit=4
    $region2: #{tpu_custom_call.1} parent=1 // loop_pre_header
      _
    $region3: #{tpu_custom_call.1} parent=1 // loop_header
      %s27 = sphi 0, %s31
      %p28 = scmp.ge.s32.totalorder %s27, 4
      %s34 = sphi 0, %s46
      %s35 = sphi 0, %s42
      %s36 = sphi 0, %s34
      %s37 = sphi 0, %s35
      %s38 = sphi 0, %s36
      %s39 = sphi 0, %s37
      %s49 = sphi 0, %s51
      %s52 = sphi 0, %s49
      %s53 = sphi 0, %s52
      %s69 = sphi 0, %s53
      %s75 = sphi 0, %s77
      %s78 = sphi 0, %s75
      %s79 = sphi 0, %s78
      %s95 = sphi 0, %s79
      %s99 = sphi 0, %s99
      %s101 = sphi 0, %s99
      %s102 = sphi 0, %s101
      %s116 = sphi 0, %s102
      %s120 = sphi 0, %s120
      %s122 = sphi 0, %s120
      %s123 = sphi 0, %s122
      %s137 = sphi 0, %s123
      %s141 = sphi 0, %s141
      %s143 = sphi 0, %s141
      %s144 = sphi 0, %s143
      %s158 = sphi 0, %s144
      %s162 = sphi 0, %s162
      %s164 = sphi 0, %s162
      %s165 = sphi 0, %s164
      %s179 = sphi 0, %s165
      %s183 = sphi 0, %s183
      %s185 = sphi 0, %s183
      %s186 = sphi 0, %s185
      %s200 = sphi 0, %s186
      %s204 = sphi 0, %s204
      %s206 = sphi 0, %s204
      %s207 = sphi 0, %s206
      %s221 = sphi 0, %s207
      %s225 = sphi 0, %s225
      %s227 = sphi 0, %s225
      %s228 = sphi 0, %s227
      %s242 = sphi 0, %s228
      %s246 = sphi 0, %s246
      %s248 = sphi 0, %s246
      %s249 = sphi 0, %s248
      %s263 = sphi 0, %s249
      %s267 = sphi 0, %s267
      %s269 = sphi 0, %s267
      %s270 = sphi 0, %s269
      %s284 = sphi 0, %s270
      %s288 = sphi 0, %s288
      %s290 = sphi 0, %s288
      %s291 = sphi 0, %s290
      %s305 = sphi 0, %s291
      %s309 = sphi 0, %s309
      %s311 = sphi 0, %s309
      %s312 = sphi 0, %s311
      %s326 = sphi 0, %s312
      %s330 = sphi 0, %s330
      %s332 = sphi 0, %s330
      %s333 = sphi 0, %s332
      %s347 = sphi 0, %s333
      %s351 = sphi 0, %s351
      %s353 = sphi 0, %s351
      %s354 = sphi 0, %s353
      %s368 = sphi 0, %s354
      %s376 = sphi 0, %s378
      %s379 = sphi 0, %s376
      %s380 = sphi 0, %s379
      %s396 = sphi 0, %s380
    $region4: #{tpu_custom_call.1} parent=1 // loop_header_branch
      %30 = sbr.rel (%p28) target = $region8
    $region5: #{tpu_custom_call.1} parent=1 // loop_body
      %s32 = ssub.s32 %s27, 1
      %s33 = ssub.s32 %s27, 2
      %s40 = sadd.s32 1, %s35
      %p41 = scmp.ge.s32.totalorder %s40, 1
      %s42 = scalar_select %p41, 0, %s40
      %s43 = sadd.s32 1, %s34
      %s44 = scalar_select %p41, %s43, %s34
      %p45 = scmp.ge.s32.totalorder %s44, 2
      %s46 = scalar_select %p45, 0, %s44
      %s47 = ssub.s32 %s34, %s46
      %p48 = scmp.eq.s32.totalorder %s47, 0
      %s50 = sadd.s32 %s49, 1
      %s51 = scalar_select %p48, %s49, %s50
      %p54 = pneg %p48
      %p55 = scmp.eq.s32.totalorder %s27, 1
      %p56 = por %p54, %p55
      %p57 = scmp.ne.s32.totalorder %s49, %s52
      %p58 = scmp.eq.s32.totalorder %s27, 0
      %p59 = por %p57, %p58
      %p60 = scmp.ne.s32.totalorder %s49, %s52
      %p61 = scmp.eq.s32.totalorder %s32, 1
      %p62 = por %p60, %p61
      %p63 = scmp.ne.s32.totalorder %s52, %s53
      %p64 = scmp.eq.s32.totalorder %s32, 0
      %p65 = por %p63, %p64
      %p66 = scmp.ne.s32.totalorder %s52, %s53
      %p67 = scmp.eq.s32.totalorder %s33, 1
      %p68 = por %p66, %p67
      %p70 = scmp.ne.s32.totalorder %s53, %s69
      %p71 = scmp.eq.s32.totalorder %s33, 0
      %p72 = por %p70, %p71
      %s73 = ssub.s32 %s34, %s46
      %p74 = scmp.eq.s32.totalorder %s73, 0
      %s76 = sadd.s32 %s75, 1
      %s77 = scalar_select %p74, %s75, %s76
      %p80 = pneg %p74
      %p81 = scmp.eq.s32.totalorder %s27, 1
      %p82 = por %p80, %p81
      %p83 = scmp.ne.s32.totalorder %s75, %s78
      %p84 = scmp.eq.s32.totalorder %s27, 0
      %p85 = por %p83, %p84
      %p86 = scmp.ne.s32.totalorder %s75, %s78
      %p87 = scmp.eq.s32.totalorder %s32, 1
      %p88 = por %p86, %p87
      %p89 = scmp.ne.s32.totalorder %s78, %s79
      %p90 = scmp.eq.s32.totalorder %s32, 0
      %p91 = por %p89, %p90
      %p92 = scmp.ne.s32.totalorder %s78, %s79
      %p93 = scmp.eq.s32.totalorder %s33, 1
      %p94 = por %p92, %p93
      %p96 = scmp.ne.s32.totalorder %s79, %s95
      %p97 = scmp.eq.s32.totalorder %s33, 0
      %p98 = por %p96, %p97
      %s100 = sadd.s32 %s99, 1
      %p103 = scmp.eq.s32.totalorder %s27, 1
      %p104 = scmp.ne.s32.totalorder %s99, %s101
      %p105 = scmp.eq.s32.totalorder %s27, 0
      %p106 = por %p104, %p105
      %p107 = scmp.ne.s32.totalorder %s99, %s101
      %p108 = scmp.eq.s32.totalorder %s32, 1
      %p109 = por %p107, %p108
      %p110 = scmp.ne.s32.totalorder %s101, %s102
      %p111 = scmp.eq.s32.totalorder %s32, 0
      %p112 = por %p110, %p111
      %p113 = scmp.ne.s32.totalorder %s101, %s102
      %p114 = scmp.eq.s32.totalorder %s33, 1
      %p115 = por %p113, %p114
      %p117 = scmp.ne.s32.totalorder %s102, %s116
      %p118 = scmp.eq.s32.totalorder %s33, 0
      %p119 = por %p117, %p118
      %s121 = sadd.s32 %s120, 1
      %p124 = scmp.eq.s32.totalorder %s27, 1
      %p125 = scmp.ne.s32.totalorder %s120, %s122
      %p126 = scmp.eq.s32.totalorder %s27, 0
      %p127 = por %p125, %p126
      %p128 = scmp.ne.s32.totalorder %s120, %s122
      %p129 = scmp.eq.s32.totalorder %s32, 1
      %p130 = por %p128, %p129
      %p131 = scmp.ne.s32.totalorder %s122, %s123
      %p132 = scmp.eq.s32.totalorder %s32, 0
      %p133 = por %p131, %p132
      %p134 = scmp.ne.s32.totalorder %s122, %s123
      %p135 = scmp.eq.s32.totalorder %s33, 1
      %p136 = por %p134, %p135
      %p138 = scmp.ne.s32.totalorder %s123, %s137
      %p139 = scmp.eq.s32.totalorder %s33, 0
      %p140 = por %p138, %p139
      %s142 = sadd.s32 %s141, 1
      %p145 = scmp.eq.s32.totalorder %s27, 1
      %p146 = scmp.ne.s32.totalorder %s141, %s143
      %p147 = scmp.eq.s32.totalorder %s27, 0
      %p148 = por %p146, %p147
      %p149 = scmp.ne.s32.totalorder %s141, %s143
      %p150 = scmp.eq.s32.totalorder %s32, 1
      %p151 = por %p149, %p150
      %p152 = scmp.ne.s32.totalorder %s143, %s144
      %p153 = scmp.eq.s32.totalorder %s32, 0
      %p154 = por %p152, %p153
      %p155 = scmp.ne.s32.totalorder %s143, %s144
      %p156 = scmp.eq.s32.totalorder %s33, 1
      %p157 = por %p155, %p156
      %p159 = scmp.ne.s32.totalorder %s144, %s158
      %p160 = scmp.eq.s32.totalorder %s33, 0
      %p161 = por %p159, %p160
      %s163 = sadd.s32 %s162, 1
      %p166 = scmp.eq.s32.totalorder %s27, 1
      %p167 = scmp.ne.s32.totalorder %s162, %s164
      %p168 = scmp.eq.s32.totalorder %s27, 0
      %p169 = por %p167, %p168
      %p170 = scmp.ne.s32.totalorder %s162, %s164
      %p171 = scmp.eq.s32.totalorder %s32, 1
      %p172 = por %p170, %p171
      %p173 = scmp.ne.s32.totalorder %s164, %s165
      %p174 = scmp.eq.s32.totalorder %s32, 0
      %p175 = por %p173, %p174
      %p176 = scmp.ne.s32.totalorder %s164, %s165
      %p177 = scmp.eq.s32.totalorder %s33, 1
      %p178 = por %p176, %p177
      %p180 = scmp.ne.s32.totalorder %s165, %s179
      %p181 = scmp.eq.s32.totalorder %s33, 0
      %p182 = por %p180, %p181
      %s184 = sadd.s32 %s183, 1
      %p187 = scmp.eq.s32.totalorder %s27, 1
      %p188 = scmp.ne.s32.totalorder %s183, %s185
      %p189 = scmp.eq.s32.totalorder %s27, 0
      %p190 = por %p188, %p189
      %p191 = scmp.ne.s32.totalorder %s183, %s185
      %p192 = scmp.eq.s32.totalorder %s32, 1
      %p193 = por %p191, %p192
      %p194 = scmp.ne.s32.totalorder %s185, %s186
      %p195 = scmp.eq.s32.totalorder %s32, 0
      %p196 = por %p194, %p195
      %p197 = scmp.ne.s32.totalorder %s185, %s186
      %p198 = scmp.eq.s32.totalorder %s33, 1
      %p199 = por %p197, %p198
      %p201 = scmp.ne.s32.totalorder %s186, %s200
      %p202 = scmp.eq.s32.totalorder %s33, 0
      %p203 = por %p201, %p202
      %s205 = sadd.s32 %s204, 1
      %p208 = scmp.eq.s32.totalorder %s27, 1
      %p209 = scmp.ne.s32.totalorder %s204, %s206
      %p210 = scmp.eq.s32.totalorder %s27, 0
      %p211 = por %p209, %p210
      %p212 = scmp.ne.s32.totalorder %s204, %s206
      %p213 = scmp.eq.s32.totalorder %s32, 1
      %p214 = por %p212, %p213
      %p215 = scmp.ne.s32.totalorder %s206, %s207
      %p216 = scmp.eq.s32.totalorder %s32, 0
      %p217 = por %p215, %p216
      %p218 = scmp.ne.s32.totalorder %s206, %s207
      %p219 = scmp.eq.s32.totalorder %s33, 1
      %p220 = por %p218, %p219
      %p222 = scmp.ne.s32.totalorder %s207, %s221
      %p223 = scmp.eq.s32.totalorder %s33, 0
      %p224 = por %p222, %p223
      %s226 = sadd.s32 %s225, 1
      %p229 = scmp.eq.s32.totalorder %s27, 1
      %p230 = scmp.ne.s32.totalorder %s225, %s227
      %p231 = scmp.eq.s32.totalorder %s27, 0
      %p232 = por %p230, %p231
      %p233 = scmp.ne.s32.totalorder %s225, %s227
      %p234 = scmp.eq.s32.totalorder %s32, 1
      %p235 = por %p233, %p234
      %p236 = scmp.ne.s32.totalorder %s227, %s228
      %p237 = scmp.eq.s32.totalorder %s32, 0
      %p238 = por %p236, %p237
      %p239 = scmp.ne.s32.totalorder %s227, %s228
      %p240 = scmp.eq.s32.totalorder %s33, 1
      %p241 = por %p239, %p240
      %p243 = scmp.ne.s32.totalorder %s228, %s242
      %p244 = scmp.eq.s32.totalorder %s33, 0
      %p245 = por %p243, %p244
      %s247 = sadd.s32 %s246, 1
      %p250 = scmp.eq.s32.totalorder %s27, 1
      %p251 = scmp.ne.s32.totalorder %s246, %s248
      %p252 = scmp.eq.s32.totalorder %s27, 0
      %p253 = por %p251, %p252
      %p254 = scmp.ne.s32.totalorder %s246, %s248
      %p255 = scmp.eq.s32.totalorder %s32, 1
      %p256 = por %p254, %p255
      %p257 = scmp.ne.s32.totalorder %s248, %s249
      %p258 = scmp.eq.s32.totalorder %s32, 0
      %p259 = por %p257, %p258
      %p260 = scmp.ne.s32.totalorder %s248, %s249
      %p261 = scmp.eq.s32.totalorder %s33, 1
      %p262 = por %p260, %p261
      %p264 = scmp.ne.s32.totalorder %s249, %s263
      %p265 = scmp.eq.s32.totalorder %s33, 0
      %p266 = por %p264, %p265
      %s268 = sadd.s32 %s267, 1
      %p271 = scmp.eq.s32.totalorder %s27, 1
      %p272 = scmp.ne.s32.totalorder %s267, %s269
      %p273 = scmp.eq.s32.totalorder %s27, 0
      %p274 = por %p272, %p273
      %p275 = scmp.ne.s32.totalorder %s267, %s269
      %p276 = scmp.eq.s32.totalorder %s32, 1
      %p277 = por %p275, %p276
      %p278 = scmp.ne.s32.totalorder %s269, %s270
      %p279 = scmp.eq.s32.totalorder %s32, 0
      %p280 = por %p278, %p279
      %p281 = scmp.ne.s32.totalorder %s269, %s270
      %p282 = scmp.eq.s32.totalorder %s33, 1
      %p283 = por %p281, %p282
      %p285 = scmp.ne.s32.totalorder %s270, %s284
      %p286 = scmp.eq.s32.totalorder %s33, 0
      %p287 = por %p285, %p286
      %s289 = sadd.s32 %s288, 1
      %p292 = scmp.eq.s32.totalorder %s27, 1
      %p293 = scmp.ne.s32.totalorder %s288, %s290
      %p294 = scmp.eq.s32.totalorder %s27, 0
      %p295 = por %p293, %p294
      %p296 = scmp.ne.s32.totalorder %s288, %s290
      %p297 = scmp.eq.s32.totalorder %s32, 1
      %p298 = por %p296, %p297
      %p299 = scmp.ne.s32.totalorder %s290, %s291
      %p300 = scmp.eq.s32.totalorder %s32, 0
      %p301 = por %p299, %p300
      %p302 = scmp.ne.s32.totalorder %s290, %s291
      %p303 = scmp.eq.s32.totalorder %s33, 1
      %p304 = por %p302, %p303
      %p306 = scmp.ne.s32.totalorder %s291, %s305
      %p307 = scmp.eq.s32.totalorder %s33, 0
      %p308 = por %p306, %p307
      %s310 = sadd.s32 %s309, 1
      %p313 = scmp.eq.s32.totalorder %s27, 1
      %p314 = scmp.ne.s32.totalorder %s309, %s311
      %p315 = scmp.eq.s32.totalorder %s27, 0
      %p316 = por %p314, %p315
      %p317 = scmp.ne.s32.totalorder %s309, %s311
      %p318 = scmp.eq.s32.totalorder %s32, 1
      %p319 = por %p317, %p318
      %p320 = scmp.ne.s32.totalorder %s311, %s312
      %p321 = scmp.eq.s32.totalorder %s32, 0
      %p322 = por %p320, %p321
      %p323 = scmp.ne.s32.totalorder %s311, %s312
      %p324 = scmp.eq.s32.totalorder %s33, 1
      %p325 = por %p323, %p324
      %p327 = scmp.ne.s32.totalorder %s312, %s326
      %p328 = scmp.eq.s32.totalorder %s33, 0
      %p329 = por %p327, %p328
      %s331 = sadd.s32 %s330, 1
      %p334 = scmp.eq.s32.totalorder %s27, 1
      %p335 = scmp.ne.s32.totalorder %s330, %s332
      %p336 = scmp.eq.s32.totalorder %s27, 0
      %p337 = por %p335, %p336
      %p338 = scmp.ne.s32.totalorder %s330, %s332
      %p339 = scmp.eq.s32.totalorder %s32, 1
      %p340 = por %p338, %p339
      %p341 = scmp.ne.s32.totalorder %s332, %s333
      %p342 = scmp.eq.s32.totalorder %s32, 0
      %p343 = por %p341, %p342
      %p344 = scmp.ne.s32.totalorder %s332, %s333
      %p345 = scmp.eq.s32.totalorder %s33, 1
      %p346 = por %p344, %p345
      %p348 = scmp.ne.s32.totalorder %s333, %s347
      %p349 = scmp.eq.s32.totalorder %s33, 0
      %p350 = por %p348, %p349
      %s352 = sadd.s32 %s351, 1
      %p355 = scmp.eq.s32.totalorder %s27, 1
      %p356 = scmp.ne.s32.totalorder %s351, %s353
      %p357 = scmp.eq.s32.totalorder %s27, 0
      %p358 = por %p356, %p357
      %p359 = scmp.ne.s32.totalorder %s351, %s353
      %p360 = scmp.eq.s32.totalorder %s32, 1
      %p361 = por %p359, %p360
      %p362 = scmp.ne.s32.totalorder %s353, %s354
      %p363 = scmp.eq.s32.totalorder %s32, 0
      %p364 = por %p362, %p363
      %p365 = scmp.ne.s32.totalorder %s353, %s354
      %p366 = scmp.eq.s32.totalorder %s33, 1
      %p367 = por %p365, %p366
      %p369 = scmp.ne.s32.totalorder %s354, %s368
      %p370 = scmp.eq.s32.totalorder %s33, 0
      %p371 = por %p369, %p370
      %s372 = ssub.s32 %s34, %s46
      %s373 = ssub.s32 %s35, %s42
      %s374 = sor.u32 %s372, %s373
      %p375 = scmp.eq.s32.totalorder %s374, 0
      %s377 = sadd.s32 %s376, 1
      %s378 = scalar_select %p375, %s376, %s377
      %p381 = pneg %p375
      %p382 = scmp.eq.s32.totalorder %s27, 1
      %p383 = por %p381, %p382
      %p384 = scmp.ne.s32.totalorder %s376, %s379
      %p385 = scmp.eq.s32.totalorder %s27, 0
      %p386 = por %p384, %p385
      %p387 = scmp.ne.s32.totalorder %s376, %s379
      %p388 = scmp.eq.s32.totalorder %s32, 1
      %p389 = por %p387, %p388
      %p390 = scmp.ne.s32.totalorder %s379, %s380
      %p391 = scmp.eq.s32.totalorder %s32, 0
      %p392 = por %p390, %p391
      %p393 = scmp.ne.s32.totalorder %s379, %s380
      %p394 = scmp.eq.s32.totalorder %s33, 1
      %p395 = por %p393, %p394
      %p397 = scmp.ne.s32.totalorder %s380, %s396
      %p398 = scmp.eq.s32.totalorder %s33, 0
      %p399 = por %p397, %p398
      %p400 = scmp.le.s32.totalorder 1, %s27
      %p401 = scmp.lt.s32.totalorder %s27, 3
      %p402 = pnand %p400, %p401
      %p403 = pneg %p402
      // Predicated region
      $region9: #{tpu_custom_call.1} parent=5 // pred_check
        _
      $region10: #{tpu_custom_call.1} parent=5 // pred_check_branch
        %405 = sbr.rel (%p402) target = $region12
      $region11: #{tpu_custom_call.1} parent=5 // pred_region
        %s406 = ssub.s32 %s27, 1
        // Predicated region
        $region13: #{tpu_custom_call.1} parent=11 // pred_check
          %p407 = pneg %p112
        $region14: #{tpu_custom_call.1} parent=11 // pred_check_branch
          %409 = sbr.rel (%p407) target = $region16
        $region15: #{tpu_custom_call.1} parent=11 // pred_region
          _
        $region16: #{tpu_custom_call.1} parent=11 // pred_fallthru
          _
        // Predicated region
        $region17: #{tpu_custom_call.1} parent=11 // pred_check
          %p410 = pneg %p133
        $region18: #{tpu_custom_call.1} parent=11 // pred_check_branch
          %412 = sbr.rel (%p410) target = $region20
        $region19: #{tpu_custom_call.1} parent=11 // pred_region
          _
        $region20: #{tpu_custom_call.1} parent=11 // pred_fallthru
          _
        // Predicated region
        $region21: #{tpu_custom_call.1} parent=11 // pred_check
          %p413 = pneg %p154
        $region22: #{tpu_custom_call.1} parent=11 // pred_check_branch
          %415 = sbr.rel (%p413) target = $region24
        $region23: #{tpu_custom_call.1} parent=11 // pred_region
          _
        $region24: #{tpu_custom_call.1} parent=11 // pred_fallthru
          _
        // Predicated region
        $region25: #{tpu_custom_call.1} parent=11 // pred_check
          %p416 = pneg %p175
        $region26: #{tpu_custom_call.1} parent=11 // pred_check_branch
          %418 = sbr.rel (%p416) target = $region28
        $region27: #{tpu_custom_call.1} parent=11 // pred_region
          _
        $region28: #{tpu_custom_call.1} parent=11 // pred_fallthru
          _
        // Predicated region
        $region29: #{tpu_custom_call.1} parent=11 // pred_check
          %p419 = pneg %p196
        $region30: #{tpu_custom_call.1} parent=11 // pred_check_branch
          %421 = sbr.rel (%p419) target = $region32
        $region31: #{tpu_custom_call.1} parent=11 // pred_region
          %s423 = ssub.s32 256, 256
          %424 = vsyncadd [#allocation6], %s423
          %s425 = sshll.u32 [#allocation5], 4
          %s426 = int_to_ptr.vmem [resolvable:$true] %s425
          %431 = dma.hbm_to_vmem [thread:$0]  %s6, 256, %s426, [#allocation6], 64, 64, 4
        $region32: #{tpu_custom_call.1} parent=11 // pred_fallthru
          _
        // Predicated region
        $region33: #{tpu_custom_call.1} parent=11 // pred_check
          %p432 = pneg %p217
        $region34: #{tpu_custom_call.1} parent=11 // pred_check_branch
          %434 = sbr.rel (%p432) target = $region36
        $region35: #{tpu_custom_call.1} parent=11 // pred_region
          %s436 = ssub.s32 256, 256
          %437 = vsyncadd [#allocation9], %s436
          %s438 = sshll.u32 [#allocation8], 4
          %s439 = int_to_ptr.vmem [resolvable:$true] %s438
          %444 = dma.hbm_to_vmem [thread:$0]  %s7, 256, %s439, [#allocation9], 64, 64, 4
        $region36: #{tpu_custom_call.1} parent=11 // pred_fallthru
          _
        // Predicated region
        $region37: #{tpu_custom_call.1} parent=11 // pred_check
          %p445 = pneg %p238
        $region38: #{tpu_custom_call.1} parent=11 // pred_check_branch
          %447 = sbr.rel (%p445) target = $region40
        $region39: #{tpu_custom_call.1} parent=11 // pred_region
          %s449 = ssub.s32 16, 16
          %450 = vsyncadd [#allocation9], %s449
          %s452 = sshll.u32 [#allocation10], 4
          %s453 = int_to_ptr.vmem [resolvable:$true] %s452
          %455 = dma.hbm_to_vmem [thread:$0]  %s8, 16, %s453, [#allocation9]
        $region40: #{tpu_custom_call.1} parent=11 // pred_fallthru
          _
        // Predicated region
        $region41: #{tpu_custom_call.1} parent=11 // pred_check
          %p456 = pneg %p259
        $region42: #{tpu_custom_call.1} parent=11 // pred_check_branch
          %458 = sbr.rel (%p456) target = $region44
        $region43: #{tpu_custom_call.1} parent=11 // pred_region
          %s460 = ssub.s32 16, 16
          %461 = vsyncadd [#allocation12], %s460
          %s463 = sshll.u32 [#allocation11], 4
          %s464 = int_to_ptr.vmem [resolvable:$true] %s463
          %466 = dma.hbm_to_vmem [thread:$0]  %s9, 16, %s464, [#allocation12]
        $region44: #{tpu_custom_call.1} parent=11 // pred_fallthru
          _
        // Predicated region
        $region45: #{tpu_custom_call.1} parent=11 // pred_check
          %p467 = pneg %p280
        $region46: #{tpu_custom_call.1} parent=11 // pred_check_branch
          %469 = sbr.rel (%p467) target = $region48
        $region47: #{tpu_custom_call.1} parent=11 // pred_region
          _
        $region48: #{tpu_custom_call.1} parent=11 // pred_fallthru
          _
        // Predicated region
        $region49: #{tpu_custom_call.1} parent=11 // pred_check
          %p470 = pneg %p301
        $region50: #{tpu_custom_call.1} parent=11 // pred_check_branch
          %472 = sbr.rel (%p470) target = $region52
        $region51: #{tpu_custom_call.1} parent=11 // pred_region
          _
        $region52: #{tpu_custom_call.1} parent=11 // pred_fallthru
          _
        // Predicated region
        $region53: #{tpu_custom_call.1} parent=11 // pred_check
          %p473 = pneg %p322
        $region54: #{tpu_custom_call.1} parent=11 // pred_check_branch
          %475 = sbr.rel (%p473) target = $region56
        $region55: #{tpu_custom_call.1} parent=11 // pred_region
          _
        $region56: #{tpu_custom_call.1} parent=11 // pred_fallthru
          _
        // Predicated region
        $region57: #{tpu_custom_call.1} parent=11 // pred_check
          %p476 = pneg %p343
        $region58: #{tpu_custom_call.1} parent=11 // pred_check_branch
          %478 = sbr.rel (%p476) target = $region60
        $region59: #{tpu_custom_call.1} parent=11 // pred_region
          _
        $region60: #{tpu_custom_call.1} parent=11 // pred_fallthru
          _
        // Predicated region
        $region61: #{tpu_custom_call.1} parent=11 // pred_check
          %p479 = pneg %p364
        $region62: #{tpu_custom_call.1} parent=11 // pred_check_branch
          %481 = sbr.rel (%p479) target = $region64
        $region63: #{tpu_custom_call.1} parent=11 // pred_region
          _
        $region64: #{tpu_custom_call.1} parent=11 // pred_fallthru
          _
      $region12: #{tpu_custom_call.1} parent=5 // pred_fallthru
        _
      %p482 = scmp.lt.s32.totalorder %s27, 2
      // Predicated region
      $region65: #{tpu_custom_call.1} parent=5 // pred_check
        %p483 = pneg %p482
      $region66: #{tpu_custom_call.1} parent=5 // pred_check_branch
        %485 = sbr.rel (%p483) target = $region68
      $region67: #{tpu_custom_call.1} parent=5 // pred_region
        // Predicated region
        $region69: #{tpu_custom_call.1} parent=67 // pred_check
          %p486 = pneg %p59
        $region70: #{tpu_custom_call.1} parent=67 // pred_check_branch
          %488 = sbr.rel (%p486) target = $region72
        $region71: #{tpu_custom_call.1} parent=67 // pred_region
          %p489 = scmp.lt.s32.totalorder %s34, 1
          %s490 = scalar_select %p489, %s34, 1
          %s491 = smul.addr %s490, 8
          %s492 = scalar_lea.vmem %s0, %s491
        $region72: #{tpu_custom_call.1} parent=67 // pred_fallthru
          _
        // Predicated region
        $region73: #{tpu_custom_call.1} parent=67 // pred_check
          %p493 = pneg %p85
        $region74: #{tpu_custom_call.1} parent=67 // pred_check_branch
          %495 = sbr.rel (%p493) target = $region76
        $region75: #{tpu_custom_call.1} parent=67 // pred_region
          %p496 = scmp.lt.s32.totalorder %s34, 1
          %s497 = scalar_select %p496, %s34, 1
          %s498 = smul.addr %s497, 2
          %s499 = smul.addr %s498, 8
          %s500 = scalar_lea.vmem %s1, %s499
        $region76: #{tpu_custom_call.1} parent=67 // pred_fallthru
          _
      $region68: #{tpu_custom_call.1} parent=5 // pred_fallthru
        _
      %p501 = scmp.le.s32.totalorder 1, %s27
      %p502 = scmp.lt.s32.totalorder %s27, 3
      %p503 = pnand %p501, %p502
      %p504 = pneg %p503
      // Predicated region
      $region77: #{tpu_custom_call.1} parent=5 // pred_check
        _
      $region78: #{tpu_custom_call.1} parent=5 // pred_check_branch
        %506 = sbr.rel (%p503) target = $region80
      $region79: #{tpu_custom_call.1} parent=5 // pred_region
        %s507 = ssub.s32 %s27, 1
        // Predicated region
        $region81: #{tpu_custom_call.1} parent=79 // pred_check
          %p508 = pneg %p196
        $region82: #{tpu_custom_call.1} parent=79 // pred_check_branch
          %510 = sbr.rel (%p508) target = $region84
        $region83: #{tpu_custom_call.1} parent=79 // pred_region
          %511 = dma.done [#allocation6], 256
        $region84: #{tpu_custom_call.1} parent=79 // pred_fallthru
          _
        // Predicated region
        $region85: #{tpu_custom_call.1} parent=79 // pred_check
          %p512 = pneg %p217
        $region86: #{tpu_custom_call.1} parent=79 // pred_check_branch
          %514 = sbr.rel (%p512) target = $region88
        $region87: #{tpu_custom_call.1} parent=79 // pred_region
          %515 = dma.done [#allocation9], 256
        $region88: #{tpu_custom_call.1} parent=79 // pred_fallthru
          _
        // Predicated region
        $region89: #{tpu_custom_call.1} parent=79 // pred_check
          %p516 = pneg %p238
        $region90: #{tpu_custom_call.1} parent=79 // pred_check_branch
          %518 = sbr.rel (%p516) target = $region92
        $region91: #{tpu_custom_call.1} parent=79 // pred_region
          %519 = dma.done [#allocation9], 16
        $region92: #{tpu_custom_call.1} parent=79 // pred_fallthru
          _
        // Predicated region
        $region93: #{tpu_custom_call.1} parent=79 // pred_check
          %p520 = pneg %p259
        $region94: #{tpu_custom_call.1} parent=79 // pred_check_branch
          %522 = sbr.rel (%p520) target = $region96
        $region95: #{tpu_custom_call.1} parent=79 // pred_region
          %523 = dma.done [#allocation12], 16
        $region96: #{tpu_custom_call.1} parent=79 // pred_fallthru
          _
        %p524 = scmp.lt.s32.totalorder %s36, 1
        %s525 = scalar_select %p524, %s36, 1
        %s526 = smul.addr %s525, 8
        %s527 = scalar_lea.vmem %s0, %s526
        %p528 = pneg %p65
        %p529 = pneg %p62
        %p530 = scmp.lt.s32.totalorder %s36, 1
        %s531 = scalar_select %p530, %s36, 1
        %s532 = smul.addr %s531, 2
        %s533 = smul.addr %s532, 8
        %s534 = scalar_lea.vmem %s1, %s533
        %p535 = pneg %p91
        %p536 = pneg %p88
        %p537 = pneg %p112
        %p538 = pneg %p109
        %p539 = pneg %p133
        %p540 = pneg %p130
        %p541 = pneg %p154
        %p542 = pneg %p151
        %p543 = pneg %p175
        %p544 = pneg %p172
        %p545 = pneg %p196
        %p546 = pneg %p193
        %p547 = pneg %p217
        %p548 = pneg %p214
        %p549 = pneg %p238
        %p550 = pneg %p235
        %p551 = pneg %p259
        %p552 = pneg %p256
        %p553 = pneg %p280
        %p554 = pneg %p277
        %p555 = pneg %p301
        %p556 = pneg %p298
        %p557 = pneg %p322
        %p558 = pneg %p319
        %p559 = pneg %p343
        %p560 = pneg %p340
        %p561 = pneg %p364
        %p562 = pneg %p361
        %p563 = pneg %p392
        %p564 = pneg %p389
        %s565 = sand.u32 %s379, 1
        %s566 = scalar_lea.sflag [#allocation7], %s565
        %s567 = sand.u32 %s379, 1
        %s568 = smul.addr %s567, 8
        %s569 = scalar_lea.vmem [#allocation13], %s568
        %p570 = scmp.lt.s32.totalorder %s36, 1
        %s571 = scalar_select %p570, %s36, 1
        %s572 = smul.addr %s571, 8
        %s573 = scalar_lea.vmem %s0, %s572
        %p574 = scmp.lt.s32.totalorder %s36, 1
        %s575 = scalar_select %p574, %s36, 1
        %s576 = smul.addr %s575, 2
        %s577 = smul.addr %s576, 8
        %s578 = scalar_lea.vmem %s1, %s577
        %v580 = vld [vmem:[%s2] sm:$0x1]
        %v581 = vld [vmem:[%s3] sm:$0x1]
        %p582 = scmp.eq.s32.totalorder %s37, 0
        // Predicated region
        $region97: #{tpu_custom_call.1} parent=79 // pred_check
          %p583 = pneg %p582
        $region98: #{tpu_custom_call.1} parent=79 // pred_check_branch
          %585 = sbr.rel (%p583) target = $region100
        $region99: #{tpu_custom_call.1} parent=79 // pred_region
          %v586 = vld [vmem:[%s578] sm:$0xff]
          %v587 = vld [vmem:[%s578 + $0x8] sm:$0xff]
          %vm588 = vcmask 261120
          %v589 = vsel %vm588, %v586, 0.0
          %590 = vadd.xlane.f32.xlu0 %v589
          %v591 = vpop.xlane.xlu0 %590
          %v592 = vsel %vm588, %v587, 0.0
          %593 = vadd.xlane.f32.xlu0 %v592
          %v594 = vpop.xlane.xlu0 %593
          %v595 = vrcp.pop 32.0
          %v596 = vmul.f32 %v591, %v595
          %v597 = vmul.f32 %v594, %v595
          %v598 = vsub.f32 %v586, %v596
          %v599 = vsub.f32 %v587, %v597
          %v600 = vmul.f32 %v598, %v598
          %v601 = vmul.f32 %v599, %v599
          %v602 = vsel %vm588, %v600, 0.0
          %603 = vadd.xlane.f32.xlu0 %v602
          %v604 = vpop.xlane.xlu0 %603
          %v605 = vsel %vm588, %v601, 0.0
          %606 = vadd.xlane.f32.xlu0 %v605
          %v607 = vpop.xlane.xlu0 %606
          %v608 = vmul.f32 %v604, %v595
          %v609 = vmul.f32 %v607, %v595
          %v610 = vadd.f32 %v608, 1e-05
          %v611 = vadd.f32 %v609, 1e-05
          %v612 = vrsqrt.pop %v610
          %v613 = vrsqrt.pop %v611
          %v614 = vmul.f32 %v598, %v612
          %v615 = vmul.f32 %v599, %v613
          %v617 = vlaneseq
          %v618 = vshrl.u32 %v617, 7
          %v619 = vsub.s32 0, %v618
          %v620 = vrot.slane %v580, %v619
          %v622 = vmul.f32 %v614, %v620
          %v623 = vmul.f32 %v615, %v620
          %v625 = vlaneseq
          %v626 = vshrl.u32 %v625, 7
          %v627 = vsub.s32 0, %v626
          %v628 = vrot.slane %v581, %v627
          %v630 = vadd.f32 %v622, %v628
          %v631 = vadd.f32 %v623, %v628
          %v632 = vpack.c.bf16 %v631, %v630
          %v633 = vld [vmem:[%s573] sm:$0xff]
          %v634 = vsel %vm588, %v633, 0.0
          %635 = vadd.xlane.f32.xlu0 %v634
          %v636 = vpop.xlane.xlu0 %635
          %v637 = vmul.f32 %v636, %v595
          %v638 = vsub.f32 %v633, %v637
          %v639 = vmul.f32 %v638, %v638
          %v640 = vsel %vm588, %v639, 0.0
          %641 = vadd.xlane.f32.xlu0 %v640
          %v642 = vpop.xlane.xlu0 %641
          %v643 = vmul.f32 %v642, %v595
          %v644 = vadd.f32 %v643, 1e-05
          %v645 = vrsqrt.pop %v644
          %v646 = vmul.f32 %v638, %v645
          %v647 = vmul.f32 %v646, %v620
          %v648 = vadd.f32 %v647, %v628
          %v649 = vpack.c.bf16 %v648, %v648
          %v650 = vld [vmem:[%s5] sm:$0xf]
          %v651 = vld [vmem:[%s5 + $0x4] sm:$0xf]
          %v652 = vld [vmem:[%s5 + $0x8] sm:$0xf]
          %v653 = vld [vmem:[%s5 + $0xc] sm:$0xf]
          %v658 = vunpack.c.l.b16 %v650
          %v659 = vunpack.c.l.b16 %v651
          %v660 = vunpack.c.l.b16 %v652
          %v661 = vunpack.c.l.b16 %v653
          %v662 = vpack.c.b16 %v659, %v658
          %v663 = vpack.c.b16 %v661, %v660
          %v667 = vsel %vm588, %v632, 0
          %v670 = vsel %vm588, %v649, 0
          %672 = vmatprep.subr.bf16.mxu0 0
          %673 = vmatpush1.bf16.msra.mxu0 %v662
          %674 = vmatprep.subr.bf16.mxu0 0
          %675 = vmatpush1.bf16.msra.mxu0 %v663
          %676 = vmatprep.subr.bf16.mxu0 0
          %677 = vmatpush1.bf16.msra.mxu0 0
          %678 = vmatprep.subr.bf16.mxu0 0
          %679 = vmatpush1.bf16.msra.mxu0 0
          %680 = vmatprep.subr.bf16.mxu0 0
          %681 = vmatpush1.bf16.msra.mxu0 0
          %682 = vmatprep.subr.bf16.mxu0 0
          %683 = vmatpush1.bf16.msra.mxu0 0
          %684 = vmatprep.subr.bf16.mxu0 0
          %685 = vmatpush1.bf16.msra.mxu0 0
          %686 = vmatprep.subr.bf16.mxu0 0
          %687 = vmatpush1.bf16.msra.mxu0 0
          %688 = vmatprep.subr.bf16.mxu0 0
          %689 = vmatpush1.bf16.msra.mxu0 0
          %690 = vmatprep.subr.bf16.mxu0 0
          %691 = vmatpush1.bf16.msra.mxu0 0
          %692 = vmatprep.subr.bf16.mxu0 0
          %693 = vmatpush1.bf16.msra.mxu0 0
          %694 = vmatprep.subr.bf16.mxu0 0
          %695 = vmatpush1.bf16.msra.mxu0 0
          %696 = vmatprep.subr.bf16.mxu0 0
          %697 = vmatpush1.bf16.msra.mxu0 0
          %698 = vmatprep.subr.bf16.mxu0 0
          %699 = vmatpush1.bf16.msra.mxu0 0
          %700 = vmatprep.subr.bf16.mxu0 0
          %701 = vmatpush1.bf16.msra.mxu0 0
          %702 = vmatprep.subr.bf16.mxu0 0
          %703 = vmatpush1.bf16.msra.mxu0 0
          %704 = vmatprep.mubr.bf16.mxu0 0
          %705 = vmatmul.mubr.bf16.gmra.mrb[0].mxu0 %v667
          %v706 = vpop.f32.mrb[0].mxu0
          %v707 = vadd.f32 0.0, %v706
          %v708 = vpop.f32.mrb[0].mxu0
          %v709 = vpop.f32.mrb[0].mxu0
          %v710 = vadd.f32 0.0, %v709
          %v711 = vpop.f32.mrb[0].mxu0
          %712 = vmatprep.mubr.bf16.mxu0 0
          %713 = vmatmul.mubr.bf16.gmra.mrb[0].mxu0 %v670
          %v714 = vpop.f32.mrb[0].mxu0
          %v715 = vadd.f32 0.0, %v714
          %v716 = vpop.f32.mrb[0].mxu0
          %v717 = vpop.f32.mrb[0].mxu0
          %v718 = vpop.f32.mrb[0].mxu0
          %719 = vdwg.mxu0
          %v720 = vpack.c.bf16 %v710, %v707
          %v721 = vpack.c.bf16 %v715, %v715
          %v724 = vunpack.c.l.b16 %v720
          %v725 = vunpack.c.h.b16 %v720
          %v726 = vunpack.c.l.b16 %v721
          %v727 = vpack.c.b16 %v724, %v724
          %v728 = vpack.c.b16 %v725, %v725
          %v729 = vpack.c.b16 %v726, %v726
          %vm733 = vcmask 257024
          %734 = vst.msk [vmem:[#allocation2] sm:$0xf] %vm733, %v727
          %735 = vst.msk [vmem:[#allocation2 + $0x4] sm:$0xf] %vm733, %v728
          %736 = vst.msk [vmem:[#allocation2 + $0x8] sm:$0xf] %vm733, %v729
          %v737 = vld [vmem:[#allocation5] sm:$0xf]
          %v738 = vld [vmem:[#allocation5 + $0x4] sm:$0xf]
          %v739 = vld [vmem:[#allocation5 + $0x8] sm:$0xf]
          %v740 = vld [vmem:[#allocation5 + $0xc] sm:$0xf]
          %v745 = vunpack.c.l.b16 %v737
          %v746 = vunpack.c.l.b16 %v738
          %v747 = vunpack.c.l.b16 %v739
          %v748 = vunpack.c.l.b16 %v740
          %v749 = vpack.c.b16 %v746, %v745
          %v750 = vpack.c.b16 %v748, %v747
          %753 = vmatprep.subr.bf16.mxu0 0
          %754 = vmatpush1.bf16.msra.mxu0 %v749
          %755 = vmatprep.subr.bf16.mxu0 0
          %756 = vmatpush1.bf16.msra.mxu0 %v750
          %757 = vmatprep.subr.bf16.mxu0 0
          %758 = vmatpush1.bf16.msra.mxu0 0
          %759 = vmatprep.subr.bf16.mxu0 0
          %760 = vmatpush1.bf16.msra.mxu0 0
          %761 = vmatprep.subr.bf16.mxu0 0
          %762 = vmatpush1.bf16.msra.mxu0 0
          %763 = vmatprep.subr.bf16.mxu0 0
          %764 = vmatpush1.bf16.msra.mxu0 0
          %765 = vmatprep.subr.bf16.mxu0 0
          %766 = vmatpush1.bf16.msra.mxu0 0
          %767 = vmatprep.subr.bf16.mxu0 0
          %768 = vmatpush1.bf16.msra.mxu0 0
          %769 = vmatprep.subr.bf16.mxu0 0
          %770 = vmatpush1.bf16.msra.mxu0 0
          %771 = vmatprep.subr.bf16.mxu0 0
          %772 = vmatpush1.bf16.msra.mxu0 0
          %773 = vmatprep.subr.bf16.mxu0 0
          %774 = vmatpush1.bf16.msra.mxu0 0
          %775 = vmatprep.subr.bf16.mxu0 0
          %776 = vmatpush1.bf16.msra.mxu0 0
          %777 = vmatprep.subr.bf16.mxu0 0
          %778 = vmatpush1.bf16.msra.mxu0 0
          %779 = vmatprep.subr.bf16.mxu0 0
          %780 = vmatpush1.bf16.msra.mxu0 0
          %781 = vmatprep.subr.bf16.mxu0 0
          %782 = vmatpush1.bf16.msra.mxu0 0
          %783 = vmatprep.subr.bf16.mxu0 0
          %784 = vmatpush1.bf16.msra.mxu0 0
          %785 = vmatprep.mubr.bf16.mxu0 0
          %786 = vmatmul.mubr.bf16.gmra.mrb[0].mxu0 %v667
          %v787 = vpop.f32.mrb[0].mxu0
          %v788 = vadd.f32 0.0, %v787
          %v789 = vpop.f32.mrb[0].mxu0
          %v790 = vpop.f32.mrb[0].mxu0
          %v791 = vadd.f32 0.0, %v790
          %v792 = vpop.f32.mrb[0].mxu0
          %793 = vmatprep.mubr.bf16.mxu0 0
          %794 = vmatmul.mubr.bf16.gmra.mrb[0].mxu0 %v670
          %v795 = vpop.f32.mrb[0].mxu0
          %v796 = vadd.f32 0.0, %v795
          %v797 = vpop.f32.mrb[0].mxu0
          %v798 = vpop.f32.mrb[0].mxu0
          %v799 = vpop.f32.mrb[0].mxu0
          %800 = vdwg.mxu0
          %v801 = vpack.c.bf16 %v791, %v788
          %v802 = vpack.c.bf16 %v796, %v796
          %v805 = vunpack.c.l.b16 %v801
          %v806 = vunpack.c.h.b16 %v801
          %v807 = vunpack.c.l.b16 %v802
          %v808 = vpack.c.b16 %v805, %v805
          %v809 = vpack.c.b16 %v806, %v806
          %v810 = vpack.c.b16 %v807, %v807
          %814 = vst.msk [vmem:[#allocation3] sm:$0xf] %vm733, %v808
          %815 = vst.msk [vmem:[#allocation3 + $0x4] sm:$0xf] %vm733, %v809
          %816 = vst.msk [vmem:[#allocation3 + $0x8] sm:$0xf] %vm733, %v810
        $region100: #{tpu_custom_call.1} parent=79 // pred_fallthru
          _
        %s817 = smul.u32 %s37, 8
        %s818 = scalar_lea.vmem %s573, %s817
        %v819 = vld [vmem:[%s818] sm:$0xff]
        %vm820 = vcmask 261120
        %v821 = vsel %vm820, %v819, 0.0
        %822 = vadd.xlane.f32.xlu0 %v821
        %v823 = vpop.xlane.xlu0 %822
        %v824 = vrcp.pop 32.0
        %v825 = vmul.f32 %v823, %v824
        %v826 = vsub.f32 %v819, %v825
        %v827 = vmul.f32 %v826, %v826
        %v828 = vsel %vm820, %v827, 0.0
        %829 = vadd.xlane.f32.xlu0 %v828
        %v830 = vpop.xlane.xlu0 %829
        %v831 = vmul.f32 %v830, %v824
        %v832 = vadd.f32 %v831, 1e-05
        %v833 = vrsqrt.pop %v832
        %v834 = vmul.f32 %v826, %v833
        %v836 = vlaneseq
        %v837 = vshrl.u32 %v836, 7
        %v838 = vsub.s32 0, %v837
        %v839 = vrot.slane %v580, %v838
        %v841 = vmul.f32 %v834, %v839
        %v843 = vlaneseq
        %v844 = vshrl.u32 %v843, 7
        %v845 = vsub.s32 0, %v844
        %v846 = vrot.slane %v581, %v845
        %v848 = vadd.f32 %v841, %v846
        %v849 = vpack.c.bf16 %v848, %v848
        %v850 = vld [vmem:[%s4] sm:$0xf]
        %v851 = vld [vmem:[%s4 + $0x4] sm:$0xf]
        %v852 = vld [vmem:[%s4 + $0x8] sm:$0xf]
        %v853 = vld [vmem:[%s4 + $0xc] sm:$0xf]
        %v858 = vunpack.c.l.b16 %v850
        %v859 = vunpack.c.l.b16 %v851
        %v860 = vunpack.c.l.b16 %v852
        %v861 = vunpack.c.l.b16 %v853
        %v862 = vpack.c.b16 %v859, %v858
        %v863 = vpack.c.b16 %v861, %v860
        %v867 = vsel %vm820, %v849, 0
        %869 = vmatprep.subr.bf16.mxu0 0
        %870 = vmatpush1.bf16.msra.mxu0 %v862
        %871 = vmatprep.subr.bf16.mxu0 0
        %872 = vmatpush1.bf16.msra.mxu0 %v863
        %873 = vmatprep.subr.bf16.mxu0 0
        %874 = vmatpush1.bf16.msra.mxu0 0
        %875 = vmatprep.subr.bf16.mxu0 0
        %876 = vmatpush1.bf16.msra.mxu0 0
        %877 = vmatprep.subr.bf16.mxu0 0
        %878 = vmatpush1.bf16.msra.mxu0 0
        %879 = vmatprep.subr.bf16.mxu0 0
        %880 = vmatpush1.bf16.msra.mxu0 0
        %881 = vmatprep.subr.bf16.mxu0 0
        %882 = vmatpush1.bf16.msra.mxu0 0
        %883 = vmatprep.subr.bf16.mxu0 0
        %884 = vmatpush1.bf16.msra.mxu0 0
        %885 = vmatprep.subr.bf16.mxu0 0
        %886 = vmatpush1.bf16.msra.mxu0 0
        %887 = vmatprep.subr.bf16.mxu0 0
        %888 = vmatpush1.bf16.msra.mxu0 0
        %889 = vmatprep.subr.bf16.mxu0 0
        %890 = vmatpush1.bf16.msra.mxu0 0
        %891 = vmatprep.subr.bf16.mxu0 0
        %892 = vmatpush1.bf16.msra.mxu0 0
        %893 = vmatprep.subr.bf16.mxu0 0
        %894 = vmatpush1.bf16.msra.mxu0 0
        %895 = vmatprep.subr.bf16.mxu0 0
        %896 = vmatpush1.bf16.msra.mxu0 0
        %897 = vmatprep.subr.bf16.mxu0 0
        %898 = vmatpush1.bf16.msra.mxu0 0
        %899 = vmatprep.subr.bf16.mxu0 0
        %900 = vmatpush1.bf16.msra.mxu0 0
        %901 = vmatprep.mubr.bf16.mxu0 0
        %902 = vmatmul.mubr.bf16.gmra.mrb[0].mxu0 %v867
        %v903 = vpop.f32.mrb[0].mxu0
        %v904 = vadd.f32 0.0, %v903
        %v905 = vpop.f32.mrb[0].mxu0
        %v906 = vpop.f32.mrb[0].mxu0
        %v907 = vpop.f32.mrb[0].mxu0
        %908 = vdwg.mxu0
        %v909 = vpack.c.bf16 %v904, %v904
        %v910 = vld [vmem:[#allocation2] sm:$0xf]
        %v911 = vld [vmem:[#allocation2 + $0x4] sm:$0xf]
        %v912 = vld [vmem:[#allocation2 + $0x8] sm:$0xf]
        %v913 = vld [vmem:[#allocation3] sm:$0xf]
        %v914 = vld [vmem:[#allocation3 + $0x4] sm:$0xf]
        %v915 = vld [vmem:[#allocation3 + $0x8] sm:$0xf]
        %v919 = vunpack.c.l.b16 %v910
        %v920 = vunpack.c.l.b16 %v911
        %v921 = vunpack.c.l.b16 %v912
        %v922 = vpack.c.b16 %v920, %v919
        %v923 = vpack.c.b16 %v921, %v921
        %vm924 = vcmask 64512
        %v926 = vsel %vm924, %v909, 0
        %v929 = vsel %vm924, %v922, 0
        %v932 = vsel %vm924, %v923, 0
        %934 = vmatprep.subr.bf16.mxu0 0
        %935 = vmatpush1.bf16.xpose.msra.mxu0 %v929
        %936 = vmatprep.subr.bf16.mxu0 0
        %937 = vmatpush1.bf16.xpose.msra.mxu0 %v932
        %938 = vmatprep.subr.bf16.mxu0 0
        %939 = vmatpush1.bf16.xpose.msra.mxu0 0
        %940 = vmatprep.subr.bf16.mxu0 0
        %941 = vmatpush1.bf16.xpose.msra.mxu0 0
        %942 = vmatprep.subr.bf16.mxu0 0
        %943 = vmatpush1.bf16.xpose.msra.mxu0 0
        %944 = vmatprep.subr.bf16.mxu0 0
        %945 = vmatpush1.bf16.xpose.msra.mxu0 0
        %946 = vmatprep.subr.bf16.mxu0 0
        %947 = vmatpush1.bf16.xpose.msra.mxu0 0
        %948 = vmatprep.subr.bf16.mxu0 0
        %949 = vmatpush1.bf16.xpose.msra.mxu0 0
        %950 = vmatprep.subr.bf16.mxu0 0
        %951 = vmatpush1.bf16.xpose.msra.mxu0 0
        %952 = vmatprep.subr.bf16.mxu0 0
        %953 = vmatpush1.bf16.xpose.msra.mxu0 0
        %954 = vmatprep.subr.bf16.mxu0 0
        %955 = vmatpush1.bf16.xpose.msra.mxu0 0
        %956 = vmatprep.subr.bf16.mxu0 0
        %957 = vmatpush1.bf16.xpose.msra.mxu0 0
        %958 = vmatprep.subr.bf16.mxu0 0
        %959 = vmatpush1.bf16.xpose.msra.mxu0 0
        %960 = vmatprep.subr.bf16.mxu0 0
        %961 = vmatpush1.bf16.xpose.msra.mxu0 0
        %962 = vmatprep.subr.bf16.mxu0 0
        %963 = vmatpush1.bf16.xpose.msra.mxu0 0
        %964 = vmatprep.subr.bf16.mxu0 0
        %965 = vmatpush1.bf16.xpose.msra.mxu0 0
        %966 = vmatprep.mubr.bf16.mxu0 0
        %967 = vmatmul.mubr.bf16.gmra.mrb[0].mxu0 %v926
        %v968 = vpop.f32.mrb[0].mxu0
        %v969 = vadd.f32 0.0, %v968
        %v970 = vpop.f32.mrb[0].mxu0
        %v971 = vpop.f32.mrb[0].mxu0
        %v972 = vpop.f32.mrb[0].mxu0
        %973 = vdwg.mxu0
        %vm974 = vcmask 195584
        %v975 = vsel %vm974, %v969, -inf
        %976 = vmax.xlane.f32.xlu0 %v975
        %v977 = vpop.xlane.xlu0 %976
        %v978 = vsub.f32 %v969, %v977
        %v979 = vmul.f32 %v978, 1.442695
        %v980 = vpow.pop %v979
        %v981 = vsel %vm974, %v980, 0.0
        %982 = vadd.xlane.f32.xlu0 %v981
        %v983 = vpop.xlane.xlu0 %982
        %v984 = vrcp.pop %v983
        %v985 = vpack.c.bf16 %v980, %v980
        %v989 = vunpack.c.l.b16 %v913
        %v990 = vunpack.c.l.b16 %v914
        %v991 = vunpack.c.l.b16 %v915
        %v992 = vpack.c.b16 %v990, %v989
        %v993 = vpack.c.b16 %v991, %v991
        %v996 = vsel %vm974, %v985, 0
        %vm998 = vcmask 1043456
        %v1000 = vsel %vm998, %v993, 0
        %1002 = vmatprep.subr.bf16.mxu0 0
        %1003 = vmatpush1.bf16.msra.mxu0 %v992
        %1004 = vmatprep.subr.bf16.mxu0 0
        %1005 = vmatpush1.bf16.msra.mxu0 %v1000
        %1006 = vmatprep.subr.bf16.mxu0 0
        %1007 = vmatpush1.bf16.msra.mxu0 0
        %1008 = vmatprep.subr.bf16.mxu0 0
        %1009 = vmatpush1.bf16.msra.mxu0 0
        %1010 = vmatprep.subr.bf16.mxu0 0
        %1011 = vmatpush1.bf16.msra.mxu0 0
        %1012 = vmatprep.subr.bf16.mxu0 0
        %1013 = vmatpush1.bf16.msra.mxu0 0
        %1014 = vmatprep.subr.bf16.mxu0 0
        %1015 = vmatpush1.bf16.msra.mxu0 0
        %1016 = vmatprep.subr.bf16.mxu0 0
        %1017 = vmatpush1.bf16.msra.mxu0 0
        %1018 = vmatprep.subr.bf16.mxu0 0
        %1019 = vmatpush1.bf16.msra.mxu0 0
        %1020 = vmatprep.subr.bf16.mxu0 0
        %1021 = vmatpush1.bf16.msra.mxu0 0
        %1022 = vmatprep.subr.bf16.mxu0 0
        %1023 = vmatpush1.bf16.msra.mxu0 0
        %1024 = vmatprep.subr.bf16.mxu0 0
        %1025 = vmatpush1.bf16.msra.mxu0 0
        %1026 = vmatprep.subr.bf16.mxu0 0
        %1027 = vmatpush1.bf16.msra.mxu0 0
        %1028 = vmatprep.subr.bf16.mxu0 0
        %1029 = vmatpush1.bf16.msra.mxu0 0
        %1030 = vmatprep.subr.bf16.mxu0 0
        %1031 = vmatpush1.bf16.msra.mxu0 0
        %1032 = vmatprep.subr.bf16.mxu0 0
        %1033 = vmatpush1.bf16.msra.mxu0 0
        %1034 = vmatprep.mubr.bf16.mxu0 0
        %1035 = vmatmul.mubr.bf16.gmra.mrb[0].mxu0 %v996
        %v1036 = vpop.f32.mrb[0].mxu0
        %v1037 = vadd.f32 0.0, %v1036
        %v1038 = vpop.f32.mrb[0].mxu0
        %v1039 = vpop.f32.mrb[0].mxu0
        %v1040 = vpop.f32.mrb[0].mxu0
        %1041 = vdwg.mxu0
        %v1042 = vmul.f32 %v1037, %v984
        %v1043 = vpack.c.bf16 %v1042, %v1042
        %vm1044 = vcmask 60416
        %1045 = vst.msk [vmem:[#allocation4] sm:$0xf] %vm1044, %v1043
        %1047 = vrot.lane.b32.xlu0 %v909, 120
        %v1048 = vpop.permute.xlu0 %1047
        %1049 = vrot.lane.b32.xlu0 %v922, 120
        %v1050 = vpop.permute.xlu0 %1049
        %1051 = vrot.lane.b32.xlu0 %v923, 120
        %v1052 = vpop.permute.xlu0 %1051
        %v1054 = vsel %vm924, %v1048, 0
        %v1057 = vsel %vm924, %v1050, 0
        %v1060 = vsel %vm924, %v1052, 0
        %1062 = vmatprep.subr.bf16.mxu0 0
        %1063 = vmatpush1.bf16.xpose.msra.mxu0 %v1057
        %1064 = vmatprep.subr.bf16.mxu0 0
        %1065 = vmatpush1.bf16.xpose.msra.mxu0 %v1060
        %1066 = vmatprep.subr.bf16.mxu0 0
        %1067 = vmatpush1.bf16.xpose.msra.mxu0 0
        %1068 = vmatprep.subr.bf16.mxu0 0
        %1069 = vmatpush1.bf16.xpose.msra.mxu0 0
        %1070 = vmatprep.subr.bf16.mxu0 0
        %1071 = vmatpush1.bf16.xpose.msra.mxu0 0
        %1072 = vmatprep.subr.bf16.mxu0 0
        %1073 = vmatpush1.bf16.xpose.msra.mxu0 0
        %1074 = vmatprep.subr.bf16.mxu0 0
        %1075 = vmatpush1.bf16.xpose.msra.mxu0 0
        %1076 = vmatprep.subr.bf16.mxu0 0
        %1077 = vmatpush1.bf16.xpose.msra.mxu0 0
        %1078 = vmatprep.subr.bf16.mxu0 0
        %1079 = vmatpush1.bf16.xpose.msra.mxu0 0
        %1080 = vmatprep.subr.bf16.mxu0 0
        %1081 = vmatpush1.bf16.xpose.msra.mxu0 0
        %1082 = vmatprep.subr.bf16.mxu0 0
        %1083 = vmatpush1.bf16.xpose.msra.mxu0 0
        %1084 = vmatprep.subr.bf16.mxu0 0
        %1085 = vmatpush1.bf16.xpose.msra.mxu0 0
        %1086 = vmatprep.subr.bf16.mxu0 0
        %1087 = vmatpush1.bf16.xpose.msra.mxu0 0
        %1088 = vmatprep.subr.bf16.mxu0 0
        %1089 = vmatpush1.bf16.xpose.msra.mxu0 0
        %1090 = vmatprep.subr.bf16.mxu0 0
        %1091 = vmatpush1.bf16.xpose.msra.mxu0 0
        %1092 = vmatprep.subr.bf16.mxu0 0
        %1093 = vmatpush1.bf16.xpose.msra.mxu0 0
        %1094 = vmatprep.mubr.bf16.mxu0 0
        %1095 = vmatmul.mubr.bf16.gmra.mrb[0].mxu0 %v1054
        %v1096 = vpop.f32.mrb[0].mxu0
        %v1097 = vadd.f32 0.0, %v1096
        %v1098 = vpop.f32.mrb[0].mxu0
        %v1099 = vpop.f32.mrb[0].mxu0
        %v1100 = vpop.f32.mrb[0].mxu0
        %1101 = vdwg.mxu0
        %v1102 = vsel %vm974, %v1097, -inf
        %1103 = vmax.xlane.f32.xlu0 %v1102
        %v1104 = vpop.xlane.xlu0 %1103
        %v1105 = vsub.f32 %v1097, %v1104
        %v1106 = vmul.f32 %v1105, 1.442695
        %v1107 = vpow.pop %v1106
        %v1108 = vsel %vm974, %v1107, 0.0
        %1109 = vadd.xlane.f32.xlu0 %v1108
        %v1110 = vpop.xlane.xlu0 %1109
        %v1111 = vrcp.pop %v1110
        %v1112 = vpack.c.bf16 %v1107, %v1107
        %1113 = vrot.lane.b32.xlu0 %v992, 120
        %v1114 = vpop.permute.xlu0 %1113
        %1115 = vrot.lane.b32.xlu0 %v993, 120
        %v1116 = vpop.permute.xlu0 %1115
        %v1119 = vsel %vm974, %v1112, 0
        %v1122 = vsel %vm998, %v1116, 0
        %1124 = vmatprep.subr.bf16.mxu0 0
        %1125 = vmatpush1.bf16.msra.mxu0 %v1114
        %1126 = vmatprep.subr.bf16.mxu0 0
        %1127 = vmatpush1.bf16.msra.mxu0 %v1122
        %1128 = vmatprep.subr.bf16.mxu0 0
        %1129 = vmatpush1.bf16.msra.mxu0 0
        %1130 = vmatprep.subr.bf16.mxu0 0
        %1131 = vmatpush1.bf16.msra.mxu0 0
        %1132 = vmatprep.subr.bf16.mxu0 0
        %1133 = vmatpush1.bf16.msra.mxu0 0
        %1134 = vmatprep.subr.bf16.mxu0 0
        %1135 = vmatpush1.bf16.msra.mxu0 0
        %1136 = vmatprep.subr.bf16.mxu0 0
        %1137 = vmatpush1.bf16.msra.mxu0 0
        %1138 = vmatprep.subr.bf16.mxu0 0
        %1139 = vmatpush1.bf16.msra.mxu0 0
        %1140 = vmatprep.subr.bf16.mxu0 0
        %1141 = vmatpush1.bf16.msra.mxu0 0
        %1142 = vmatprep.subr.bf16.mxu0 0
        %1143 = vmatpush1.bf16.msra.mxu0 0
        %1144 = vmatprep.subr.bf16.mxu0 0
        %1145 = vmatpush1.bf16.msra.mxu0 0
        %1146 = vmatprep.subr.bf16.mxu0 0
        %1147 = vmatpush1.bf16.msra.mxu0 0
        %1148 = vmatprep.subr.bf16.mxu0 0
        %1149 = vmatpush1.bf16.msra.mxu0 0
        %1150 = vmatprep.subr.bf16.mxu0 0
        %1151 = vmatpush1.bf16.msra.mxu0 0
        %1152 = vmatprep.subr.bf16.mxu0 0
        %1153 = vmatpush1.bf16.msra.mxu0 0
        %1154 = vmatprep.subr.bf16.mxu0 0
        %1155 = vmatpush1.bf16.msra.mxu0 0
        %1156 = vmatprep.mubr.bf16.mxu0 0
        %1157 = vmatmul.mubr.bf16.gmra.mrb[0].mxu0 %v1119
        %v1158 = vpop.f32.mrb[0].mxu0
        %v1159 = vadd.f32 0.0, %v1158
        %v1160 = vpop.f32.mrb[0].mxu0
        %v1161 = vpop.f32.mrb[0].mxu0
        %v1162 = vpop.f32.mrb[0].mxu0
        %1163 = vdwg.mxu0
        %v1164 = vmul.f32 %v1159, %v1111
        %v1165 = vpack.c.bf16 %v1164, %v1164
        %v1167 = vunpack.c.l.b16 %v1165
        %v1168 = vpack.c.b16 %v1167, %v1167
        %1169 = vrot.lane.b32.xlu0 %v1168, 8
        %v1170 = vpop.permute.xlu0 %1169
        %vm1172 = vcmask 126016
        %1173 = vst.msk [vmem:[#allocation4] sm:$0xf] %vm1172, %v1170
        %1174 = vrot.lane.b32.xlu0 %v909, 112
        %v1175 = vpop.permute.xlu0 %1174
        %1176 = vrot.lane.b32.xlu0 %v922, 112
        %v1177 = vpop.permute.xlu0 %1176
        %1178 = vrot.lane.b32.xlu0 %v923, 112
        %v1179 = vpop.permute.xlu0 %1178
        %v1181 = vsel %vm924, %v1175, 0
        %v1184 = vsel %vm924, %v1177, 0
        %v1187 = vsel %vm924, %v1179, 0
        %1189 = vmatprep.subr.bf16.mxu0 0
        %1190 = vmatpush1.bf16.xpose.msra.mxu0 %v1184
        %1191 = vmatprep.subr.bf16.mxu0 0
        %1192 = vmatpush1.bf16.xpose.msra.mxu0 %v1187
        %1193 = vmatprep.subr.bf16.mxu0 0
        %1194 = vmatpush1.bf16.xpose.msra.mxu0 0
        %1195 = vmatprep.subr.bf16.mxu0 0
        %1196 = vmatpush1.bf16.xpose.msra.mxu0 0
        %1197 = vmatprep.subr.bf16.mxu0 0
        %1198 = vmatpush1.bf16.xpose.msra.mxu0 0
        %1199 = vmatprep.subr.bf16.mxu0 0
        %1200 = vmatpush1.bf16.xpose.msra.mxu0 0
        %1201 = vmatprep.subr.bf16.mxu0 0
        %1202 = vmatpush1.bf16.xpose.msra.mxu0 0
        %1203 = vmatprep.subr.bf16.mxu0 0
        %1204 = vmatpush1.bf16.xpose.msra.mxu0 0
        %1205 = vmatprep.subr.bf16.mxu0 0
        %1206 = vmatpush1.bf16.xpose.msra.mxu0 0
        %1207 = vmatprep.subr.bf16.mxu0 0
        %1208 = vmatpush1.bf16.xpose.msra.mxu0 0
        %1209 = vmatprep.subr.bf16.mxu0 0
        %1210 = vmatpush1.bf16.xpose.msra.mxu0 0
        %1211 = vmatprep.subr.bf16.mxu0 0
        %1212 = vmatpush1.bf16.xpose.msra.mxu0 0
        %1213 = vmatprep.subr.bf16.mxu0 0
        %1214 = vmatpush1.bf16.xpose.msra.mxu0 0
        %1215 = vmatprep.subr.bf16.mxu0 0
        %1216 = vmatpush1.bf16.xpose.msra.mxu0 0
        %1217 = vmatprep.subr.bf16.mxu0 0
        %1218 = vmatpush1.bf16.xpose.msra.mxu0 0
        %1219 = vmatprep.subr.bf16.mxu0 0
        %1220 = vmatpush1.bf16.xpose.msra.mxu0 0
        %1221 = vmatprep.mubr.bf16.mxu0 0
        %1222 = vmatmul.mubr.bf16.gmra.mrb[0].mxu0 %v1181
        %v1223 = vpop.f32.mrb[0].mxu0
        %v1224 = vadd.f32 0.0, %v1223
        %v1225 = vpop.f32.mrb[0].mxu0
        %v1226 = vpop.f32.mrb[0].mxu0
        %v1227 = vpop.f32.mrb[0].mxu0
        %1228 = vdwg.mxu0
        %v1229 = vsel %vm974, %v1224, -inf
        %1230 = vmax.xlane.f32.xlu0 %v1229
        %v1231 = vpop.xlane.xlu0 %1230
        %v1232 = vsub.f32 %v1224, %v1231
        %v1233 = vmul.f32 %v1232, 1.442695
        %v1234 = vpow.pop %v1233
        %v1235 = vsel %vm974, %v1234, 0.0
        %1236 = vadd.xlane.f32.xlu0 %v1235
        %v1237 = vpop.xlane.xlu0 %1236
        %v1238 = vrcp.pop %v1237
        %v1239 = vpack.c.bf16 %v1234, %v1234
        %1240 = vrot.lane.b32.xlu0 %v992, 112
        %v1241 = vpop.permute.xlu0 %1240
        %1242 = vrot.lane.b32.xlu0 %v993, 112
        %v1243 = vpop.permute.xlu0 %1242
        %v1246 = vsel %vm974, %v1239, 0
        %v1249 = vsel %vm998, %v1243, 0
        %1251 = vmatprep.subr.bf16.mxu0 0
        %1252 = vmatpush1.bf16.msra.mxu0 %v1241
        %1253 = vmatprep.subr.bf16.mxu0 0
        %1254 = vmatpush1.bf16.msra.mxu0 %v1249
        %1255 = vmatprep.subr.bf16.mxu0 0
        %1256 = vmatpush1.bf16.msra.mxu0 0
        %1257 = vmatprep.subr.bf16.mxu0 0
        %1258 = vmatpush1.bf16.msra.mxu0 0
        %1259 = vmatprep.subr.bf16.mxu0 0
        %1260 = vmatpush1.bf16.msra.mxu0 0
        %1261 = vmatprep.subr.bf16.mxu0 0
        %1262 = vmatpush1.bf16.msra.mxu0 0
        %1263 = vmatprep.subr.bf16.mxu0 0
        %1264 = vmatpush1.bf16.msra.mxu0 0
        %1265 = vmatprep.subr.bf16.mxu0 0
        %1266 = vmatpush1.bf16.msra.mxu0 0
        %1267 = vmatprep.subr.bf16.mxu0 0
        %1268 = vmatpush1.bf16.msra.mxu0 0
        %1269 = vmatprep.subr.bf16.mxu0 0
        %1270 = vmatpush1.bf16.msra.mxu0 0
        %1271 = vmatprep.subr.bf16.mxu0 0
        %1272 = vmatpush1.bf16.msra.mxu0 0
        %1273 = vmatprep.subr.bf16.mxu0 0
        %1274 = vmatpush1.bf16.msra.mxu0 0
        %1275 = vmatprep.subr.bf16.mxu0 0
        %1276 = vmatpush1.bf16.msra.mxu0 0
        %1277 = vmatprep.subr.bf16.mxu0 0
        %1278 = vmatpush1.bf16.msra.mxu0 0
        %1279 = vmatprep.subr.bf16.mxu0 0
        %1280 = vmatpush1.bf16.msra.mxu0 0
        %1281 = vmatprep.subr.bf16.mxu0 0
        %1282 = vmatpush1.bf16.msra.mxu0 0
        %1283 = vmatprep.mubr.bf16.mxu0 0
        %1284 = vmatmul.mubr.bf16.gmra.mrb[0].mxu0 %v1246
        %v1285 = vpop.f32.mrb[0].mxu0
        %v1286 = vadd.f32 0.0, %v1285
        %v1287 = vpop.f32.mrb[0].mxu0
        %v1288 = vpop.f32.mrb[0].mxu0
        %v1289 = vpop.f32.mrb[0].mxu0
        %1290 = vdwg.mxu0
        %v1291 = vmul.f32 %v1286, %v1238
        %v1292 = vpack.c.bf16 %v1291, %v1291
        %v1294 = vunpack.c.l.b16 %v1292
        %v1295 = vpack.c.b16 %v1294, %v1294
        %1296 = vrot.lane.b32.xlu0 %v1295, 16
        %v1297 = vpop.permute.xlu0 %1296
        %vm1299 = vcmask 191616
        %1300 = vst.msk [vmem:[#allocation4] sm:$0xf] %vm1299, %v1297
        %1301 = vrot.lane.b32.xlu0 %v909, 104
        %v1302 = vpop.permute.xlu0 %1301
        %1303 = vrot.lane.b32.xlu0 %v922, 104
        %v1304 = vpop.permute.xlu0 %1303
        %1305 = vrot.lane.b32.xlu0 %v923, 104
        %v1306 = vpop.permute.xlu0 %1305
        %v1308 = vsel %vm924, %v1302, 0
        %v1311 = vsel %vm924, %v1304, 0
        %v1314 = vsel %vm924, %v1306, 0
        %1316 = vmatprep.subr.bf16.mxu0 0
        %1317 = vmatpush1.bf16.xpose.msra.mxu0 %v1311
        %1318 = vmatprep.subr.bf16.mxu0 0
        %1319 = vmatpush1.bf16.xpose.msra.mxu0 %v1314
        %1320 = vmatprep.subr.bf16.mxu0 0
        %1321 = vmatpush1.bf16.xpose.msra.mxu0 0
        %1322 = vmatprep.subr.bf16.mxu0 0
        %1323 = vmatpush1.bf16.xpose.msra.mxu0 0
        %1324 = vmatprep.subr.bf16.mxu0 0
        %1325 = vmatpush1.bf16.xpose.msra.mxu0 0
        %1326 = vmatprep.subr.bf16.mxu0 0
        %1327 = vmatpush1.bf16.xpose.msra.mxu0 0
        %1328 = vmatprep.subr.bf16.mxu0 0
        %1329 = vmatpush1.bf16.xpose.msra.mxu0 0
        %1330 = vmatprep.subr.bf16.mxu0 0
        %1331 = vmatpush1.bf16.xpose.msra.mxu0 0
        %1332 = vmatprep.subr.bf16.mxu0 0
        %1333 = vmatpush1.bf16.xpose.msra.mxu0 0
        %1334 = vmatprep.subr.bf16.mxu0 0
        %1335 = vmatpush1.bf16.xpose.msra.mxu0 0
        %1336 = vmatprep.subr.bf16.mxu0 0
        %1337 = vmatpush1.bf16.xpose.msra.mxu0 0
        %1338 = vmatprep.subr.bf16.mxu0 0
        %1339 = vmatpush1.bf16.xpose.msra.mxu0 0
        %1340 = vmatprep.subr.bf16.mxu0 0
        %1341 = vmatpush1.bf16.xpose.msra.mxu0 0
        %1342 = vmatprep.subr.bf16.mxu0 0
        %1343 = vmatpush1.bf16.xpose.msra.mxu0 0
        %1344 = vmatprep.subr.bf16.mxu0 0
        %1345 = vmatpush1.bf16.xpose.msra.mxu0 0
        %1346 = vmatprep.subr.bf16.mxu0 0
        %1347 = vmatpush1.bf16.xpose.msra.mxu0 0
        %1348 = vmatprep.mubr.bf16.mxu0 0
        %1349 = vmatmul.mubr.bf16.gmra.mrb[0].mxu0 %v1308
        %v1350 = vpop.f32.mrb[0].mxu0
        %v1351 = vadd.f32 0.0, %v1350
        %v1352 = vpop.f32.mrb[0].mxu0
        %v1353 = vpop.f32.mrb[0].mxu0
        %v1354 = vpop.f32.mrb[0].mxu0
        %1355 = vdwg.mxu0
        %v1356 = vsel %vm974, %v1351, -inf
        %1357 = vmax.xlane.f32.xlu0 %v1356
        %v1358 = vpop.xlane.xlu0 %1357
        %v1359 = vsub.f32 %v1351, %v1358
        %v1360 = vmul.f32 %v1359, 1.442695
        %v1361 = vpow.pop %v1360
        %v1362 = vsel %vm974, %v1361, 0.0
        %1363 = vadd.xlane.f32.xlu0 %v1362
        %v1364 = vpop.xlane.xlu0 %1363
        %v1365 = vrcp.pop %v1364
        %v1366 = vpack.c.bf16 %v1361, %v1361
        %1367 = vrot.lane.b32.xlu0 %v992, 104
        %v1368 = vpop.permute.xlu0 %1367
        %1369 = vrot.lane.b32.xlu0 %v993, 104
        %v1370 = vpop.permute.xlu0 %1369
        %v1373 = vsel %vm974, %v1366, 0
        %v1376 = vsel %vm998, %v1370, 0
        %1378 = vmatprep.subr.bf16.mxu0 0
        %1379 = vmatpush1.bf16.msra.mxu0 %v1368
        %1380 = vmatprep.subr.bf16.mxu0 0
        %1381 = vmatpush1.bf16.msra.mxu0 %v1376
        %1382 = vmatprep.subr.bf16.mxu0 0
        %1383 = vmatpush1.bf16.msra.mxu0 0
        %1384 = vmatprep.subr.bf16.mxu0 0
        %1385 = vmatpush1.bf16.msra.mxu0 0
        %1386 = vmatprep.subr.bf16.mxu0 0
        %1387 = vmatpush1.bf16.msra.mxu0 0
        %1388 = vmatprep.subr.bf16.mxu0 0
        %1389 = vmatpush1.bf16.msra.mxu0 0
        %1390 = vmatprep.subr.bf16.mxu0 0
        %1391 = vmatpush1.bf16.msra.mxu0 0
        %1392 = vmatprep.subr.bf16.mxu0 0
        %1393 = vmatpush1.bf16.msra.mxu0 0
        %1394 = vmatprep.subr.bf16.mxu0 0
        %1395 = vmatpush1.bf16.msra.mxu0 0
        %1396 = vmatprep.subr.bf16.mxu0 0
        %1397 = vmatpush1.bf16.msra.mxu0 0
        %1398 = vmatprep.subr.bf16.mxu0 0
        %1399 = vmatpush1.bf16.msra.mxu0 0
        %1400 = vmatprep.subr.bf16.mxu0 0
        %1401 = vmatpush1.bf16.msra.mxu0 0
        %1402 = vmatprep.subr.bf16.mxu0 0
        %1403 = vmatpush1.bf16.msra.mxu0 0
        %1404 = vmatprep.subr.bf16.mxu0 0
        %1405 = vmatpush1.bf16.msra.mxu0 0
        %1406 = vmatprep.subr.bf16.mxu0 0
        %1407 = vmatpush1.bf16.msra.mxu0 0
        %1408 = vmatprep.subr.bf16.mxu0 0
        %1409 = vmatpush1.bf16.msra.mxu0 0
        %1410 = vmatprep.mubr.bf16.mxu0 0
        %1411 = vmatmul.mubr.bf16.gmra.mrb[0].mxu0 %v1373
        %v1412 = vpop.f32.mrb[0].mxu0
        %v1413 = vadd.f32 0.0, %v1412
        %v1414 = vpop.f32.mrb[0].mxu0
        %v1415 = vpop.f32.mrb[0].mxu0
        %v1416 = vpop.f32.mrb[0].mxu0
        %1417 = vdwg.mxu0
        %v1418 = vmul.f32 %v1413, %v1365
        %v1419 = vpack.c.bf16 %v1418, %v1418
        %v1421 = vunpack.c.l.b16 %v1419
        %v1422 = vpack.c.b16 %v1421, %v1421
        %1423 = vrot.lane.b32.xlu0 %v1422, 24
        %v1424 = vpop.permute.xlu0 %1423
        %vm1426 = vcmask 257216
        %1427 = vst.msk [vmem:[#allocation4] sm:$0xf] %vm1426, %v1424
        %v1428 = vld [vmem:[#allocation4] sm:$0xf]
        %v1429 = vld [vmem:[#allocation8] sm:$0xf]
        %v1430 = vld [vmem:[#allocation8 + $0x4] sm:$0xf]
        %v1431 = vld [vmem:[#allocation8 + $0x8] sm:$0xf]
        %v1432 = vld [vmem:[#allocation8 + $0xc] sm:$0xf]
        %v1433 = vld [vmem:[#allocation10] sm:$0x1]
        %v1435 = vlaneseq
        %v1436 = vshrl.u32 %v1435, 7
        %v1437 = vsub.s32 0, %v1436
        %v1438 = vrot.slane %v1433, %v1437
        %v1444 = vunpack.c.l.b16 %v1429
        %v1445 = vunpack.c.l.b16 %v1430
        %v1446 = vunpack.c.l.b16 %v1431
        %v1447 = vunpack.c.l.b16 %v1432
        %v1448 = vpack.c.b16 %v1445, %v1444
        %v1449 = vpack.c.b16 %v1447, %v1446
        %v1453 = vsel %vm820, %v1428, 0
        %1455 = vmatprep.subr.bf16.mxu0 0
        %1456 = vmatpush1.bf16.msra.mxu0 %v1448
        %1457 = vmatprep.subr.bf16.mxu0 0
        %1458 = vmatpush1.bf16.msra.mxu0 %v1449
        %1459 = vmatprep.subr.bf16.mxu0 0
        %1460 = vmatpush1.bf16.msra.mxu0 0
        %1461 = vmatprep.subr.bf16.mxu0 0
        %1462 = vmatpush1.bf16.msra.mxu0 0
        %1463 = vmatprep.subr.bf16.mxu0 0
        %1464 = vmatpush1.bf16.msra.mxu0 0
        %1465 = vmatprep.subr.bf16.mxu0 0
        %1466 = vmatpush1.bf16.msra.mxu0 0
        %1467 = vmatprep.subr.bf16.mxu0 0
        %1468 = vmatpush1.bf16.msra.mxu0 0
        %1469 = vmatprep.subr.bf16.mxu0 0
        %1470 = vmatpush1.bf16.msra.mxu0 0
        %1471 = vmatprep.subr.bf16.mxu0 0
        %1472 = vmatpush1.bf16.msra.mxu0 0
        %1473 = vmatprep.subr.bf16.mxu0 0
        %1474 = vmatpush1.bf16.msra.mxu0 0
        %1475 = vmatprep.subr.bf16.mxu0 0
        %1476 = vmatpush1.bf16.msra.mxu0 0
        %1477 = vmatprep.subr.bf16.mxu0 0
        %1478 = vmatpush1.bf16.msra.mxu0 0
        %1479 = vmatprep.subr.bf16.mxu0 0
        %1480 = vmatpush1.bf16.msra.mxu0 0
        %1481 = vmatprep.subr.bf16.mxu0 0
        %1482 = vmatpush1.bf16.msra.mxu0 0
        %1483 = vmatprep.subr.bf16.mxu0 0
        %1484 = vmatpush1.bf16.msra.mxu0 0
        %1485 = vmatprep.subr.bf16.mxu0 0
        %1486 = vmatpush1.bf16.msra.mxu0 0
        %1487 = vmatprep.mubr.bf16.mxu0 0
        %1488 = vmatmul.mubr.bf16.gmra.mrb[0].mxu0 %v1453
        %v1489 = vpop.f32.mrb[0].mxu0
        %v1490 = vadd.f32 %v1438, %v1489
        %v1491 = vpop.f32.mrb[0].mxu0
        %v1492 = vpop.f32.mrb[0].mxu0
        %v1493 = vpop.f32.mrb[0].mxu0
        %1494 = vdwg.mxu0
        %v1495 = vadd.f32 %v819, %v1490
        %v1496 = vld [vmem:[#allocation11] sm:$0x1]
        %v1497 = vld [vmem:[%s10] sm:$0x1]
        %v1498 = vsel %vm820, %v1495, 0.0
        %1499 = vadd.xlane.f32.xlu0 %v1498
        %v1500 = vpop.xlane.xlu0 %1499
        %v1501 = vmul.f32 %v1500, %v824
        %v1502 = vsub.f32 %v1495, %v1501
        %v1503 = vmul.f32 %v1502, %v1502
        %v1504 = vsel %vm820, %v1503, 0.0
        %1505 = vadd.xlane.f32.xlu0 %v1504
        %v1506 = vpop.xlane.xlu0 %1505
        %v1507 = vmul.f32 %v1506, %v824
        %v1508 = vadd.f32 %v1507, 1e-05
        %v1509 = vrsqrt.pop %v1508
        %v1510 = vmul.f32 %v1502, %v1509
        %v1512 = vlaneseq
        %v1513 = vshrl.u32 %v1512, 7
        %v1514 = vsub.s32 0, %v1513
        %v1515 = vrot.slane %v1496, %v1514
        %v1517 = vmul.f32 %v1510, %v1515
        %v1519 = vlaneseq
        %v1520 = vshrl.u32 %v1519, 7
        %v1521 = vsub.s32 0, %v1520
        %v1522 = vrot.slane %v1497, %v1521
        %v1524 = vadd.f32 %v1517, %v1522
        %v1525 = vpack.c.bf16 %v1524, %v1524
        %v1526 = vld [vmem:[%s11] sm:$0xf]
        %v1527 = vld [vmem:[%s11 + $0x4] sm:$0xf]
        %v1528 = vld [vmem:[%s11 + $0x8] sm:$0xf]
        %v1529 = vld [vmem:[%s11 + $0xc] sm:$0xf]
        %v1530 = vld [vmem:[%s12] sm:$0x1]
        %v1532 = vlaneseq
        %v1533 = vshrl.u32 %v1532, 7
        %v1534 = vsub.s32 0, %v1533
        %v1535 = vrot.slane %v1530, %v1534
        %v1541 = vunpack.c.l.b16 %v1526
        %v1542 = vunpack.c.l.b16 %v1527
        %v1543 = vunpack.c.l.b16 %v1528
        %v1544 = vunpack.c.l.b16 %v1529
        %v1545 = vpack.c.b16 %v1542, %v1541
        %v1546 = vpack.c.b16 %v1544, %v1543
        %v1550 = vsel %vm820, %v1525, 0
        %1552 = vmatprep.subr.bf16.mxu0 0
        %1553 = vmatpush1.bf16.msra.mxu0 %v1545
        %1554 = vmatprep.subr.bf16.mxu0 0
        %1555 = vmatpush1.bf16.msra.mxu0 %v1546
        %1556 = vmatprep.subr.bf16.mxu0 0
        %1557 = vmatpush1.bf16.msra.mxu0 0
        %1558 = vmatprep.subr.bf16.mxu0 0
        %1559 = vmatpush1.bf16.msra.mxu0 0
        %1560 = vmatprep.subr.bf16.mxu0 0
        %1561 = vmatpush1.bf16.msra.mxu0 0
        %1562 = vmatprep.subr.bf16.mxu0 0
        %1563 = vmatpush1.bf16.msra.mxu0 0
        %1564 = vmatprep.subr.bf16.mxu0 0
        %1565 = vmatpush1.bf16.msra.mxu0 0
        %1566 = vmatprep.subr.bf16.mxu0 0
        %1567 = vmatpush1.bf16.msra.mxu0 0
        %1568 = vmatprep.subr.bf16.mxu0 0
        %1569 = vmatpush1.bf16.msra.mxu0 0
        %1570 = vmatprep.subr.bf16.mxu0 0
        %1571 = vmatpush1.bf16.msra.mxu0 0
        %1572 = vmatprep.subr.bf16.mxu0 0
        %1573 = vmatpush1.bf16.msra.mxu0 0
        %1574 = vmatprep.subr.bf16.mxu0 0
        %1575 = vmatpush1.bf16.msra.mxu0 0
        %1576 = vmatprep.subr.bf16.mxu0 0
        %1577 = vmatpush1.bf16.msra.mxu0 0
        %1578 = vmatprep.subr.bf16.mxu0 0
        %1579 = vmatpush1.bf16.msra.mxu0 0
        %1580 = vmatprep.subr.bf16.mxu0 0
        %1581 = vmatpush1.bf16.msra.mxu0 0
        %1582 = vmatprep.subr.bf16.mxu0 0
        %1583 = vmatpush1.bf16.msra.mxu0 0
        %1584 = vmatprep.mubr.bf16.mxu0 0
        %1585 = vmatmul.mubr.bf16.gmra.mrb[0].mxu0 %v1550
        %v1586 = vpop.f32.mrb[0].mxu0
        %v1587 = vadd.f32 %v1535, %v1586
        %v1588 = vpop.f32.mrb[0].mxu0
        %v1589 = vpop.f32.mrb[0].mxu0
        %v1590 = vpop.f32.mrb[0].mxu0
        %1591 = vdwg.mxu0
        %v1592 = vmax.f32 %v1587, 0.0
        %v1593 = vpack.c.bf16 %v1592, %v1592
        %v1594 = vld [vmem:[%s13] sm:$0xf]
        %v1595 = vld [vmem:[%s13 + $0x4] sm:$0xf]
        %v1596 = vld [vmem:[%s13 + $0x8] sm:$0xf]
        %v1597 = vld [vmem:[%s13 + $0xc] sm:$0xf]
        %v1598 = vld [vmem:[%s13 + $0x10] sm:$0xf]
        %v1599 = vld [vmem:[%s13 + $0x14] sm:$0xf]
        %v1600 = vld [vmem:[%s13 + $0x18] sm:$0xf]
        %v1601 = vld [vmem:[%s13 + $0x1c] sm:$0xf]
        %v1602 = vld [vmem:[%s13 + $0x20] sm:$0xf]
        %v1603 = vld [vmem:[%s13 + $0x24] sm:$0xf]
        %v1604 = vld [vmem:[%s13 + $0x28] sm:$0xf]
        %v1605 = vld [vmem:[%s13 + $0x2c] sm:$0xf]
        %v1606 = vld [vmem:[%s13 + $0x30] sm:$0xf]
        %v1607 = vld [vmem:[%s13 + $0x34] sm:$0xf]
        %v1608 = vld [vmem:[%s13 + $0x38] sm:$0xf]
        %v1609 = vld [vmem:[%s13 + $0x3c] sm:$0xf]
        %v1610 = vld [vmem:[%s14] sm:$0x1]
        %v1612 = vlaneseq
        %v1613 = vshrl.u32 %v1612, 7
        %v1614 = vsub.s32 0, %v1613
        %v1615 = vrot.slane %v1610, %v1614
        %v1633 = vunpack.c.l.b16 %v1594
        %v1634 = vunpack.c.l.b16 %v1595
        %v1635 = vunpack.c.l.b16 %v1596
        %v1636 = vunpack.c.l.b16 %v1597
        %v1637 = vunpack.c.l.b16 %v1598
        %v1638 = vunpack.c.l.b16 %v1599
        %v1639 = vunpack.c.l.b16 %v1600
        %v1640 = vunpack.c.l.b16 %v1601
        %v1641 = vunpack.c.l.b16 %v1602
        %v1642 = vunpack.c.l.b16 %v1603
        %v1643 = vunpack.c.l.b16 %v1604
        %v1644 = vunpack.c.l.b16 %v1605
        %v1645 = vunpack.c.l.b16 %v1606
        %v1646 = vunpack.c.l.b16 %v1607
        %v1647 = vunpack.c.l.b16 %v1608
        %v1648 = vunpack.c.l.b16 %v1609
        %v1649 = vpack.c.b16 %v1634, %v1633
        %v1650 = vpack.c.b16 %v1636, %v1635
        %v1651 = vpack.c.b16 %v1638, %v1637
        %v1652 = vpack.c.b16 %v1640, %v1639
        %v1653 = vpack.c.b16 %v1642, %v1641
        %v1654 = vpack.c.b16 %v1644, %v1643
        %v1655 = vpack.c.b16 %v1646, %v1645
        %v1656 = vpack.c.b16 %v1648, %v1647
        %1665 = vmatprep.subr.bf16.mxu0 0
        %1666 = vmatpush1.bf16.msra.mxu0 %v1649
        %1667 = vmatprep.subr.bf16.mxu0 0
        %1668 = vmatpush1.bf16.msra.mxu0 %v1650
        %1669 = vmatprep.subr.bf16.mxu0 0
        %1670 = vmatpush1.bf16.msra.mxu0 %v1651
        %1671 = vmatprep.subr.bf16.mxu0 0
        %1672 = vmatpush1.bf16.msra.mxu0 %v1652
        %1673 = vmatprep.subr.bf16.mxu0 0
        %1674 = vmatpush1.bf16.msra.mxu0 %v1653
        %1675 = vmatprep.subr.bf16.mxu0 0
        %1676 = vmatpush1.bf16.msra.mxu0 %v1654
        %1677 = vmatprep.subr.bf16.mxu0 0
        %1678 = vmatpush1.bf16.msra.mxu0 %v1655
        %1679 = vmatprep.subr.bf16.mxu0 0
        %1680 = vmatpush1.bf16.msra.mxu0 %v1656
        %1681 = vmatprep.subr.bf16.mxu0 0
        %1682 = vmatpush1.bf16.msra.mxu0 0
        %1683 = vmatprep.subr.bf16.mxu0 0
        %1684 = vmatpush1.bf16.msra.mxu0 0
        %1685 = vmatprep.subr.bf16.mxu0 0
        %1686 = vmatpush1.bf16.msra.mxu0 0
        %1687 = vmatprep.subr.bf16.mxu0 0
        %1688 = vmatpush1.bf16.msra.mxu0 0
        %1689 = vmatprep.subr.bf16.mxu0 0
        %1690 = vmatpush1.bf16.msra.mxu0 0
        %1691 = vmatprep.subr.bf16.mxu0 0
        %1692 = vmatpush1.bf16.msra.mxu0 0
        %1693 = vmatprep.subr.bf16.mxu0 0
        %1694 = vmatpush1.bf16.msra.mxu0 0
        %1695 = vmatprep.subr.bf16.mxu0 0
        %1696 = vmatpush1.bf16.msra.mxu0 0
        %1697 = vmatprep.mubr.bf16.mxu0 0
        %1698 = vmatmul.mubr.bf16.gmra.mrb[0].mxu0 %v1593
        %v1699 = vpop.f32.mrb[0].mxu0
        %v1700 = vadd.f32 %v1615, %v1699
        %v1701 = vpop.f32.mrb[0].mxu0
        %v1702 = vpop.f32.mrb[0].mxu0
        %v1703 = vpop.f32.mrb[0].mxu0
        %1704 = vdwg.mxu0
        %v1705 = vadd.f32 %v1495, %v1700
        %1706 = vst.msk [vmem:[%s569] sm:$0xff] %vm820, %v1705
        %s1707 = sand.u32 %s379, 1
        %s1708 = scalar_lea.sflag [#allocation7], %s1707
        %s1709 = sand.u32 %s379, 1
        %s1710 = smul.addr %s1709, 8
        %s1711 = scalar_lea.vmem [#allocation13], %s1710
        // Predicated region
        $region101: #{tpu_custom_call.1} parent=79 // pred_check
          %p1712 = pneg %p389
        $region102: #{tpu_custom_call.1} parent=79 // pred_check_branch
          %1714 = sbr.rel (%p1712) target = $region104
        $region103: #{tpu_custom_call.1} parent=79 // pred_region
          %s1716 = ssub.s32 128, 128
          %1717 = vsyncadd %s1708, %s1716
          %s1718 = sadd.s32 %s37, %s36
          %s1719 = smul.addr %s1718, 128
          %s1720 = scalar_lea.hbm %s15, %s1719
          %s1722 = sshll.u32 %s1711, 4
          %s1723 = int_to_ptr.vmem [resolvable:$true] %s1722
          %1725 = dma.vmem_to_hbm [thread:$0]  %s1723, 128, %s1720, %s1708
        $region104: #{tpu_custom_call.1} parent=79 // pred_fallthru
          _
      $region80: #{tpu_custom_call.1} parent=5 // pred_fallthru
        _
      %p1726 = scmp.le.s32.totalorder 2, %s27
      // Predicated region
      $region105: #{tpu_custom_call.1} parent=5 // pred_check
        %p1727 = pneg %p1726
      $region106: #{tpu_custom_call.1} parent=5 // pred_check_branch
        %1729 = sbr.rel (%p1727) target = $region108
      $region107: #{tpu_custom_call.1} parent=5 // pred_region
        %s1730 = ssub.s32 %s27, 2
        // Predicated region
        $region109: #{tpu_custom_call.1} parent=107 // pred_check
          %p1731 = pneg %p395
        $region110: #{tpu_custom_call.1} parent=107 // pred_check_branch
          %1733 = sbr.rel (%p1731) target = $region112
        $region111: #{tpu_custom_call.1} parent=107 // pred_region
          %s1734 = sand.u32 %s380, 1
          %s1735 = scalar_lea.sflag [#allocation7], %s1734
          %s1736 = sand.u32 %s380, 1
          %s1737 = smul.addr %s1736, 8
          %s1738 = scalar_lea.vmem [#allocation13], %s1737
          %1739 = dma.done %s1735, 128
        $region112: #{tpu_custom_call.1} parent=107 // pred_fallthru
          _
      $region108: #{tpu_custom_call.1} parent=5 // pred_fallthru
        _
    $region6: #{tpu_custom_call.1} parent=1 // loop_footer
      %s31 = sadd.s32 1, %s27
    $region7: #{tpu_custom_call.1} parent=1 // loop_footer_branch
      %26 = sbr.rel target = $region3
    $region8: #{tpu_custom_call.1} parent=1 // loop_exit
      _
    %1740 = vsyncpa [#allocation6], 1
    %s1741 = scalar_lea.sflag [#allocation6], 1
    %1742 = vsyncpa %s1741, 1
    %1743 = vsyncpa [#allocation9], 1
    %1744 = vsyncpa [#allocation12], 1
    %1745 = vsyncpa [#allocation7], 1
    %s1746 = scalar_lea.sflag [#allocation7], 1
    %1747 = vsyncpa %s1746, 1

// kernel: tpu_custom_call.1
$region0: #{tpu_custom_call.1}
  #allocation0 [shape = 'u32[]', space=smem, size = 0x4, offset = 0x4, fixed_abs, tag = 'smem constant byte address 0x4 - core index']
  #allocation1 [shape = 'u32[144,128]{1,0:T(1,128)}', space=vmem, size = 0x12000, scoped, tag = 'internal scratch']
  #allocation2 [shape = 'bf16[24,32]{1,0:T(8,128)(2,1)}', space=vmem, size = 0x1800, scoped, tag = 'scratch operand']
  #allocation3 [shape = 'bf16[24,32]{1,0:T(8,128)(2,1)}', space=vmem, size = 0x1800, scoped, tag = 'scratch operand']
  #allocation4 [shape = 'bf16[8,32]{1,0:T(8,128)(2,1)}', space=vmem, size = 0x800, scoped, tag = 'scratch operand']
  %s0 = inlined_call_operand.vmem [shape: f32[2,8,32], index: 0, kind: input, shape index: {}]
  %s1 = inlined_call_operand.vmem [shape: f32[2,16,32], index: 1, kind: input, shape index: {}]
  %s2 = inlined_call_operand.vmem [shape: f32[1,32], index: 2, kind: input, shape index: {}]
  %s3 = inlined_call_operand.vmem [shape: f32[1,32], index: 3, kind: input, shape index: {}]
  %s4 = inlined_call_operand.vmem [shape: bf16[32,32], index: 4, kind: input, shape index: {}]
  %s5 = inlined_call_operand.vmem [shape: bf16[32,32], index: 5, kind: input, shape index: {}]
  %s6 = inlined_call_operand.hbm [shape: bf16[32,32], index: 6, kind: input, shape index: {}]
  %s7 = inlined_call_operand.hbm [shape: bf16[32,32], index: 7, kind: input, shape index: {}]
  %s8 = inlined_call_operand.hbm [shape: f32[1,32], index: 8, kind: input, shape index: {}]
  %s9 = inlined_call_operand.hbm [shape: f32[1,32], index: 9, kind: input, shape index: {}]
  %s10 = inlined_call_operand.vmem [shape: f32[1,32], index: 10, kind: input, shape index: {}]
  %s11 = inlined_call_operand.vmem [shape: bf16[32,128], index: 11, kind: input, shape index: {}]
  %s12 = inlined_call_operand.vmem [shape: f32[1,128], index: 12, kind: input, shape index: {}]
  %s13 = inlined_call_operand.vmem [shape: bf16[128,32], index: 13, kind: input, shape index: {}]
  %s14 = inlined_call_operand.vmem [shape: f32[1,32], index: 14, kind: input, shape index: {}]
  %s15 = inlined_call_operand.hbm [shape: f32[2,8,32], index: 15, kind: output, shape index: {}]
  %s16 = sld [smem:[#allocation0]]
  $region113: #{tpu_custom_call.1} parent=0
    _
  %s18 = ssub.s32 1, %s16
  %s19 = scalar_select 0, %s18, %s16
  $region1: #{tpu_custom_call.1} parent=0
    #allocation5 [shape = 'u8[8192]{0}', space=vmem, size = 0x2000, scoped, tag = 'input window, operand 6, single buffered']
    #allocation6 [shape = 's32[2]{0}', space=sflag, size = 0x8, scoped, tag = 'scoped memory for tpu_custom_call.1']
    #allocation7 [shape = 's32[2]{0}', space=sflag, size = 0x8, scoped, tag = 'scoped memory for tpu_custom_call.1']
    #allocation8 [shape = 'u8[8192]{0}', space=vmem, size = 0x2000, scoped, tag = 'input window, operand 7, single buffered']
    #allocation9 [shape = 's32[1]{0}', space=sflag, size = 0x4, scoped, tag = 'scoped memory for tpu_custom_call.1']
    #allocation10 [shape = 'u8[512]{0}', space=vmem, size = 0x400, scoped, tag = 'input window, operand 8, single buffered']
    #allocation11 [shape = 'u8[512]{0}', space=vmem, size = 0x400, scoped, tag = 'input window, operand 9, single buffered']
    #allocation12 [shape = 's32[1]{0}', space=sflag, size = 0x4, scoped, tag = 'scoped memory for tpu_custom_call.1']
    #allocation13 [shape = 'u8[8192]{0}', space=vmem, size = 0x2000, scoped, tag = 'output window, operand 0']
    %20 = vsyncpa [#allocation6], 0
    %21 = vsyncpa [#allocation9], 0
    %22 = vsyncpa [#allocation12], 0
    %23 = vsyncpa [#allocation7], 0
    %s24 = scalar_lea.sflag [#allocation7], 1
    %25 = vsyncpa %s24, 0
    loop: start=0, step=1, limit=4
    $region2: #{tpu_custom_call.1} parent=1 // loop_pre_header
      _
    $region3: #{tpu_custom_call.1} parent=1 // loop_header
      %s27 = sphi 0, %s31
      %p28 = scmp.ge.s32.totalorder %s27, 4
      %s34 = sphi 0, %s46
      %s35 = sphi 0, %s42
      %s36 = sphi 0, %s34
      %s37 = sphi 0, %s35
      %s38 = sphi 0, %s36
      %s39 = sphi 0, %s37
      %s49 = sphi 0, %s51
      %s52 = sphi 0, %s49
      %s53 = sphi 0, %s52
      %s69 = sphi 0, %s53
      %s75 = sphi 0, %s77
      %s78 = sphi 0, %s75
      %s79 = sphi 0, %s78
      %s95 = sphi 0, %s79
      %s99 = sphi 0, %s99
      %s101 = sphi 0, %s99
      %s102 = sphi 0, %s101
      %s116 = sphi 0, %s102
      %s120 = sphi 0, %s120
      %s122 = sphi 0, %s120
      %s123 = sphi 0, %s122
      %s137 = sphi 0, %s123
      %s141 = sphi 0, %s141
      %s143 = sphi 0, %s141
      %s144 = sphi 0, %s143
      %s158 = sphi 0, %s144
      %s162 = sphi 0, %s162
      %s164 = sphi 0, %s162
      %s165 = sphi 0, %s164
      %s179 = sphi 0, %s165
      %s183 = sphi 0, %s183
      %s185 = sphi 0, %s183
      %s186 = sphi 0, %s185
      %s200 = sphi 0, %s186
      %s204 = sphi 0, %s204
      %s206 = sphi 0, %s204
      %s207 = sphi 0, %s206
      %s221 = sphi 0, %s207
      %s225 = sphi 0, %s225
      %s227 = sphi 0, %s225
      %s228 = sphi 0, %s227
      %s242 = sphi 0, %s228
      %s246 = sphi 0, %s246
      %s248 = sphi 0, %s246
      %s249 = sphi 0, %s248
      %s263 = sphi 0, %s249
      %s267 = sphi 0, %s267
      %s269 = sphi 0, %s267
      %s270 = sphi 0, %s269
      %s284 = sphi 0, %s270
      %s288 = sphi 0, %s288
      %s290 = sphi 0, %s288
      %s291 = sphi 0, %s290
      %s305 = sphi 0, %s291
      %s309 = sphi 0, %s309
      %s311 = sphi 0, %s309
      %s312 = sphi 0, %s311
      %s326 = sphi 0, %s312
      %s330 = sphi 0, %s330
      %s332 = sphi 0, %s330
      %s333 = sphi 0, %s332
      %s347 = sphi 0, %s333
      %s351 = sphi 0, %s351
      %s353 = sphi 0, %s351
      %s354 = sphi 0, %s353
      %s368 = sphi 0, %s354
      %s376 = sphi 0, %s378
      %s379 = sphi 0, %s376
      %s380 = sphi 0, %s379
      %s396 = sphi 0, %s380
    $region4: #{tpu_custom_call.1} parent=1 // loop_header_branch
      %30 = sbr.rel (%p28) target = $region8
    $region5: #{tpu_custom_call.1} parent=1 // loop_body
      %s32 = ssub.s32 %s27, 1
      %s33 = ssub.s32 %s27, 2
      %s40 = sadd.s32 1, %s35
      %p41 = scmp.ge.s32.totalorder %s40, 1
      %s42 = scalar_select %p41, 0, %s40
      %s43 = sadd.s32 1, %s34
      %s44 = scalar_select %p41, %s43, %s34
      %p45 = scmp.ge.s32.totalorder %s44, 2
      %s46 = scalar_select %p45, 0, %s44
      %s47 = ssub.s32 %s34, %s46
      %p48 = scmp.eq.s32.totalorder %s47, 0
      %s50 = sadd.s32 %s49, 1
      %s51 = scalar_select %p48, %s49, %s50
      %p54 = pneg %p48
      %p55 = scmp.eq.s32.totalorder %s27, 1
      %p56 = por %p54, %p55
      %p57 = scmp.ne.s32.totalorder %s49, %s52
      %p58 = scmp.eq.s32.totalorder %s27, 0
      %p59 = por %p57, %p58
      %p60 = scmp.ne.s32.totalorder %s49, %s52
      %p61 = scmp.eq.s32.totalorder %s32, 1
      %p62 = por %p60, %p61
      %p63 = scmp.ne.s32.totalorder %s52, %s53
      %p64 = scmp.eq.s32.totalorder %s32, 0
      %p65 = por %p63, %p64
      %p66 = scmp.ne.s32.totalorder %s52, %s53
      %p67 = scmp.eq.s32.totalorder %s33, 1
      %p68 = por %p66, %p67
      %p70 = scmp.ne.s32.totalorder %s53, %s69
      %p71 = scmp.eq.s32.totalorder %s33, 0
      %p72 = por %p70, %p71
      %s73 = ssub.s32 %s34, %s46
      %p74 = scmp.eq.s32.totalorder %s73, 0
      %s76 = sadd.s32 %s75, 1
      %s77 = scalar_select %p74, %s75, %s76
      %p80 = pneg %p74
      %p81 = scmp.eq.s32.totalorder %s27, 1
      %p82 = por %p80, %p81
      %p83 = scmp.ne.s32.totalorder %s75, %s78
      %p84 = scmp.eq.s32.totalorder %s27, 0
      %p85 = por %p83, %p84
      %p86 = scmp.ne.s32.totalorder %s75, %s78
      %p87 = scmp.eq.s32.totalorder %s32, 1
      %p88 = por %p86, %p87
      %p89 = scmp.ne.s32.totalorder %s78, %s79
      %p90 = scmp.eq.s32.totalorder %s32, 0
      %p91 = por %p89, %p90
      %p92 = scmp.ne.s32.totalorder %s78, %s79
      %p93 = scmp.eq.s32.totalorder %s33, 1
      %p94 = por %p92, %p93
      %p96 = scmp.ne.s32.totalorder %s79, %s95
      %p97 = scmp.eq.s32.totalorder %s33, 0
      %p98 = por %p96, %p97
      %s100 = sadd.s32 %s99, 1
      %p103 = scmp.eq.s32.totalorder %s27, 1
      %p104 = scmp.ne.s32.totalorder %s99, %s101
      %p105 = scmp.eq.s32.totalorder %s27, 0
      %p106 = por %p104, %p105
      %p107 = scmp.ne.s32.totalorder %s99, %s101
      %p108 = scmp.eq.s32.totalorder %s32, 1
      %p109 = por %p107, %p108
      %p110 = scmp.ne.s32.totalorder %s101, %s102
      %p111 = scmp.eq.s32.totalorder %s32, 0
      %p112 = por %p110, %p111
      %p113 = scmp.ne.s32.totalorder %s101, %s102
      %p114 = scmp.eq.s32.totalorder %s33, 1
      %p115 = por %p113, %p114
      %p117 = scmp.ne.s32.totalorder %s102, %s116
      %p118 = scmp.eq.s32.totalorder %s33, 0
      %p119 = por %p117, %p118
      %s121 = sadd.s32 %s120, 1
      %p124 = scmp.eq.s32.totalorder %s27, 1
      %p125 = scmp.ne.s32.totalorder %s120, %s122
      %p126 = scmp.eq.s32.totalorder %s27, 0
      %p127 = por %p125, %p126
      %p128 = scmp.ne.s32.totalorder %s120, %s122
      %p129 = scmp.eq.s32.totalorder %s32, 1
      %p130 = por %p128, %p129
      %p131 = scmp.ne.s32.totalorder %s122, %s123
      %p132 = scmp.eq.s32.totalorder %s32, 0
      %p133 = por %p131, %p132
      %p134 = scmp.ne.s32.totalorder %s122, %s123
      %p135 = scmp.eq.s32.totalorder %s33, 1
      %p136 = por %p134, %p135
      %p138 = scmp.ne.s32.totalorder %s123, %s137
      %p139 = scmp.eq.s32.totalorder %s33, 0
      %p140 = por %p138, %p139
      %s142 = sadd.s32 %s141, 1
      %p145 = scmp.eq.s32.totalorder %s27, 1
      %p146 = scmp.ne.s32.totalorder %s141, %s143
      %p147 = scmp.eq.s32.totalorder %s27, 0
      %p148 = por %p146, %p147
      %p149 = scmp.ne.s32.totalorder %s141, %s143
      %p150 = scmp.eq.s32.totalorder %s32, 1
      %p151 = por %p149, %p150
      %p152 = scmp.ne.s32.totalorder %s143, %s144
      %p153 = scmp.eq.s32.totalorder %s32, 0
      %p154 = por %p152, %p153
      %p155 = scmp.ne.s32.totalorder %s143, %s144
      %p156 = scmp.eq.s32.totalorder %s33, 1
      %p157 = por %p155, %p156
      %p159 = scmp.ne.s32.totalorder %s144, %s158
      %p160 = scmp.eq.s32.totalorder %s33, 0
      %p161 = por %p159, %p160
      %s163 = sadd.s32 %s162, 1
      %p166 = scmp.eq.s32.totalorder %s27, 1
      %p167 = scmp.ne.s32.totalorder %s162, %s164
      %p168 = scmp.eq.s32.totalorder %s27, 0
      %p169 = por %p167, %p168
      %p170 = scmp.ne.s32.totalorder %s162, %s164
      %p171 = scmp.eq.s32.totalorder %s32, 1
      %p172 = por %p170, %p171
      %p173 = scmp.ne.s32.totalorder %s164, %s165
      %p174 = scmp.eq.s32.totalorder %s32, 0
      %p175 = por %p173, %p174
      %p176 = scmp.ne.s32.totalorder %s164, %s165
      %p177 = scmp.eq.s32.totalorder %s33, 1
      %p178 = por %p176, %p177
      %p180 = scmp.ne.s32.totalorder %s165, %s179
      %p181 = scmp.eq.s32.totalorder %s33, 0
      %p182 = por %p180, %p181
      %s184 = sadd.s32 %s183, 1
      %p187 = scmp.eq.s32.totalorder %s27, 1
      %p188 = scmp.ne.s32.totalorder %s183, %s185
      %p189 = scmp.eq.s32.totalorder %s27, 0
      %p190 = por %p188, %p189
      %p191 = scmp.ne.s32.totalorder %s183, %s185
      %p192 = scmp.eq.s32.totalorder %s32, 1
      %p193 = por %p191, %p192
      %p194 = scmp.ne.s32.totalorder %s185, %s186
      %p195 = scmp.eq.s32.totalorder %s32, 0
      %p196 = por %p194, %p195
      %p197 = scmp.ne.s32.totalorder %s185, %s186
      %p198 = scmp.eq.s32.totalorder %s33, 1
      %p199 = por %p197, %p198
      %p201 = scmp.ne.s32.totalorder %s186, %s200
      %p202 = scmp.eq.s32.totalorder %s33, 0
      %p203 = por %p201, %p202
      %s205 = sadd.s32 %s204, 1
      %p208 = scmp.eq.s32.totalorder %s27, 1
      %p209 = scmp.ne.s32.totalorder %s204, %s206
      %p210 = scmp.eq.s32.totalorder %s27, 0
      %p211 = por %p209, %p210
      %p212 = scmp.ne.s32.totalorder %s204, %s206
      %p213 = scmp.eq.s32.totalorder %s32, 1
      %p214 = por %p212, %p213
      %p215 = scmp.ne.s32.totalorder %s206, %s207
      %p216 = scmp.eq.s32.totalorder %s32, 0
      %p217 = por %p215, %p216
      %p218 = scmp.ne.s32.totalorder %s206, %s207
      %p219 = scmp.eq.s32.totalorder %s33, 1
      %p220 = por %p218, %p219
      %p222 = scmp.ne.s32.totalorder %s207, %s221
      %p223 = scmp.eq.s32.totalorder %s33, 0
      %p224 = por %p222, %p223
      %s226 = sadd.s32 %s225, 1
      %p229 = scmp.eq.s32.totalorder %s27, 1
      %p230 = scmp.ne.s32.totalorder %s225, %s227
      %p231 = scmp.eq.s32.totalorder %s27, 0
      %p232 = por %p230, %p231
      %p233 = scmp.ne.s32.totalorder %s225, %s227
      %p234 = scmp.eq.s32.totalorder %s32, 1
      %p235 = por %p233, %p234
      %p236 = scmp.ne.s32.totalorder %s227, %s228
      %p237 = scmp.eq.s32.totalorder %s32, 0
      %p238 = por %p236, %p237
      %p239 = scmp.ne.s32.totalorder %s227, %s228
      %p240 = scmp.eq.s32.totalorder %s33, 1
      %p241 = por %p239, %p240
      %p243 = scmp.ne.s32.totalorder %s228, %s242
      %p244 = scmp.eq.s32.totalorder %s33, 0
      %p245 = por %p243, %p244
      %s247 = sadd.s32 %s246, 1
      %p250 = scmp.eq.s32.totalorder %s27, 1
      %p251 = scmp.ne.s32.totalorder %s246, %s248
      %p252 = scmp.eq.s32.totalorder %s27, 0
      %p253 = por %p251, %p252
      %p254 = scmp.ne.s32.totalorder %s246, %s248
      %p255 = scmp.eq.s32.totalorder %s32, 1
      %p256 = por %p254, %p255
      %p257 = scmp.ne.s32.totalorder %s248, %s249
      %p258 = scmp.eq.s32.totalorder %s32, 0
      %p259 = por %p257, %p258
      %p260 = scmp.ne.s32.totalorder %s248, %s249
      %p261 = scmp.eq.s32.totalorder %s33, 1
      %p262 = por %p260, %p261
      %p264 = scmp.ne.s32.totalorder %s249, %s263
      %p265 = scmp.eq.s32.totalorder %s33, 0
      %p266 = por %p264, %p265
      %s268 = sadd.s32 %s267, 1
      %p271 = scmp.eq.s32.totalorder %s27, 1
      %p272 = scmp.ne.s32.totalorder %s267, %s269
      %p273 = scmp.eq.s32.totalorder %s27, 0
      %p274 = por %p272, %p273
      %p275 = scmp.ne.s32.totalorder %s267, %s269
      %p276 = scmp.eq.s32.totalorder %s32, 1
      %p277 = por %p275, %p276
      %p278 = scmp.ne.s32.totalorder %s269, %s270
      %p279 = scmp.eq.s32.totalorder %s32, 0
      %p280 = por %p278, %p279
      %p281 = scmp.ne.s32.totalorder %s269, %s270
      %p282 = scmp.eq.s32.totalorder %s33, 1
      %p283 = por %p281, %p282
      %p285 = scmp.ne.s32.totalorder %s270, %s284
      %p286 = scmp.eq.s32.totalorder %s33, 0
      %p287 = por %p285, %p286
      %s289 = sadd.s32 %s288, 1
      %p292 = scmp.eq.s32.totalorder %s27, 1
      %p293 = scmp.ne.s32.totalorder %s288, %s290
      %p294 = scmp.eq.s32.totalorder %s27, 0
      %p295 = por %p293, %p294
      %p296 = scmp.ne.s32.totalorder %s288, %s290
      %p297 = scmp.eq.s32.totalorder %s32, 1
      %p298 = por %p296, %p297
      %p299 = scmp.ne.s32.totalorder %s290, %s291
      %p300 = scmp.eq.s32.totalorder %s32, 0
      %p301 = por %p299, %p300
      %p302 = scmp.ne.s32.totalorder %s290, %s291
      %p303 = scmp.eq.s32.totalorder %s33, 1
      %p304 = por %p302, %p303
      %p306 = scmp.ne.s32.totalorder %s291, %s305
      %p307 = scmp.eq.s32.totalorder %s33, 0
      %p308 = por %p306, %p307
      %s310 = sadd.s32 %s309, 1
      %p313 = scmp.eq.s32.totalorder %s27, 1
      %p314 = scmp.ne.s32.totalorder %s309, %s311
      %p315 = scmp.eq.s32.totalorder %s27, 0
      %p316 = por %p314, %p315
      %p317 = scmp.ne.s32.totalorder %s309, %s311
      %p318 = scmp.eq.s32.totalorder %s32, 1
      %p319 = por %p317, %p318
      %p320 = scmp.ne.s32.totalorder %s311, %s312
      %p321 = scmp.eq.s32.totalorder %s32, 0
      %p322 = por %p320, %p321
      %p323 = scmp.ne.s32.totalorder %s311, %s312
      %p324 = scmp.eq.s32.totalorder %s33, 1
      %p325 = por %p323, %p324
      %p327 = scmp.ne.s32.totalorder %s312, %s326
      %p328 = scmp.eq.s32.totalorder %s33, 0
      %p329 = por %p327, %p328
      %s331 = sadd.s32 %s330, 1
      %p334 = scmp.eq.s32.totalorder %s27, 1
      %p335 = scmp.ne.s32.totalorder %s330, %s332
      %p336 = scmp.eq.s32.totalorder %s27, 0
      %p337 = por %p335, %p336
      %p338 = scmp.ne.s32.totalorder %s330, %s332
      %p339 = scmp.eq.s32.totalorder %s32, 1
      %p340 = por %p338, %p339
      %p341 = scmp.ne.s32.totalorder %s332, %s333
      %p342 = scmp.eq.s32.totalorder %s32, 0
      %p343 = por %p341, %p342
      %p344 = scmp.ne.s32.totalorder %s332, %s333
      %p345 = scmp.eq.s32.totalorder %s33, 1
      %p346 = por %p344, %p345
      %p348 = scmp.ne.s32.totalorder %s333, %s347
      %p349 = scmp.eq.s32.totalorder %s33, 0
      %p350 = por %p348, %p349
      %s352 = sadd.s32 %s351, 1
      %p355 = scmp.eq.s32.totalorder %s27, 1
      %p356 = scmp.ne.s32.totalorder %s351, %s353
      %p357 = scmp.eq.s32.totalorder %s27, 0
      %p358 = por %p356, %p357
      %p359 = scmp.ne.s32.totalorder %s351, %s353
      %p360 = scmp.eq.s32.totalorder %s32, 1
      %p361 = por %p359, %p360
      %p362 = scmp.ne.s32.totalorder %s353, %s354
      %p363 = scmp.eq.s32.totalorder %s32, 0
      %p364 = por %p362, %p363
      %p365 = scmp.ne.s32.totalorder %s353, %s354
      %p366 = scmp.eq.s32.totalorder %s33, 1
      %p367 = por %p365, %p366
      %p369 = scmp.ne.s32.totalorder %s354, %s368
      %p370 = scmp.eq.s32.totalorder %s33, 0
      %p371 = por %p369, %p370
      %s372 = ssub.s32 %s34, %s46
      %s373 = ssub.s32 %s35, %s42
      %s374 = sor.u32 %s372, %s373
      %p375 = scmp.eq.s32.totalorder %s374, 0
      %s377 = sadd.s32 %s376, 1
      %s378 = scalar_select %p375, %s376, %s377
      %p381 = pneg %p375
      %p382 = scmp.eq.s32.totalorder %s27, 1
      %p383 = por %p381, %p382
      %p384 = scmp.ne.s32.totalorder %s376, %s379
      %p385 = scmp.eq.s32.totalorder %s27, 0
      %p386 = por %p384, %p385
      %p387 = scmp.ne.s32.totalorder %s376, %s379
      %p388 = scmp.eq.s32.totalorder %s32, 1
      %p389 = por %p387, %p388
      %p390 = scmp.ne.s32.totalorder %s379, %s380
      %p391 = scmp.eq.s32.totalorder %s32, 0
      %p392 = por %p390, %p391
      %p393 = scmp.ne.s32.totalorder %s379, %s380
      %p394 = scmp.eq.s32.totalorder %s33, 1
      %p395 = por %p393, %p394
      %p397 = scmp.ne.s32.totalorder %s380, %s396
      %p398 = scmp.eq.s32.totalorder %s33, 0
      %p399 = por %p397, %p398
      %p400 = scmp.le.s32.totalorder 1, %s27
      %p401 = scmp.lt.s32.totalorder %s27, 3
      %p402 = pnand %p400, %p401
      %p403 = pneg %p402
      // Predicated region
      $region9: #{tpu_custom_call.1} parent=5 // pred_check
        _
      $region10: #{tpu_custom_call.1} parent=5 // pred_check_branch
        %405 = sbr.rel (%p402) target = $region12
      $region11: #{tpu_custom_call.1} parent=5 // pred_region
        %s406 = ssub.s32 %s27, 1
        // Predicated region
        $region13: #{tpu_custom_call.1} parent=11 // pred_check
          %p407 = pneg %p112
        $region14: #{tpu_custom_call.1} parent=11 // pred_check_branch
          %409 = sbr.rel (%p407) target = $region16
        $region15: #{tpu_custom_call.1} parent=11 // pred_region
          _
        $region16: #{tpu_custom_call.1} parent=11 // pred_fallthru
          _
        // Predicated region
        $region17: #{tpu_custom_call.1} parent=11 // pred_check
          %p410 = pneg %p133
        $region18: #{tpu_custom_call.1} parent=11 // pred_check_branch
          %412 = sbr.rel (%p410) target = $region20
        $region19: #{tpu_custom_call.1} parent=11 // pred_region
          _
        $region20: #{tpu_custom_call.1} parent=11 // pred_fallthru
          _
        // Predicated region
        $region21: #{tpu_custom_call.1} parent=11 // pred_check
          %p413 = pneg %p154
        $region22: #{tpu_custom_call.1} parent=11 // pred_check_branch
          %415 = sbr.rel (%p413) target = $region24
        $region23: #{tpu_custom_call.1} parent=11 // pred_region
          _
        $region24: #{tpu_custom_call.1} parent=11 // pred_fallthru
          _
        // Predicated region
        $region25: #{tpu_custom_call.1} parent=11 // pred_check
          %p416 = pneg %p175
        $region26: #{tpu_custom_call.1} parent=11 // pred_check_branch
          %418 = sbr.rel (%p416) target = $region28
        $region27: #{tpu_custom_call.1} parent=11 // pred_region
          _
        $region28: #{tpu_custom_call.1} parent=11 // pred_fallthru
          _
        // Predicated region
        $region29: #{tpu_custom_call.1} parent=11 // pred_check
          %p419 = pneg %p196
        $region30: #{tpu_custom_call.1} parent=11 // pred_check_branch
          %421 = sbr.rel (%p419) target = $region32
        $region31: #{tpu_custom_call.1} parent=11 // pred_region
          %s423 = ssub.s32 256, 256
          %424 = vsyncadd [#allocation6], %s423
          %s425 = sshll.u32 [#allocation5], 4
          %s426 = int_to_ptr.vmem [resolvable:$true] %s425
          %431 = dma.hbm_to_vmem [thread:$0]  %s6, 256, %s426, [#allocation6], 64, 64, 4
        $region32: #{tpu_custom_call.1} parent=11 // pred_fallthru
          _
        // Predicated region
        $region33: #{tpu_custom_call.1} parent=11 // pred_check
          %p432 = pneg %p217
        $region34: #{tpu_custom_call.1} parent=11 // pred_check_branch
          %434 = sbr.rel (%p432) target = $region36
        $region35: #{tpu_custom_call.1} parent=11 // pred_region
          %s436 = ssub.s32 256, 256
          %437 = vsyncadd [#allocation9], %s436
          %s438 = sshll.u32 [#allocation8], 4
          %s439 = int_to_ptr.vmem [resolvable:$true] %s438
          %444 = dma.hbm_to_vmem [thread:$0]  %s7, 256, %s439, [#allocation9], 64, 64, 4
        $region36: #{tpu_custom_call.1} parent=11 // pred_fallthru
          _
        // Predicated region
        $region37: #{tpu_custom_call.1} parent=11 // pred_check
          %p445 = pneg %p238
        $region38: #{tpu_custom_call.1} parent=11 // pred_check_branch
          %447 = sbr.rel (%p445) target = $region40
        $region39: #{tpu_custom_call.1} parent=11 // pred_region
          %s449 = ssub.s32 16, 16
          %450 = vsyncadd [#allocation9], %s449
          %s452 = sshll.u32 [#allocation10], 4
          %s453 = int_to_ptr.vmem [resolvable:$true] %s452
          %455 = dma.hbm_to_vmem [thread:$0]  %s8, 16, %s453, [#allocation9]
        $region40: #{tpu_custom_call.1} parent=11 // pred_fallthru
          _
        // Predicated region
        $region41: #{tpu_custom_call.1} parent=11 // pred_check
          %p456 = pneg %p259
        $region42: #{tpu_custom_call.1} parent=11 // pred_check_branch
          %458 = sbr.rel (%p456) target = $region44
        $region43: #{tpu_custom_call.1} parent=11 // pred_region
          %s460 = ssub.s32 16, 16
          %461 = vsyncadd [#allocation12], %s460
          %s463 = sshll.u32 [#allocation11], 4
          %s464 = int_to_ptr.vmem [resolvable:$true] %s463
          %466 = dma.hbm_to_vmem [thread:$0]  %s9, 16, %s464, [#allocation12]
        $region44: #{tpu_custom_call.1} parent=11 // pred_fallthru
          _
        // Predicated region
        $region45: #{tpu_custom_call.1} parent=11 // pred_check
          %p467 = pneg %p280
        $region46: #{tpu_custom_call.1} parent=11 // pred_check_branch
          %469 = sbr.rel (%p467) target = $region48
        $region47: #{tpu_custom_call.1} parent=11 // pred_region
          _
        $region48: #{tpu_custom_call.1} parent=11 // pred_fallthru
          _
        // Predicated region
        $region49: #{tpu_custom_call.1} parent=11 // pred_check
          %p470 = pneg %p301
        $region50: #{tpu_custom_call.1} parent=11 // pred_check_branch
          %472 = sbr.rel (%p470) target = $region52
        $region51: #{tpu_custom_call.1} parent=11 // pred_region
          _
        $region52: #{tpu_custom_call.1} parent=11 // pred_fallthru
          _
        // Predicated region
        $region53: #{tpu_custom_call.1} parent=11 // pred_check
          %p473 = pneg %p322
        $region54: #{tpu_custom_call.1} parent=11 // pred_check_branch
          %475 = sbr.rel (%p473) target = $region56
        $region55: #{tpu_custom_call.1} parent=11 // pred_region
          _
        $region56: #{tpu_custom_call.1} parent=11 // pred_fallthru
          _
        // Predicated region
        $region57: #{tpu_custom_call.1} parent=11 // pred_check
          %p476 = pneg %p343
        $region58: #{tpu_custom_call.1} parent=11 // pred_check_branch
          %478 = sbr.rel (%p476) target = $region60
        $region59: #{tpu_custom_call.1} parent=11 // pred_region
          _
        $region60: #{tpu_custom_call.1} parent=11 // pred_fallthru
          _
        // Predicated region
        $region61: #{tpu_custom_call.1} parent=11 // pred_check
          %p479 = pneg %p364
        $region62: #{tpu_custom_call.1} parent=11 // pred_check_branch
          %481 = sbr.rel (%p479) target = $region64
        $region63: #{tpu_custom_call.1} parent=11 // pred_region
          _
        $region64: #{tpu_custom_call.1} parent=11 // pred_fallthru
          _
      $region12: #{tpu_custom_call.1} parent=5 // pred_fallthru
        _
      %p482 = scmp.lt.s32.totalorder %s27, 2
      // Predicated region
      $region65: #{tpu_custom_call.1} parent=5 // pred_check
        %p483 = pneg %p482
      $region66: #{tpu_custom_call.1} parent=5 // pred_check_branch
        %485 = sbr.rel (%p483) target = $region68
      $region67: #{tpu_custom_call.1} parent=5 // pred_region
        // Predicated region
        $region69: #{tpu_custom_call.1} parent=67 // pred_check
          %p486 = pneg %p59
        $region70: #{tpu_custom_call.1} parent=67 // pred_check_branch
          %488 = sbr.rel (%p486) target = $region72
        $region71: #{tpu_custom_call.1} parent=67 // pred_region
          %p489 = scmp.lt.s32.totalorder %s34, 1
          %s490 = scalar_select %p489, %s34, 1
          %s491 = smul.addr %s490, 8
          %s492 = scalar_lea.vmem %s0, %s491
        $region72: #{tpu_custom_call.1} parent=67 // pred_fallthru
          _
        // Predicated region
        $region73: #{tpu_custom_call.1} parent=67 // pred_check
          %p493 = pneg %p85
        $region74: #{tpu_custom_call.1} parent=67 // pred_check_branch
          %495 = sbr.rel (%p493) target = $region76
        $region75: #{tpu_custom_call.1} parent=67 // pred_region
          %p496 = scmp.lt.s32.totalorder %s34, 1
          %s497 = scalar_select %p496, %s34, 1
          %s498 = smul.addr %s497, 2
          %s499 = smul.addr %s498, 8
          %s500 = scalar_lea.vmem %s1, %s499
        $region76: #{tpu_custom_call.1} parent=67 // pred_fallthru
          _
      $region68: #{tpu_custom_call.1} parent=5 // pred_fallthru
        _
      %p501 = scmp.le.s32.totalorder 1, %s27
      %p502 = scmp.lt.s32.totalorder %s27, 3
      %p503 = pnand %p501, %p502
      %p504 = pneg %p503
      // Predicated region
      $region77: #{tpu_custom_call.1} parent=5 // pred_check
        _
      $region78: #{tpu_custom_call.1} parent=5 // pred_check_branch
        %506 = sbr.rel (%p503) target = $region80
      $region79: #{tpu_custom_call.1} parent=5 // pred_region
        %s507 = ssub.s32 %s27, 1
        // Predicated region
        $region81: #{tpu_custom_call.1} parent=79 // pred_check
          %p508 = pneg %p196
        $region82: #{tpu_custom_call.1} parent=79 // pred_check_branch
          %510 = sbr.rel (%p508) target = $region84
        $region83: #{tpu_custom_call.1} parent=79 // pred_region
          %511 = dma.done [#allocation6], 256
        $region84: #{tpu_custom_call.1} parent=79 // pred_fallthru
          _
        // Predicated region
        $region85: #{tpu_custom_call.1} parent=79 // pred_check
          %p512 = pneg %p217
        $region86: #{tpu_custom_call.1} parent=79 // pred_check_branch
          %514 = sbr.rel (%p512) target = $region88
        $region87: #{tpu_custom_call.1} parent=79 // pred_region
          %515 = dma.done [#allocation9], 256
        $region88: #{tpu_custom_call.1} parent=79 // pred_fallthru
          _
        // Predicated region
        $region89: #{tpu_custom_call.1} parent=79 // pred_check
          %p516 = pneg %p238
        $region90: #{tpu_custom_call.1} parent=79 // pred_check_branch
          %518 = sbr.rel (%p516) target = $region92
        $region91: #{tpu_custom_call.1} parent=79 // pred_region
          %519 = dma.done [#allocation9], 16
        $region92: #{tpu_custom_call.1} parent=79 // pred_fallthru
          _
        // Predicated region
        $region93: #{tpu_custom_call.1} parent=79 // pred_check
          %p520 = pneg %p259
        $region94: #{tpu_custom_call.1} parent=79 // pred_check_branch
          %522 = sbr.rel (%p520) target = $region96
        $region95: #{tpu_custom_call.1} parent=79 // pred_region
          %523 = dma.done [#allocation12], 16
        $region96: #{tpu_custom_call.1} parent=79 // pred_fallthru
          _
        %p524 = scmp.lt.s32.totalorder %s36, 1
        %s525 = scalar_select %p524, %s36, 1
        %s526 = smul.addr %s525, 8
        %s527 = scalar_lea.vmem %s0, %s526
        %p528 = pneg %p65
        %p529 = pneg %p62
        %p530 = scmp.lt.s32.totalorder %s36, 1
        %s531 = scalar_select %p530, %s36, 1
        %s532 = smul.addr %s531, 2
        %s533 = smul.addr %s532, 8
        %s534 = scalar_lea.vmem %s1, %s533
        %p535 = pneg %p91
        %p536 = pneg %p88
        %p537 = pneg %p112
        %p538 = pneg %p109
        %p539 = pneg %p133
        %p540 = pneg %p130
        %p541 = pneg %p154
        %p542 = pneg %p151
        %p543 = pneg %p175
        %p544 = pneg %p172
        %p545 = pneg %p196
        %p546 = pneg %p193
        %p547 = pneg %p217
        %p548 = pneg %p214
        %p549 = pneg %p238
        %p550 = pneg %p235
        %p551 = pneg %p259
        %p552 = pneg %p256
        %p553 = pneg %p280
        %p554 = pneg %p277
        %p555 = pneg %p301
        %p556 = pneg %p298
        %p557 = pneg %p322
        %p558 = pneg %p319
        %p559 = pneg %p343
        %p560 = pneg %p340
        %p561 = pneg %p364
        %p562 = pneg %p361
        %p563 = pneg %p392
        %p564 = pneg %p389
        %s565 = sand.u32 %s379, 1
        %s566 = scalar_lea.sflag [#allocation7], %s565
        %s567 = sand.u32 %s379, 1
        %s568 = smul.addr %s567, 8
        %s569 = scalar_lea.vmem [#allocation13], %s568
        %p570 = scmp.lt.s32.totalorder %s36, 1
        %s571 = scalar_select %p570, %s36, 1
        %s572 = smul.addr %s571, 8
        %s573 = scalar_lea.vmem %s0, %s572
        %p574 = scmp.lt.s32.totalorder %s36, 1
        %s575 = scalar_select %p574, %s36, 1
        %s576 = smul.addr %s575, 2
        %s577 = smul.addr %s576, 8
        %s578 = scalar_lea.vmem %s1, %s577
        %v580 = vld [vmem:[%s2] sm:$0x1]
        %v581 = vld [vmem:[%s3] sm:$0x1]
        %p582 = scmp.eq.s32.totalorder %s37, 0
        // Predicated region
        $region97: #{tpu_custom_call.1} parent=79 // pred_check
          %p583 = pneg %p582
        $region98: #{tpu_custom_call.1} parent=79 // pred_check_branch
          %585 = sbr.rel (%p583) target = $region100
        $region99: #{tpu_custom_call.1} parent=79 // pred_region
          %v586 = vld [vmem:[%s578] sm:$0xff]
          %v587 = vld [vmem:[%s578 + $0x8] sm:$0xff]
          %vm588 = vcmask 261120
          %v589 = vsel %vm588, %v586, 0.0
          %590 = vadd.xlane.f32.xlu0 %v589
          %v591 = vpop.xlane.xlu0 %590
          %v592 = vsel %vm588, %v587, 0.0
          %593 = vadd.xlane.f32.xlu0 %v592
          %v594 = vpop.xlane.xlu0 %593
          %v595 = vrcp.pop 32.0
          %v596 = vmul.f32 %v591, %v595
          %v597 = vmul.f32 %v594, %v595
          %v598 = vsub.f32 %v586, %v596
          %v599 = vsub.f32 %v587, %v597
          %v600 = vmul.f32 %v598, %v598
          %v601 = vmul.f32 %v599, %v599
          %v602 = vsel %vm588, %v600, 0.0
          %603 = vadd.xlane.f32.xlu0 %v602
          %v604 = vpop.xlane.xlu0 %603
          %v605 = vsel %vm588, %v601, 0.0
          %606 = vadd.xlane.f32.xlu0 %v605
          %v607 = vpop.xlane.xlu0 %606
          %v608 = vmul.f32 %v604, %v595
          %v609 = vmul.f32 %v607, %v595
          %v610 = vadd.f32 %v608, 1e-05
          %v611 = vadd.f32 %v609, 1e-05
          %v612 = vrsqrt.pop %v610
          %v613 = vrsqrt.pop %v611
          %v614 = vmul.f32 %v598, %v612
          %v615 = vmul.f32 %v599, %v613
          %v617 = vlaneseq
          %v618 = vshrl.u32 %v617, 7
          %v619 = vsub.s32 0, %v618
          %v620 = vrot.slane %v580, %v619
          %v622 = vmul.f32 %v614, %v620
          %v623 = vmul.f32 %v615, %v620
          %v625 = vlaneseq
          %v626 = vshrl.u32 %v625, 7
          %v627 = vsub.s32 0, %v626
          %v628 = vrot.slane %v581, %v627
          %v630 = vadd.f32 %v622, %v628
          %v631 = vadd.f32 %v623, %v628
          %v632 = vpack.c.bf16 %v631, %v630
          %v633 = vld [vmem:[%s573] sm:$0xff]
          %v634 = vsel %vm588, %v633, 0.0
          %635 = vadd.xlane.f32.xlu0 %v634
          %v636 = vpop.xlane.xlu0 %635
          %v637 = vmul.f32 %v636, %v595
          %v638 = vsub.f32 %v633, %v637
          %v639 = vmul.f32 %v638, %v638
          %v640 = vsel %vm588, %v639, 0.0
          %641 = vadd.xlane.f32.xlu0 %v640
          %v642 = vpop.xlane.xlu0 %641
          %v643 = vmul.f32 %v642, %v595
          %v644 = vadd.f32 %v643, 1e-05
          %v645 = vrsqrt.pop %v644
          %v646 = vmul.f32 %v638, %v645
          %v647 = vmul.f32 %v646, %v620
          %v648 = vadd.f32 %v647, %v628
          %v649 = vpack.c.bf16 %v648, %v648
          %v650 = vld [vmem:[%s5] sm:$0xf]
          %v651 = vld [vmem:[%s5 + $0x4] sm:$0xf]
          %v652 = vld [vmem:[%s5 + $0x8] sm:$0xf]
          %v653 = vld [vmem:[%s5 + $0xc] sm:$0xf]
          %v658 = vunpack.c.l.b16 %v650
          %v659 = vunpack.c.l.b16 %v651
          %v660 = vunpack.c.l.b16 %v652
          %v661 = vunpack.c.l.b16 %v653
          %v662 = vpack.c.b16 %v659, %v658
          %v663 = vpack.c.b16 %v661, %v660
          %v667 = vsel %vm588, %v632, 0
          %v670 = vsel %vm588, %v649, 0
          %672 = vmatprep.subr.bf16.mxu0 0
          %673 = vmatpush1.bf16.msra.mxu0 %v662
          %674 = vmatprep.subr.bf16.mxu0 0
          %675 = vmatpush1.bf16.msra.mxu0 %v663
          %676 = vmatprep.subr.bf16.mxu0 0
          %677 = vmatpush1.bf16.msra.mxu0 0
          %678 = vmatprep.subr.bf16.mxu0 0
          %679 = vmatpush1.bf16.msra.mxu0 0
          %680 = vmatprep.subr.bf16.mxu0 0
          %681 = vmatpush1.bf16.msra.mxu0 0
          %682 = vmatprep.subr.bf16.mxu0 0
          %683 = vmatpush1.bf16.msra.mxu0 0
          %684 = vmatprep.subr.bf16.mxu0 0
          %685 = vmatpush1.bf16.msra.mxu0 0
          %686 = vmatprep.subr.bf16.mxu0 0
          %687 = vmatpush1.bf16.msra.mxu0 0
          %688 = vmatprep.subr.bf16.mxu0 0
          %689 = vmatpush1.bf16.msra.mxu0 0
          %690 = vmatprep.subr.bf16.mxu0 0
          %691 = vmatpush1.bf16.msra.mxu0 0
          %692 = vmatprep.subr.bf16.mxu0 0
          %693 = vmatpush1.bf16.msra.mxu0 0
          %694 = vmatprep.subr.bf16.mxu0 0
          %695 = vmatpush1.bf16.msra.mxu0 0
          %696 = vmatprep.subr.bf16.mxu0 0
          %697 = vmatpush1.bf16.msra.mxu0 0
          %698 = vmatprep.subr.bf16.mxu0 0
          %699 = vmatpush1.bf16.msra.mxu0 0
          %700 = vmatprep.subr.bf16.mxu0 0
          %701 = vmatpush1.bf16.msra.mxu0 0
          %702 = vmatprep.subr.bf16.mxu0 0
          %703 = vmatpush1.bf16.msra.mxu0 0
          %704 = vmatprep.mubr.bf16.mxu0 0
          %705 = vmatmul.mubr.bf16.gmra.mrb[0].mxu0 %v667
          %v706 = vpop.f32.mrb[0].mxu0
          %v707 = vadd.f32 0.0, %v706
          %v708 = vpop.f32.mrb[0].mxu0
          %v709 = vpop.f32.mrb[0].mxu0
          %v710 = vadd.f32 0.0, %v709
          %v711 = vpop.f32.mrb[0].mxu0
          %712 = vmatprep.mubr.bf16.mxu0 0
          %713 = vmatmul.mubr.bf16.gmra.mrb[0].mxu0 %v670
          %v714 = vpop.f32.mrb[0].mxu0
          %v715 = vadd.f32 0.0, %v714
          %v716 = vpop.f32.mrb[0].mxu0
          %v717 = vpop.f32.mrb[0].mxu0
          %v718 = vpop.f32.mrb[0].mxu0
          %719 = vdwg.mxu0
          %v720 = vpack.c.bf16 %v710, %v707
          %v721 = vpack.c.bf16 %v715, %v715
          %v724 = vunpack.c.l.b16 %v720
          %v725 = vunpack.c.h.b16 %v720
          %v726 = vunpack.c.l.b16 %v721
          %v727 = vpack.c.b16 %v724, %v724
          %v728 = vpack.c.b16 %v725, %v725
          %v729 = vpack.c.b16 %v726, %v726
          %vm733 = vcmask 257024
          %734 = vst.msk [vmem:[#allocation2] sm:$0xf] %vm733, %v727
          %735 = vst.msk [vmem:[#allocation2 + $0x4] sm:$0xf] %vm733, %v728
          %736 = vst.msk [vmem:[#allocation2 + $0x8] sm:$0xf] %vm733, %v729
          %v737 = vld [vmem:[#allocation5] sm:$0xf]
          %v738 = vld [vmem:[#allocation5 + $0x4] sm:$0xf]
          %v739 = vld [vmem:[#allocation5 + $0x8] sm:$0xf]
          %v740 = vld [vmem:[#allocation5 + $0xc] sm:$0xf]
          %v745 = vunpack.c.l.b16 %v737
          %v746 = vunpack.c.l.b16 %v738
          %v747 = vunpack.c.l.b16 %v739
          %v748 = vunpack.c.l.b16 %v740
          %v749 = vpack.c.b16 %v746, %v745
          %v750 = vpack.c.b16 %v748, %v747
          %753 = vmatprep.subr.bf16.mxu0 0
          %754 = vmatpush1.bf16.msra.mxu0 %v749
          %755 = vmatprep.subr.bf16.mxu0 0
          %756 = vmatpush1.bf16.msra.mxu0 %v750
          %757 = vmatprep.subr.bf16.mxu0 0
          %758 = vmatpush1.bf16.msra.mxu0 0
          %759 = vmatprep.subr.bf16.mxu0 0
          %760 = vmatpush1.bf16.msra.mxu0 0
          %761 = vmatprep.subr.bf16.mxu0 0
          %762 = vmatpush1.bf16.msra.mxu0 0
          %763 = vmatprep.subr.bf16.mxu0 0
          %764 = vmatpush1.bf16.msra.mxu0 0
          %765 = vmatprep.subr.bf16.mxu0 0
          %766 = vmatpush1.bf16.msra.mxu0 0
          %767 = vmatprep.subr.bf16.mxu0 0
          %768 = vmatpush1.bf16.msra.mxu0 0
          %769 = vmatprep.subr.bf16.mxu0 0
          %770 = vmatpush1.bf16.msra.mxu0 0
          %771 = vmatprep.subr.bf16.mxu0 0
          %772 = vmatpush1.bf16.msra.mxu0 0
          %773 = vmatprep.subr.bf16.mxu0 0
          %774 = vmatpush1.bf16.msra.mxu0 0
          %775 = vmatprep.subr.bf16.mxu0 0
          %776 = vmatpush1.bf16.msra.mxu0 0
          %777 = vmatprep.subr.bf16.mxu0 0
          %778 = vmatpush1.bf16.msra.mxu0 0
          %779 = vmatprep.subr.bf16.mxu0 0
          %780 = vmatpush1.bf16.msra.mxu0 0
          %781 = vmatprep.subr.bf16.mxu0 0
          %782 = vmatpush1.bf16.msra.mxu0 0
          %783 = vmatprep.subr.bf16.mxu0 0
          %784 = vmatpush1.bf16.msra.mxu0 0
          %785 = vmatprep.mubr.bf16.mxu0 0
          %786 = vmatmul.mubr.bf16.gmra.mrb[0].mxu0 %v667
          %v787 = vpop.f32.mrb[0].mxu0
          %v788 = vadd.f32 0.0, %v787
          %v789 = vpop.f32.mrb[0].mxu0
          %v790 = vpop.f32.mrb[0].mxu0
          %v791 = vadd.f32 0.0, %v790
          %v792 = vpop.f32.mrb[0].mxu0
          %793 = vmatprep.mubr.bf16.mxu0 0
          %794 = vmatmul.mubr.bf16.gmra.mrb[0].mxu0 %v670
          %v795 = vpop.f32.mrb[0].mxu0
          %v796 = vadd.f32 0.0, %v795
          %v797 = vpop.f32.mrb[0].mxu0
          %v798 = vpop.f32.mrb[0].mxu0
          %v799 = vpop.f32.mrb[0].mxu0
          %800 = vdwg.mxu0
          %v801 = vpack.c.bf16 %v791, %v788
          %v802 = vpack.c.bf16 %v796, %v796
          %v805 = vunpack.c.l.b16 %v801
          %v806 = vunpack.c.h.b16 %v801
          %v807 = vunpack.c.l.b16 %v802
          %v808 = vpack.c.b16 %v805, %v805
          %v809 = vpack.c.b16 %v806, %v806
          %v810 = vpack.c.b16 %v807, %v807
          %814 = vst.msk [vmem:[#allocation3] sm:$0xf] %vm733, %v808
          %815 = vst.msk [vmem:[#allocation3 + $0x4] sm:$0xf] %vm733, %v809
          %816 = vst.msk [vmem:[#allocation3 + $0x8] sm:$0xf] %vm733, %v810
        $region100: #{tpu_custom_call.1} parent=79 // pred_fallthru
          _
        %s817 = smul.u32 %s37, 8
        %s818 = scalar_lea.vmem %s573, %s817
        %v819 = vld [vmem:[%s818] sm:$0xff]
        %vm820 = vcmask 261120
        %v821 = vsel %vm820, %v819, 0.0
        %822 = vadd.xlane.f32.xlu0 %v821
        %v823 = vpop.xlane.xlu0 %822
        %v824 = vrcp.pop 32.0
        %v825 = vmul.f32 %v823, %v824
        %v826 = vsub.f32 %v819, %v825
        %v827 = vmul.f32 %v826, %v826
        %v828 = vsel %vm820, %v827, 0.0
        %829 = vadd.xlane.f32.xlu0 %v828
        %v830 = vpop.xlane.xlu0 %829
        %v831 = vmul.f32 %v830, %v824
        %v832 = vadd.f32 %v831, 1e-05
        %v833 = vrsqrt.pop %v832
        %v834 = vmul.f32 %v826, %v833
        %v836 = vlaneseq
        %v837 = vshrl.u32 %v836, 7
        %v838 = vsub.s32 0, %v837
        %v839 = vrot.slane %v580, %v838
        %v841 = vmul.f32 %v834, %v839
        %v843 = vlaneseq
        %v844 = vshrl.u32 %v843, 7
        %v845 = vsub.s32 0, %v844
        %v846 = vrot.slane %v581, %v845
        %v848 = vadd.f32 %v841, %v846
        %v849 = vpack.c.bf16 %v848, %v848
        %v850 = vld [vmem:[%s4] sm:$0xf]
        %v851 = vld [vmem:[%s4 + $0x4] sm:$0xf]
        %v852 = vld [vmem:[%s4 + $0x8] sm:$0xf]
        %v853 = vld [vmem:[%s4 + $0xc] sm:$0xf]
        %v858 = vunpack.c.l.b16 %v850
        %v859 = vunpack.c.l.b16 %v851
        %v860 = vunpack.c.l.b16 %v852
        %v861 = vunpack.c.l.b16 %v853
        %v862 = vpack.c.b16 %v859, %v858
        %v863 = vpack.c.b16 %v861, %v860
        %v867 = vsel %vm820, %v849, 0
        %869 = vmatprep.subr.bf16.mxu0 0
        %870 = vmatpush1.bf16.msra.mxu0 %v862
        %871 = vmatprep.subr.bf16.mxu0 0
        %872 = vmatpush1.bf16.msra.mxu0 %v863
        %873 = vmatprep.subr.bf16.mxu0 0
        %874 = vmatpush1.bf16.msra.mxu0 0
        %875 = vmatprep.subr.bf16.mxu0 0
        %876 = vmatpush1.bf16.msra.mxu0 0
        %877 = vmatprep.subr.bf16.mxu0 0
        %878 = vmatpush1.bf16.msra.mxu0 0
        %879 = vmatprep.subr.bf16.mxu0 0
        %880 = vmatpush1.bf16.msra.mxu0 0
        %881 = vmatprep.subr.bf16.mxu0 0
        %882 = vmatpush1.bf16.msra.mxu0 0
        %883 = vmatprep.subr.bf16.mxu0 0
        %884 = vmatpush1.bf16.msra.mxu0 0
        %885 = vmatprep.subr.bf16.mxu0 0
        %886 = vmatpush1.bf16.msra.mxu0 0
        %887 = vmatprep.subr.bf16.mxu0 0
        %888 = vmatpush1.bf16.msra.mxu0 0
        %889 = vmatprep.subr.bf16.mxu0 0
        %890 = vmatpush1.bf16.msra.mxu0 0
        %891 = vmatprep.subr.bf16.mxu0 0
        %892 = vmatpush1.bf16.msra.mxu0 0
        %893 = vmatprep.subr.bf16.mxu0 0
        %894 = vmatpush1.bf16.msra.mxu0 0
        %895 = vmatprep.subr.bf16.mxu0 0
        %896 = vmatpush1.bf16.msra.mxu0 0
        %897 = vmatprep.subr.bf16.mxu0 0
        %898 = vmatpush1.bf16.msra.mxu0 0
        %899 = vmatprep.subr.bf16.mxu0 0
        %900 = vmatpush1.bf16.msra.mxu0 0
        %901 = vmatprep.mubr.bf16.mxu0 0
        %902 = vmatmul.mubr.bf16.gmra.mrb[0].mxu0 %v867
        %v903 = vpop.f32.mrb[0].mxu0
        %v904 = vadd.f32 0.0, %v903
        %v905 = vpop.f32.mrb[0].mxu0
        %v906 = vpop.f32.mrb[0].mxu0
        %v907 = vpop.f32.mrb[0].mxu0
        %908 = vdwg.mxu0
        %v909 = vpack.c.bf16 %v904, %v904
        %v910 = vld [vmem:[#allocation2] sm:$0xf]
        %v911 = vld [vmem:[#allocation2 + $0x4] sm:$0xf]
        %v912 = vld [vmem:[#allocation2 + $0x8] sm:$0xf]
        %v913 = vld [vmem:[#allocation3] sm:$0xf]
        %v914 = vld [vmem:[#allocation3 + $0x4] sm:$0xf]
        %v915 = vld [vmem:[#allocation3 + $0x8] sm:$0xf]
        %v919 = vunpack.c.l.b16 %v910
        %v920 = vunpack.c.l.b16 %v911
        %v921 = vunpack.c.l.b16 %v912
        %v922 = vpack.c.b16 %v920, %v919
        %v923 = vpack.c.b16 %v921, %v921
        %vm924 = vcmask 64512
        %v926 = vsel %vm924, %v909, 0
        %v929 = vsel %vm924, %v922, 0
        %v932 = vsel %vm924, %v923, 0
        %934 = vmatprep.subr.bf16.mxu0 0
        %935 = vmatpush1.bf16.xpose.msra.mxu0 %v929
        %936 = vmatprep.subr.bf16.mxu0 0
        %937 = vmatpush1.bf16.xpose.msra.mxu0 %v932
        %938 = vmatprep.subr.bf16.mxu0 0
        %939 = vmatpush1.bf16.xpose.msra.mxu0 0
        %940 = vmatprep.subr.bf16.mxu0 0
        %941 = vmatpush1.bf16.xpose.msra.mxu0 0
        %942 = vmatprep.subr.bf16.mxu0 0
        %943 = vmatpush1.bf16.xpose.msra.mxu0 0
        %944 = vmatprep.subr.bf16.mxu0 0
        %945 = vmatpush1.bf16.xpose.msra.mxu0 0
        %946 = vmatprep.subr.bf16.mxu0 0
        %947 = vmatpush1.bf16.xpose.msra.mxu0 0
        %948 = vmatprep.subr.bf16.mxu0 0
        %949 = vmatpush1.bf16.xpose.msra.mxu0 0
        %950 = vmatprep.subr.bf16.mxu0 0
        %951 = vmatpush1.bf16.xpose.msra.mxu0 0
        %952 = vmatprep.subr.bf16.mxu0 0
        %953 = vmatpush1.bf16.xpose.msra.mxu0 0
        %954 = vmatprep.subr.bf16.mxu0 0
        %955 = vmatpush1.bf16.xpose.msra.mxu0 0
        %956 = vmatprep.subr.bf16.mxu0 0
        %957 = vmatpush1.bf16.xpose.msra.mxu0 0
        %958 = vmatprep.subr.bf16.mxu0 0
        %959 = vmatpush1.bf16.xpose.msra.mxu0 0
        %960 = vmatprep.subr.bf16.mxu0 0
        %961 = vmatpush1.bf16.xpose.msra.mxu0 0
        %962 = vmatprep.subr.bf16.mxu0 0
        %963 = vmatpush1.bf16.xpose.msra.mxu0 0
        %964 = vmatprep.subr.bf16.mxu0 0
        %965 = vmatpush1.bf16.xpose.msra.mxu0 0
        %966 = vmatprep.mubr.bf16.mxu0 0
        %967 = vmatmul.mubr.bf16.gmra.mrb[0].mxu0 %v926
        %v968 = vpop.f32.mrb[0].mxu0
        %v969 = vadd.f32 0.0, %v968
        %v970 = vpop.f32.mrb[0].mxu0
        %v971 = vpop.f32.mrb[0].mxu0
        %v972 = vpop.f32.mrb[0].mxu0
        %973 = vdwg.mxu0
        %vm974 = vcmask 195584
        %v975 = vsel %vm974, %v969, -inf
        %976 = vmax.xlane.f32.xlu0 %v975
        %v977 = vpop.xlane.xlu0 %976
        %v978 = vsub.f32 %v969, %v977
        %v979 = vmul.f32 %v978, 1.442695
        %v980 = vpow.pop %v979
        %v981 = vsel %vm974, %v980, 0.0
        %982 = vadd.xlane.f32.xlu0 %v981
        %v983 = vpop.xlane.xlu0 %982
        %v984 = vrcp.pop %v983
        %v985 = vpack.c.bf16 %v980, %v980
        %v989 = vunpack.c.l.b16 %v913
        %v990 = vunpack.c.l.b16 %v914
        %v991 = vunpack.c.l.b16 %v915
        %v992 = vpack.c.b16 %v990, %v989
        %v993 = vpack.c.b16 %v991, %v991
        %v996 = vsel %vm974, %v985, 0
        %vm998 = vcmask 1043456
        %v1000 = vsel %vm998, %v993, 0
        %1002 = vmatprep.subr.bf16.mxu0 0
        %1003 = vmatpush1.bf16.msra.mxu0 %v992
        %1004 = vmatprep.subr.bf16.mxu0 0
        %1005 = vmatpush1.bf16.msra.mxu0 %v1000
        %1006 = vmatprep.subr.bf16.mxu0 0
        %1007 = vmatpush1.bf16.msra.mxu0 0
        %1008 = vmatprep.subr.bf16.mxu0 0
        %1009 = vmatpush1.bf16.msra.mxu0 0
        %1010 = vmatprep.subr.bf16.mxu0 0
        %1011 = vmatpush1.bf16.msra.mxu0 0
        %1012 = vmatprep.subr.bf16.mxu0 0
        %1013 = vmatpush1.bf16.msra.mxu0 0
        %1014 = vmatprep.subr.bf16.mxu0 0
        %1015 = vmatpush1.bf16.msra.mxu0 0
        %1016 = vmatprep.subr.bf16.mxu0 0
        %1017 = vmatpush1.bf16.msra.mxu0 0
        %1018 = vmatprep.subr.bf16.mxu0 0
        %1019 = vmatpush1.bf16.msra.mxu0 0
        %1020 = vmatprep.subr.bf16.mxu0 0
        %1021 = vmatpush1.bf16.msra.mxu0 0
        %1022 = vmatprep.subr.bf16.mxu0 0
        %1023 = vmatpush1.bf16.msra.mxu0 0
        %1024 = vmatprep.subr.bf16.mxu0 0
        %1025 = vmatpush1.bf16.msra.mxu0 0
        %1026 = vmatprep.subr.bf16.mxu0 0
        %1027 = vmatpush1.bf16.msra.mxu0 0
        %1028 = vmatprep.subr.bf16.mxu0 0
        %1029 = vmatpush1.bf16.msra.mxu0 0
        %1030 = vmatprep.subr.bf16.mxu0 0
        %1031 = vmatpush1.bf16.msra.mxu0 0
        %1032 = vmatprep.subr.bf16.mxu0 0
        %1033 = vmatpush1.bf16.msra.mxu0 0
        %1034 = vmatprep.mubr.bf16.mxu0 0
        %1035 = vmatmul.mubr.bf16.gmra.mrb[0].mxu0 %v996
        %v1036 = vpop.f32.mrb[0].mxu0
        %v1037 = vadd.f32 0.0, %v1036
        %v1038 = vpop.f32.mrb[0].mxu0
        %v1039 = vpop.f32.mrb[0].mxu0
        %v1040 = vpop.f32.mrb[0].mxu0
        %1041 = vdwg.mxu0
        %v1042 = vmul.f32 %v1037, %v984
        %v1043 = vpack.c.bf16 %v1042, %v1042
        %vm1044 = vcmask 60416
        %1045 = vst.msk [vmem:[#allocation4] sm:$0xf] %vm1044, %v1043
        %1047 = vrot.lane.b32.xlu0 %v909, 120
        %v1048 = vpop.permute.xlu0 %1047
        %1049 = vrot.lane.b32.xlu0 %v922, 120
        %v1050 = vpop.permute.xlu0 %1049
        %1051 = vrot.lane.b32.xlu0 %v923, 120
        %v1052 = vpop.permute.xlu0 %1051
        %v1054 = vsel %vm924, %v1048, 0
        %v1057 = vsel %vm924, %v1050, 0
        %v1060 = vsel %vm924, %v1052, 0
        %1062 = vmatprep.subr.bf16.mxu0 0
        %1063 = vmatpush1.bf16.xpose.msra.mxu0 %v1057
        %1064 = vmatprep.subr.bf16.mxu0 0
        %1065 = vmatpush1.bf16.xpose.msra.mxu0 %v1060
        %1066 = vmatprep.subr.bf16.mxu0 0
        %1067 = vmatpush1.bf16.xpose.msra.mxu0 0
        %1068 = vmatprep.subr.bf16.mxu0 0
        %1069 = vmatpush1.bf16.xpose.msra.mxu0 0
        %1070 = vmatprep.subr.bf16.mxu0 0
        %1071 = vmatpush1.bf16.xpose.msra.mxu0 0
        %1072 = vmatprep.subr.bf16.mxu0 0
        %1073 = vmatpush1.bf16.xpose.msra.mxu0 0
        %1074 = vmatprep.subr.bf16.mxu0 0
        %1075 = vmatpush1.bf16.xpose.msra.mxu0 0
        %1076 = vmatprep.subr.bf16.mxu0 0
        %1077 = vmatpush1.bf16.xpose.msra.mxu0 0
        %1078 = vmatprep.subr.bf16.mxu0 0
        %1079 = vmatpush1.bf16.xpose.msra.mxu0 0
        %1080 = vmatprep.subr.bf16.mxu0 0
        %1081 = vmatpush1.bf16.xpose.msra.mxu0 0
        %1082 = vmatprep.subr.bf16.mxu0 0
        %1083 = vmatpush1.bf16.xpose.msra.mxu0 0
        %1084 = vmatprep.subr.bf16.mxu0 0
        %1085 = vmatpush1.bf16.xpose.msra.mxu0 0
        %1086 = vmatprep.subr.bf16.mxu0 0
        %1087 = vmatpush1.bf16.xpose.msra.mxu0 0
        %1088 = vmatprep.subr.bf16.mxu0 0
        %1089 = vmatpush1.bf16.xpose.msra.mxu0 0
        %1090 = vmatprep.subr.bf16.mxu0 0
        %1091 = vmatpush1.bf16.xpose.msra.mxu0 0
        %1092 = vmatprep.subr.bf16.mxu0 0
        %1093 = vmatpush1.bf16.xpose.msra.mxu0 0
        %1094 = vmatprep.mubr.bf16.mxu0 0
        %1095 = vmatmul.mubr.bf16.gmra.mrb[0].mxu0 %v1054
        %v1096 = vpop.f32.mrb[0].mxu0
        %v1097 = vadd.f32 0.0, %v1096
        %v1098 = vpop.f32.mrb[0].mxu0
        %v1099 = vpop.f32.mrb[0].mxu0
        %v1100 = vpop.f32.mrb[0].mxu0
        %1101 = vdwg.mxu0
        %v1102 = vsel %vm974, %v1097, -inf
        %1103 = vmax.xlane.f32.xlu0 %v1102
        %v1104 = vpop.xlane.xlu0 %1103
        %v1105 = vsub.f32 %v1097, %v1104
        %v1106 = vmul.f32 %v1105, 1.442695
        %v1107 = vpow.pop %v1106
        %v1108 = vsel %vm974, %v1107, 0.0
        %1109 = vadd.xlane.f32.xlu0 %v1108
        %v1110 = vpop.xlane.xlu0 %1109
        %v1111 = vrcp.pop %v1110
        %v1112 = vpack.c.bf16 %v1107, %v1107
        %1113 = vrot.lane.b32.xlu0 %v992, 120
        %v1114 = vpop.permute.xlu0 %1113
        %1115 = vrot.lane.b32.xlu0 %v993, 120
        %v1116 = vpop.permute.xlu0 %1115
        %v1119 = vsel %vm974, %v1112, 0
        %v1122 = vsel %vm998, %v1116, 0
        %1124 = vmatprep.subr.bf16.mxu0 0
        %1125 = vmatpush1.bf16.msra.mxu0 %v1114
        %1126 = vmatprep.subr.bf16.mxu0 0
        %1127 = vmatpush1.bf16.msra.mxu0 %v1122
        %1128 = vmatprep.subr.bf16.mxu0 0
        %1129 = vmatpush1.bf16.msra.mxu0 0
        %1130 = vmatprep.subr.bf16.mxu0 0
        %1131 = vmatpush1.bf16.msra.mxu0 0
        %1132 = vmatprep.subr.bf16.mxu0 0
        %1133 = vmatpush1.bf16.msra.mxu0 0
        %1134 = vmatprep.subr.bf16.mxu0 0
        %1135 = vmatpush1.bf16.msra.mxu0 0
        %1136 = vmatprep.subr.bf16.mxu0 0
        %1137 = vmatpush1.bf16.msra.mxu0 0
        %1138 = vmatprep.subr.bf16.mxu0 0
        %1139 = vmatpush1.bf16.msra.mxu0 0
        %1140 = vmatprep.subr.bf16.mxu0 0
        %1141 = vmatpush1.bf16.msra.mxu0 0
        %1142 = vmatprep.subr.bf16.mxu0 0
        %1143 = vmatpush1.bf16.msra.mxu0 0
        %1144 = vmatprep.subr.bf16.mxu0 0
        %1145 = vmatpush1.bf16.msra.mxu0 0
        %1146 = vmatprep.subr.bf16.mxu0 0
        %1147 = vmatpush1.bf16.msra.mxu0 0
        %1148 = vmatprep.subr.bf16.mxu0 0
        %1149 = vmatpush1.bf16.msra.mxu0 0
        %1150 = vmatprep.subr.bf16.mxu0 0
        %1151 = vmatpush1.bf16.msra.mxu0 0
        %1152 = vmatprep.subr.bf16.mxu0 0
        %1153 = vmatpush1.bf16.msra.mxu0 0
        %1154 = vmatprep.subr.bf16.mxu0 0
        %1155 = vmatpush1.bf16.msra.mxu0 0
        %1156 = vmatprep.mubr.bf16.mxu0 0
        %1157 = vmatmul.mubr.bf16.gmra.mrb[0].mxu0 %v1119
        %v1158 = vpop.f32.mrb[0].mxu0
        %v1159 = vadd.f32 0.0, %v1158
        %v1160 = vpop.f32.mrb[0].mxu0
        %v1161 = vpop.f32.mrb[0].mxu0
        %v1162 = vpop.f32.mrb[0].mxu0
        %1163 = vdwg.mxu0
        %v1164 = vmul.f32 %v1159, %v1111
        %v1165 = vpack.c.bf16 %v1164, %v1164
        %v1167 = vunpack.c.l.b16 %v1165
        %v1168 = vpack.c.b16 %v1167, %v1167
        %1169 = vrot.lane.b32.xlu0 %v1168, 8
        %v1170 = vpop.permute.xlu0 %1169
        %vm1172 = vcmask 126016
        %1173 = vst.msk [vmem:[#allocation4] sm:$0xf] %vm1172, %v1170
        %1174 = vrot.lane.b32.xlu0 %v909, 112
        %v1175 = vpop.permute.xlu0 %1174
        %1176 = vrot.lane.b32.xlu0 %v922, 112
        %v1177 = vpop.permute.xlu0 %1176
        %1178 = vrot.lane.b32.xlu0 %v923, 112
        %v1179 = vpop.permute.xlu0 %1178
        %v1181 = vsel %vm924, %v1175, 0
        %v1184 = vsel %vm924, %v1177, 0
        %v1187 = vsel %vm924, %v1179, 0
        %1189 = vmatprep.subr.bf16.mxu0 0
        %1190 = vmatpush1.bf16.xpose.msra.mxu0 %v1184
        %1191 = vmatprep.subr.bf16.mxu0 0
        %1192 = vmatpush1.bf16.xpose.msra.mxu0 %v1187
        %1193 = vmatprep.subr.bf16.mxu0 0
        %1194 = vmatpush1.bf16.xpose.msra.mxu0 0
        %1195 = vmatprep.subr.bf16.mxu0 0
        %1196 = vmatpush1.bf16.xpose.msra.mxu0 0
        %1197 = vmatprep.subr.bf16.mxu0 0
        %1198 = vmatpush1.bf16.xpose.msra.mxu0 0
        %1199 = vmatprep.subr.bf16.mxu0 0
        %1200 = vmatpush1.bf16.xpose.msra.mxu0 0
        %1201 = vmatprep.subr.bf16.mxu0 0
        %1202 = vmatpush1.bf16.xpose.msra.mxu0 0
        %1203 = vmatprep.subr.bf16.mxu0 0
        %1204 = vmatpush1.bf16.xpose.msra.mxu0 0
        %1205 = vmatprep.subr.bf16.mxu0 0
        %1206 = vmatpush1.bf16.xpose.msra.mxu0 0
        %1207 = vmatprep.subr.bf16.mxu0 0
        %1208 = vmatpush1.bf16.xpose.msra.mxu0 0
        %1209 = vmatprep.subr.bf16.mxu0 0
        %1210 = vmatpush1.bf16.xpose.msra.mxu0 0
        %1211 = vmatprep.subr.bf16.mxu0 0
        %1212 = vmatpush1.bf16.xpose.msra.mxu0 0
        %1213 = vmatprep.subr.bf16.mxu0 0
        %1214 = vmatpush1.bf16.xpose.msra.mxu0 0
        %1215 = vmatprep.subr.bf16.mxu0 0
        %1216 = vmatpush1.bf16.xpose.msra.mxu0 0
        %1217 = vmatprep.subr.bf16.mxu0 0
        %1218 = vmatpush1.bf16.xpose.msra.mxu0 0
        %1219 = vmatprep.subr.bf16.mxu0 0
        %1220 = vmatpush1.bf16.xpose.msra.mxu0 0
        %1221 = vmatprep.mubr.bf16.mxu0 0
        %1222 = vmatmul.mubr.bf16.gmra.mrb[0].mxu0 %v1181
        %v1223 = vpop.f32.mrb[0].mxu0
        %v1224 = vadd.f32 0.0, %v1223
        %v1225 = vpop.f32.mrb[0].mxu0
        %v1226 = vpop.f32.mrb[0].mxu0
        %v1227 = vpop.f32.mrb[0].mxu0
        %1228 = vdwg.mxu0
        %v1229 = vsel %vm974, %v1224, -inf
        %1230 = vmax.xlane.f32.xlu0 %v1229
        %v1231 = vpop.xlane.xlu0 %1230
        %v1232 = vsub.f32 %v1224, %v1231
        %v1233 = vmul.f32 %v1232, 1.442695
        %v1234 = vpow.pop %v1233
        %v1235 = vsel %vm974, %v1234, 0.0
        %1236 = vadd.xlane.f32.xlu0 %v1235
        %v1237 = vpop.xlane.xlu0 %1236
        %v1238 = vrcp.pop %v1237
        %v1239 = vpack.c.bf16 %v1234, %v1234
        %1240 = vrot.lane.b32.xlu0 %v992, 112
        %v1241 = vpop.permute.xlu0 %1240
        %1242 = vrot.lane.b32.xlu0 %v993, 112
        %v1243 = vpop.permute.xlu0 %1242
        %v1246 = vsel %vm974, %v1239, 0
        %v1249 = vsel %vm998, %v1243, 0
        %1251 = vmatprep.subr.bf16.mxu0 0
        %1252 = vmatpush1.bf16.msra.mxu0 %v1241
        %1253 = vmatprep.subr.bf16.mxu0 0
        %1254 = vmatpush1.bf16.msra.mxu0 %v1249
        %1255 = vmatprep.subr.bf16.mxu0 0
        %1256 = vmatpush1.bf16.msra.mxu0 0
        %1257 = vmatprep.subr.bf16.mxu0 0
        %1258 = vmatpush1.bf16.msra.mxu0 0
        %1259 = vmatprep.subr.bf16.mxu0 0
        %1260 = vmatpush1.bf16.msra.mxu0 0
        %1261 = vmatprep.subr.bf16.mxu0 0
        %1262 = vmatpush1.bf16.msra.mxu0 0
        %1263 = vmatprep.subr.bf16.mxu0 0
        %1264 = vmatpush1.bf16.msra.mxu0 0
        %1265 = vmatprep.subr.bf16.mxu0 0
        %1266 = vmatpush1.bf16.msra.mxu0 0
        %1267 = vmatprep.subr.bf16.mxu0 0
        %1268 = vmatpush1.bf16.msra.mxu0 0
        %1269 = vmatprep.subr.bf16.mxu0 0
        %1270 = vmatpush1.bf16.msra.mxu0 0
        %1271 = vmatprep.subr.bf16.mxu0 0
        %1272 = vmatpush1.bf16.msra.mxu0 0
        %1273 = vmatprep.subr.bf16.mxu0 0
        %1274 = vmatpush1.bf16.msra.mxu0 0
        %1275 = vmatprep.subr.bf16.mxu0 0
        %1276 = vmatpush1.bf16.msra.mxu0 0
        %1277 = vmatprep.subr.bf16.mxu0 0
        %1278 = vmatpush1.bf16.msra.mxu0 0
        %1279 = vmatprep.subr.bf16.mxu0 0
        %1280 = vmatpush1.bf16.msra.mxu0 0
        %1281 = vmatprep.subr.bf16.mxu0 0
        %1282 = vmatpush1.bf16.msra.mxu0 0
        %1283 = vmatprep.mubr.bf16.mxu0 0
        %1284 = vmatmul.mubr.bf16.gmra.mrb[0].mxu0 %v1246
        %v1285 = vpop.f32.mrb[0].mxu0
        %v1286 = vadd.f32 0.0, %v1285
        %v1287 = vpop.f32.mrb[0].mxu0
        %v1288 = vpop.f32.mrb[0].mxu0
        %v1289 = vpop.f32.mrb[0].mxu0
        %1290 = vdwg.mxu0
        %v1291 = vmul.f32 %v1286, %v1238
        %v1292 = vpack.c.bf16 %v1291, %v1291
        %v1294 = vunpack.c.l.b16 %v1292
        %v1295 = vpack.c.b16 %v1294, %v1294
        %1296 = vrot.lane.b32.xlu0 %v1295, 16
        %v1297 = vpop.permute.xlu0 %1296
        %vm1299 = vcmask 191616
        %1300 = vst.msk [vmem:[#allocation4] sm:$0xf] %vm1299, %v1297
        %1301 = vrot.lane.b32.xlu0 %v909, 104
        %v1302 = vpop.permute.xlu0 %1301
        %1303 = vrot.lane.b32.xlu0 %v922, 104
        %v1304 = vpop.permute.xlu0 %1303
        %1305 = vrot.lane.b32.xlu0 %v923, 104
        %v1306 = vpop.permute.xlu0 %1305
        %v1308 = vsel %vm924, %v1302, 0
        %v1311 = vsel %vm924, %v1304, 0
        %v1314 = vsel %vm924, %v1306, 0
        %1316 = vmatprep.subr.bf16.mxu0 0
        %1317 = vmatpush1.bf16.xpose.msra.mxu0 %v1311
        %1318 = vmatprep.subr.bf16.mxu0 0
        %1319 = vmatpush1.bf16.xpose.msra.mxu0 %v1314
        %1320 = vmatprep.subr.bf16.mxu0 0
        %1321 = vmatpush1.bf16.xpose.msra.mxu0 0
        %1322 = vmatprep.subr.bf16.mxu0 0
        %1323 = vmatpush1.bf16.xpose.msra.mxu0 0
        %1324 = vmatprep.subr.bf16.mxu0 0
        %1325 = vmatpush1.bf16.xpose.msra.mxu0 0
        %1326 = vmatprep.subr.bf16.mxu0 0
        %1327 = vmatpush1.bf16.xpose.msra.mxu0 0
        %1328 = vmatprep.subr.bf16.mxu0 0
        %1329 = vmatpush1.bf16.xpose.msra.mxu0 0
        %1330 = vmatprep.subr.bf16.mxu0 0
        %1331 = vmatpush1.bf16.xpose.msra.mxu0 0
        %1332 = vmatprep.subr.bf16.mxu0 0
        %1333 = vmatpush1.bf16.xpose.msra.mxu0 0
        %1334 = vmatprep.subr.bf16.mxu0 0
        %1335 = vmatpush1.bf16.xpose.msra.mxu0 0
        %1336 = vmatprep.subr.bf16.mxu0 0
        %1337 = vmatpush1.bf16.xpose.msra.mxu0 0
        %1338 = vmatprep.subr.bf16.mxu0 0
        %1339 = vmatpush1.bf16.xpose.msra.mxu0 0
        %1340 = vmatprep.subr.bf16.mxu0 0
        %1341 = vmatpush1.bf16.xpose.msra.mxu0 0
        %1342 = vmatprep.subr.bf16.mxu0 0
        %1343 = vmatpush1.bf16.xpose.msra.mxu0 0
        %1344 = vmatprep.subr.bf16.mxu0 0
        %1345 = vmatpush1.bf16.xpose.msra.mxu0 0
        %1346 = vmatprep.subr.bf16.mxu0 0
        %1347 = vmatpush1.bf16.xpose.msra.mxu0 0
        %1348 = vmatprep.mubr.bf16.mxu0 0
        %1349 = vmatmul.mubr.bf16.gmra.mrb[0].mxu0 %v1308
        %v1350 = vpop.f32.mrb[0].mxu0
        %v1351 = vadd.f32 0.0, %v1350
        %v1352 = vpop.f32.mrb[0].mxu0
        %v1353 = vpop.f32.mrb[0].mxu0
        %v1354 = vpop.f32.mrb[0].mxu0
        %1355 = vdwg.mxu0
        %v1356 = vsel %vm974, %v1351, -inf
        %1357 = vmax.xlane.f32.xlu0 %v1356
        %v1358 = vpop.xlane.xlu0 %1357
        %v1359 = vsub.f32 %v1351, %v1358
        %v1360 = vmul.f32 %v1359, 1.442695
        %v1361 = vpow.pop %v1360
        %v1362 = vsel %vm974, %v1361, 0.0
        %1363 = vadd.xlane.f32.xlu0 %v1362
        %v1364 = vpop.xlane.xlu0 %1363
        %v1365 = vrcp.pop %v1364
        %v1366 = vpack.c.bf16 %v1361, %v1361
        %1367 = vrot.lane.b32.xlu0 %v992, 104
        %v1368 = vpop.permute.xlu0 %1367
        %1369 = vrot.lane.b32.xlu0 %v993, 104
        %v1370 = vpop.permute.xlu0 %1369
        %v1373 = vsel %vm974, %v1366, 0
        %v1376 = vsel %vm998, %v1370, 0
        %1378 = vmatprep.subr.bf16.mxu0 0
        %1379 = vmatpush1.bf16.msra.mxu0 %v1368
        %1380 = vmatprep.subr.bf16.mxu0 0
        %1381 = vmatpush1.bf16.msra.mxu0 %v1376
        %1382 = vmatprep.subr.bf16.mxu0 0
        %1383 = vmatpush1.bf16.msra.mxu0 0
        %1384 = vmatprep.subr.bf16.mxu0 0
        %1385 = vmatpush1.bf16.msra.mxu0 0
        %1386 = vmatprep.subr.bf16.mxu0 0
        %1387 = vmatpush1.bf16.msra.mxu0 0
        %1388 = vmatprep.subr.bf16.mxu0 0
        %1389 = vmatpush1.bf16.msra.mxu0 0
        %1390 = vmatprep.subr.bf16.mxu0 0
        %1391 = vmatpush1.bf16.msra.mxu0 0
        %1392 = vmatprep.subr.bf16.mxu0 0
        %1393 = vmatpush1.bf16.msra.mxu0 0
        %1394 = vmatprep.subr.bf16.mxu0 0
        %1395 = vmatpush1.bf16.msra.mxu0 0
        %1396 = vmatprep.subr.bf16.mxu0 0
        %1397 = vmatpush1.bf16.msra.mxu0 0
        %1398 = vmatprep.subr.bf16.mxu0 0
        %1399 = vmatpush1.bf16.msra.mxu0 0
        %1400 = vmatprep.subr.bf16.mxu0 0
        %1401 = vmatpush1.bf16.msra.mxu0 0
        %1402 = vmatprep.subr.bf16.mxu0 0
        %1403 = vmatpush1.bf16.msra.mxu0 0
        %1404 = vmatprep.subr.bf16.mxu0 0
        %1405 = vmatpush1.bf16.msra.mxu0 0
        %1406 = vmatprep.subr.bf16.mxu0 0
        %1407 = vmatpush1.bf16.msra.mxu0 0
        %1408 = vmatprep.subr.bf16.mxu0 0
        %1409 = vmatpush1.bf16.msra.mxu0 0
        %1410 = vmatprep.mubr.bf16.mxu0 0
        %1411 = vmatmul.mubr.bf16.gmra.mrb[0].mxu0 %v1373
        %v1412 = vpop.f32.mrb[0].mxu0
        %v1413 = vadd.f32 0.0, %v1412
        %v1414 = vpop.f32.mrb[0].mxu0
        %v1415 = vpop.f32.mrb[0].mxu0
        %v1416 = vpop.f32.mrb[0].mxu0
        %1417 = vdwg.mxu0
        %v1418 = vmul.f32 %v1413, %v1365
        %v1419 = vpack.c.bf16 %v1418, %v1418
        %v1421 = vunpack.c.l.b16 %v1419
        %v1422 = vpack.c.b16 %v1421, %v1421
        %1423 = vrot.lane.b32.xlu0 %v1422, 24
        %v1424 = vpop.permute.xlu0 %1423
        %vm1426 = vcmask 257216
        %1427 = vst.msk [vmem:[#allocation4] sm:$0xf] %vm1426, %v1424
        %v1428 = vld [vmem:[#allocation4] sm:$0xf]
        %v1429 = vld [vmem:[#allocation8] sm:$0xf]
        %v1430 = vld [vmem:[#allocation8 + $0x4] sm:$0xf]
        %v1431 = vld [vmem:[#allocation8 + $0x8] sm:$0xf]
        %v1432 = vld [vmem:[#allocation8 + $0xc] sm:$0xf]
        %v1433 = vld [vmem:[#allocation10] sm:$0x1]
        %v1435 = vlaneseq
        %v1436 = vshrl.u32 %v1435, 7
        %v1437 = vsub.s32 0, %v1436
        %v1438 = vrot.slane %v1433, %v1437
        %v1444 = vunpack.c.l.b16 %v1429
        %v1445 = vunpack.c.l.b16 %v1430
        %v1446 = vunpack.c.l.b16 %v1431
        %v1447 = vunpack.c.l.b16 %v1432
        %v1448 = vpack.c.b16 %v1445, %v1444
        %v1449 = vpack.c.b16 %v1447, %v1446
        %v1453 = vsel %vm820, %v1428, 0
        %1455 = vmatprep.subr.bf16.mxu0 0
        %1456 = vmatpush1.bf16.msra.mxu0 %v1448
        %1457 = vmatprep.subr.bf16.mxu0 0
        %1458 = vmatpush1.bf16.msra.mxu0 %v1449
        %1459 = vmatprep.subr.bf16.mxu0 0
        %1460 = vmatpush1.bf16.msra.mxu0 0
        %1461 = vmatprep.subr.bf16.mxu0 0
        %1462 = vmatpush1.bf16.msra.mxu0 0
        %1463 = vmatprep.subr.bf16.mxu0 0
        %1464 = vmatpush1.bf16.msra.mxu0 0
        %1465 = vmatprep.subr.bf16.mxu0 0
        %1466 = vmatpush1.bf16.msra.mxu0 0
        %1467 = vmatprep.subr.bf16.mxu0 0
        %1468 = vmatpush1.bf16.msra.mxu0 0
        %1469 = vmatprep.subr.bf16.mxu0 0
        %1470 = vmatpush1.bf16.msra.mxu0 0
        %1471 = vmatprep.subr.bf16.mxu0 0
        %1472 = vmatpush1.bf16.msra.mxu0 0
        %1473 = vmatprep.subr.bf16.mxu0 0
        %1474 = vmatpush1.bf16.msra.mxu0 0
        %1475 = vmatprep.subr.bf16.mxu0 0
        %1476 = vmatpush1.bf16.msra.mxu0 0
        %1477 = vmatprep.subr.bf16.mxu0 0
        %1478 = vmatpush1.bf16.msra.mxu0 0
        %1479 = vmatprep.subr.bf16.mxu0 0
        %1480 = vmatpush1.bf16.msra.mxu0 0
        %1481 = vmatprep.subr.bf16.mxu0 0
        %1482 = vmatpush1.bf16.msra.mxu0 0
        %1483 = vmatprep.subr.bf16.mxu0 0
        %1484 = vmatpush1.bf16.msra.mxu0 0
        %1485 = vmatprep.subr.bf16.mxu0 0
        %1486 = vmatpush1.bf16.msra.mxu0 0
        %1487 = vmatprep.mubr.bf16.mxu0 0
        %1488 = vmatmul.mubr.bf16.gmra.mrb[0].mxu0 %v1453
        %v1489 = vpop.f32.mrb[0].mxu0
        %v1490 = vadd.f32 %v1438, %v1489
        %v1491 = vpop.f32.mrb[0].mxu0
        %v1492 = vpop.f32.mrb[0].mxu0
        %v1493 = vpop.f32.mrb[0].mxu0
        %1494 = vdwg.mxu0
        %v1495 = vadd.f32 %v819, %v1490
        %v1496 = vld [vmem:[#allocation11] sm:$0x1]
        %v1497 = vld [vmem:[%s10] sm:$0x1]
        %v1498 = vsel %vm820, %v1495, 0.0
        %1499 = vadd.xlane.f32.xlu0 %v1498
        %v1500 = vpop.xlane.xlu0 %1499
        %v1501 = vmul.f32 %v1500, %v824
        %v1502 = vsub.f32 %v1495, %v1501
        %v1503 = vmul.f32 %v1502, %v1502
        %v1504 = vsel %vm820, %v1503, 0.0
        %1505 = vadd.xlane.f32.xlu0 %v1504
        %v1506 = vpop.xlane.xlu0 %1505
        %v1507 = vmul.f32 %v1506, %v824
        %v1508 = vadd.f32 %v1507, 1e-05
        %v1509 = vrsqrt.pop %v1508
        %v1510 = vmul.f32 %v1502, %v1509
        %v1512 = vlaneseq
        %v1513 = vshrl.u32 %v1512, 7
        %v1514 = vsub.s32 0, %v1513
        %v1515 = vrot.slane %v1496, %v1514
        %v1517 = vmul.f32 %v1510, %v1515
        %v1519 = vlaneseq
        %v1520 = vshrl.u32 %v1519, 7
        %v1521 = vsub.s32 0, %v1520
        %v1522 = vrot.slane %v1497, %v1521
        %v1524 = vadd.f32 %v1517, %v1522
        %v1525 = vpack.c.bf16 %v1524, %v1524
        %v1526 = vld [vmem:[%s11] sm:$0xf]
        %v1527 = vld [vmem:[%s11 + $0x4] sm:$0xf]
        %v1528 = vld [vmem:[%s11 + $0x8] sm:$0xf]
        %v1529 = vld [vmem:[%s11 + $0xc] sm:$0xf]
        %v1530 = vld [vmem:[%s12] sm:$0x1]
        %v1532 = vlaneseq
        %v1533 = vshrl.u32 %v1532, 7
        %v1534 = vsub.s32 0, %v1533
        %v1535 = vrot.slane %v1530, %v1534
        %v1541 = vunpack.c.l.b16 %v1526
        %v1542 = vunpack.c.l.b16 %v1527
        %v1543 = vunpack.c.l.b16 %v1528
        %v1544 = vunpack.c.l.b16 %v1529
        %v1545 = vpack.c.b16 %v1542, %v1541
        %v1546 = vpack.c.b16 %v1544, %v1543
        %v1550 = vsel %vm820, %v1525, 0
        %1552 = vmatprep.subr.bf16.mxu0 0
        %1553 = vmatpush1.bf16.msra.mxu0 %v1545
        %1554 = vmatprep.subr.bf16.mxu0 0
        %1555 = vmatpush1.bf16.msra.mxu0 %v1546
        %1556 = vmatprep.subr.bf16.mxu0 0
        %1557 = vmatpush1.bf16.msra.mxu0 0
        %1558 = vmatprep.subr.bf16.mxu0 0
        %1559 = vmatpush1.bf16.msra.mxu0 0
        %1560 = vmatprep.subr.bf16.mxu0 0
        %1561 = vmatpush1.bf16.msra.mxu0 0
        %1562 = vmatprep.subr.bf16.mxu0 0
        %1563 = vmatpush1.bf16.msra.mxu0 0
        %1564 = vmatprep.subr.bf16.mxu0 0
        %1565 = vmatpush1.bf16.msra.mxu0 0
        %1566 = vmatprep.subr.bf16.mxu0 0
        %1567 = vmatpush1.bf16.msra.mxu0 0
        %1568 = vmatprep.subr.bf16.mxu0 0
        %1569 = vmatpush1.bf16.msra.mxu0 0
        %1570 = vmatprep.subr.bf16.mxu0 0
        %1571 = vmatpush1.bf16.msra.mxu0 0
        %1572 = vmatprep.subr.bf16.mxu0 0
        %1573 = vmatpush1.bf16.msra.mxu0 0
        %1574 = vmatprep.subr.bf16.mxu0 0
        %1575 = vmatpush1.bf16.msra.mxu0 0
        %1576 = vmatprep.subr.bf16.mxu0 0
        %1577 = vmatpush1.bf16.msra.mxu0 0
        %1578 = vmatprep.subr.bf16.mxu0 0
        %1579 = vmatpush1.bf16.msra.mxu0 0
        %1580 = vmatprep.subr.bf16.mxu0 0
        %1581 = vmatpush1.bf16.msra.mxu0 0
        %1582 = vmatprep.subr.bf16.mxu0 0
        %1583 = vmatpush1.bf16.msra.mxu0 0
        %1584 = vmatprep.mubr.bf16.mxu0 0
        %1585 = vmatmul.mubr.bf16.gmra.mrb[0].mxu0 %v1550
        %v1586 = vpop.f32.mrb[0].mxu0
        %v1587 = vadd.f32 %v1535, %v1586
        %v1588 = vpop.f32.mrb[0].mxu0
        %v1589 = vpop.f32.mrb[0].mxu0
        %v1590 = vpop.f32.mrb[0].mxu0
        %1591 = vdwg.mxu0
        %v1592 = vmax.f32 %v1587, 0.0
        %v1593 = vpack.c.bf16 %v1592, %v1592
        %v1594 = vld [vmem:[%s13] sm:$0xf]
        %v1595 = vld [vmem:[%s13 + $0x4] sm:$0xf]
        %v1596 = vld [vmem:[%s13 + $0x8] sm:$0xf]
        %v1597 = vld [vmem:[%s13 + $0xc] sm:$0xf]
        %v1598 = vld [vmem:[%s13 + $0x10] sm:$0xf]
        %v1599 = vld [vmem:[%s13 + $0x14] sm:$0xf]
        %v1600 = vld [vmem:[%s13 + $0x18] sm:$0xf]
        %v1601 = vld [vmem:[%s13 + $0x1c] sm:$0xf]
        %v1602 = vld [vmem:[%s13 + $0x20] sm:$0xf]
        %v1603 = vld [vmem:[%s13 + $0x24] sm:$0xf]
        %v1604 = vld [vmem:[%s13 + $0x28] sm:$0xf]
        %v1605 = vld [vmem:[%s13 + $0x2c] sm:$0xf]
        %v1606 = vld [vmem:[%s13 + $0x30] sm:$0xf]
        %v1607 = vld [vmem:[%s13 + $0x34] sm:$0xf]
        %v1608 = vld [vmem:[%s13 + $0x38] sm:$0xf]
        %v1609 = vld [vmem:[%s13 + $0x3c] sm:$0xf]
        %v1610 = vld [vmem:[%s14] sm:$0x1]
        %v1612 = vlaneseq
        %v1613 = vshrl.u32 %v1612, 7
        %v1614 = vsub.s32 0, %v1613
        %v1615 = vrot.slane %v1610, %v1614
        %v1633 = vunpack.c.l.b16 %v1594
        %v1634 = vunpack.c.l.b16 %v1595
        %v1635 = vunpack.c.l.b16 %v1596
        %v1636 = vunpack.c.l.b16 %v1597
        %v1637 = vunpack.c.l.b16 %v1598
        %v1638 = vunpack.c.l.b16 %v1599
        %v1639 = vunpack.c.l.b16 %v1600
        %v1640 = vunpack.c.l.b16 %v1601
        %v1641 = vunpack.c.l.b16 %v1602
        %v1642 = vunpack.c.l.b16 %v1603
        %v1643 = vunpack.c.l.b16 %v1604
        %v1644 = vunpack.c.l.b16 %v1605
        %v1645 = vunpack.c.l.b16 %v1606
        %v1646 = vunpack.c.l.b16 %v1607
        %v1647 = vunpack.c.l.b16 %v1608
        %v1648 = vunpack.c.l.b16 %v1609
        %v1649 = vpack.c.b16 %v1634, %v1633
        %v1650 = vpack.c.b16 %v1636, %v1635
        %v1651 = vpack.c.b16 %v1638, %v1637
        %v1652 = vpack.c.b16 %v1640, %v1639
        %v1653 = vpack.c.b16 %v1642, %v1641
        %v1654 = vpack.c.b16 %v1644, %v1643
        %v1655 = vpack.c.b16 %v1646, %v1645
        %v1656 = vpack.c.b16 %v1648, %v1647
        %1665 = vmatprep.subr.bf16.mxu0 0
        %1666 = vmatpush1.bf16.msra.mxu0 %v1649
        %1667 = vmatprep.subr.bf16.mxu0 0
        %1668 = vmatpush1.bf16.msra.mxu0 %v1650
        %1669 = vmatprep.subr.bf16.mxu0 0
        %1670 = vmatpush1.bf16.msra.mxu0 %v1651
        %1671 = vmatprep.subr.bf16.mxu0 0
        %1672 = vmatpush1.bf16.msra.mxu0 %v1652
        %1673 = vmatprep.subr.bf16.mxu0 0
        %1674 = vmatpush1.bf16.msra.mxu0 %v1653
        %1675 = vmatprep.subr.bf16.mxu0 0
        %1676 = vmatpush1.bf16.msra.mxu0 %v1654
        %1677 = vmatprep.subr.bf16.mxu0 0
        %1678 = vmatpush1.bf16.msra.mxu0 %v1655
        %1679 = vmatprep.subr.bf16.mxu0 0
        %1680 = vmatpush1.bf16.msra.mxu0 %v1656
        %1681 = vmatprep.subr.bf16.mxu0 0
        %1682 = vmatpush1.bf16.msra.mxu0 0
        %1683 = vmatprep.subr.bf16.mxu0 0
        %1684 = vmatpush1.bf16.msra.mxu0 0
        %1685 = vmatprep.subr.bf16.mxu0 0
        %1686 = vmatpush1.bf16.msra.mxu0 0
        %1687 = vmatprep.subr.bf16.mxu0 0
        %1688 = vmatpush1.bf16.msra.mxu0 0
        %1689 = vmatprep.subr.bf16.mxu0 0
        %1690 = vmatpush1.bf16.msra.mxu0 0
        %1691 = vmatprep.subr.bf16.mxu0 0
        %1692 = vmatpush1.bf16.msra.mxu0 0
        %1693 = vmatprep.subr.bf16.mxu0 0
        %1694 = vmatpush1.bf16.msra.mxu0 0
        %1695 = vmatprep.subr.bf16.mxu0 0
        %1696 = vmatpush1.bf16.msra.mxu0 0
        %1697 = vmatprep.mubr.bf16.mxu0 0
        %1698 = vmatmul.mubr.bf16.gmra.mrb[0].mxu0 %v1593
        %v1699 = vpop.f32.mrb[0].mxu0
        %v1700 = vadd.f32 %v1615, %v1699
        %v1701 = vpop.f32.mrb[0].mxu0
        %v1702 = vpop.f32.mrb[0].mxu0
        %v1703 = vpop.f32.mrb[0].mxu0
        %1704 = vdwg.mxu0
        %v1705 = vadd.f32 %v1495, %v1700
        %1706 = vst.msk [vmem:[%s569] sm:$0xff] %vm820, %v1705
        %s1707 = sand.u32 %s379, 1
        %s1708 = scalar_lea.sflag [#allocation7], %s1707
        %s1709 = sand.u32 %s379, 1
        %s1710 = smul.addr %s1709, 8
        %s1711 = scalar_lea.vmem [#allocation13], %s1710
        // Predicated region
        $region101: #{tpu_custom_call.1} parent=79 // pred_check
          %p1712 = pneg %p389
        $region102: #{tpu_custom_call.1} parent=79 // pred_check_branch
          %1714 = sbr.rel (%p1712) target = $region104
        $region103: #{tpu_custom_call.1} parent=79 // pred_region
          %s1716 = ssub.s32 128, 128
          %1717 = vsyncadd %s1708, %s1716
          %s1718 = sadd.s32 %s37, %s36
          %s1719 = smul.addr %s1718, 128
          %s1720 = scalar_lea.hbm %s15, %s1719
          %s1722 = sshll.u32 %s1711, 4
          %s1723 = int_to_ptr.vmem [resolvable:$true] %s1722
          %1725 = dma.vmem_to_hbm [thread:$0]  %s1723, 128, %s1720, %s1708
        $region104: #{tpu_custom_call.1} parent=79 // pred_fallthru
          _
      $region80: #{tpu_custom_call.1} parent=5 // pred_fallthru
        _
      %p1726 = scmp.le.s32.totalorder 2, %s27
      // Predicated region
      $region105: #{tpu_custom_call.1} parent=5 // pred_check
        %p1727 = pneg %p1726
      $region106: #{tpu_custom_call.1} parent=5 // pred_check_branch
        %1729 = sbr.rel (%p1727) target = $region108
      $region107: #{tpu_custom_call.1} parent=5 // pred_region
        %s1730 = ssub.s32 %s27, 2
        // Predicated region
        $region109: #{tpu_custom_call.1} parent=107 // pred_check
          %p1731 = pneg %p395
        $region110: #{tpu_custom_call.1} parent=107 // pred_check_branch
          %1733 = sbr.rel (%p1731) target = $region112
        $region111: #{tpu_custom_call.1} parent=107 // pred_region
          %s1734 = sand.u32 %s380, 1
          %s1735 = scalar_lea.sflag [#allocation7], %s1734
          %s1736 = sand.u32 %s380, 1
          %s1737 = smul.addr %s1736, 8
          %s1738 = scalar_lea.vmem [#allocation13], %s1737
          %1739 = dma.done %s1735, 128
        $region112: #{tpu_custom_call.1} parent=107 // pred_fallthru
          _
      $region108: #{tpu_custom_call.1} parent=5 // pred_fallthru
        _
    $region6: #{tpu_custom_call.1} parent=1 // loop_footer
      %s31 = sadd.s32 1, %s27
    $region7: #{tpu_custom_call.1} parent=1 // loop_footer_branch
      %26 = sbr.rel target = $region3
    $region8: #{tpu_custom_call.1} parent=1 // loop_exit
      _
    %1740 = vsyncpa [#allocation6], 1
    %s1741 = scalar_lea.sflag [#allocation6], 1
    %1742 = vsyncpa %s1741, 1
    %1743 = vsyncpa [#allocation9], 1
    %1744 = vsyncpa [#allocation12], 1
    %1745 = vsyncpa [#allocation7], 1
    %s1746 = scalar_lea.sflag [#allocation7], 1
    %1747 = vsyncpa %s1746, 1

</llo_original>
